<compile_context>
chip_gen: v6e
topology: v6e:2x2x1
jax: 0.10.0
libtpu: 0.0.40
codegen_flags: <defaults>
</compile_context>

<pallas_src>
import jax
import jax.numpy as jnp
from jax import lax
from jax.experimental import pallas as pl
from jax.experimental.pallas import tpu as pltpu


# ----------------------------------------------------------------------------
# Single fused kernel: 2-layer LSTM recurrence (wavefront-scheduled) +
# collapsed FC head + sigmoid.
# ----------------------------------------------------------------------------
def review_net_kernel(xp_ref,      # (T, B, 4H)  pre-projected input: x@Wih0+b0
                      h0_ref,      # (2, B, H)   initial hidden
                      c0_ref,      # (2, B, H)   initial cell
                      whh0_ref,    # (H, 4H)     layer-0 recurrent weight
                      wih1_ref,    # (H, 4H)     layer-1 input weight
                      whh1_ref,    # (H, 4H)     layer-1 recurrent weight
                      b1_ref,      # (1, 4H)     b_ih1 + b_hh1
                      wfc_ref,     # (H, 1)      w1 @ w2 @ w3 (collapsed head)
                      bfc_ref,     # (1, 1)      collapsed head bias
                      sig_ref,     # (B, 128)    sigmoid output (lane-dense)
                      hn_ref,      # (2, B, H)   final hidden
                      cn_ref):     # (2, B, H)   final cell
    T = xp_ref.shape[0]
    H = whh0_ref.shape[0]

    whh0 = whh0_ref[...]
    wih1 = wih1_ref[...]
    whh1 = whh1_ref[...]
    b1 = b1_ref[...]

    def activate(gates, c):
        # Slice BEFORE the transcendentals: 3H of sigmoid + H of tanh (plus
        # the tanh(c_new)), instead of sigmoid+tanh over the full 4H.
        sg_if = jax.nn.sigmoid(gates[:, 0:2 * H])       # i | f
        i = sg_if[:, 0:H]
        f = sg_if[:, H:2 * H]
        g = jnp.tanh(gates[:, 2 * H:3 * H])
        o = jax.nn.sigmoid(gates[:, 3 * H:4 * H])
        c_new = f * c + i * g
        h_new = o * jnp.tanh(c_new)
        return h_new, c_new

    def layer0(t, h0, c0):
        # Input projection already folded into xp; only the recurrent matmul
        # sits on the serial chain.
        g0 = xp_ref[t] + jnp.dot(h0, whh0, preferred_element_type=jnp.float32)
        return activate(g0, c0)

    def layer1(h0_t, h1, c1):
        g1 = (jnp.dot(h0_t, wih1, preferred_element_type=jnp.float32)
              + jnp.dot(h1, whh1, preferred_element_type=jnp.float32)
              + b1)
        return activate(g1, c1)

    # --- Wavefront schedule ---------------------------------------------
    # layer-1 of step t needs (h0_t, h1_{t-1}); layer-0 of step t+1 needs
    # h0_t.  Both halves of the loop body depend only on the carry, so their
    # MXU / EUP work can be interleaved by the scheduler.
    h0_t, c0_t = layer0(0, h0_ref[0], c0_ref[0])        # prologue: layer0(0)

    def step(t, carry):
        h0_cur, c0_cur, h1_prev, c1_prev = carry
        h1_new, c1_new = layer1(h0_cur, h1_prev, c1_prev)   # layer1(t)
        h0_new, c0_new = layer0(t + 1, h0_cur, c0_cur)      # layer0(t+1)
        return (h0_new, c0_new, h1_new, c1_new)

    # Bounded unroll: full unroll only for short sequences; at production T a
    # bounded unroll keeps vreg live ranges / code size in check.
    unroll = True if T <= 16 else 8
    init = (h0_t, c0_t, h0_ref[1], c0_ref[1])
    h0f, c0f, h1p, c1p = lax.fori_loop(0, T - 1, step, init, unroll=unroll)

    # Epilogue: layer-1 of the last timestep.
    h1f, c1f = layer1(h0f, h1p, c1p)

    # Final states written once (only the last values are observable).
    hn_ref[0] = h0f
    hn_ref[1] = h1f
    cn_ref[0] = c0f
    cn_ref[1] = c1f

    # Collapsed FC head (fc1->fc2->fc3, no intervening nonlinearity, dropout
    # = identity) applied only to the last timestep's top-layer hidden.
    logits = jnp.dot(h1f, wfc_ref[...],
                     preferred_element_type=jnp.float32) + bfc_ref[...]
    sig = jax.nn.sigmoid(logits)                        # (B, 1)
    # Lane-dense store (unmasked vst); wrapper slices column 0.
    sig_ref[...] = jnp.broadcast_to(sig, sig_ref.shape)


def run_review_net(xp_tb, h0, c0, whh0, wih1, whh1, b1, wfc, bfc):
    T, B, H4 = xp_tb.shape
    H = whh0.shape[0]

    im3 = lambda i: (0, 0, 0)
    im2 = lambda i: (0, 0)

    out_shapes = (
        jax.ShapeDtypeStruct((B, 128), jnp.float32),    # sigmoid (lane-dense)
        jax.ShapeDtypeStruct((2, B, H), jnp.float32),   # h_n
        jax.ShapeDtypeStruct((2, B, H), jnp.float32),   # c_n
    )
    return pl.pallas_call(
        review_net_kernel,
        out_shape=out_shapes,
        grid_spec=pltpu.PrefetchScalarGridSpec(
            num_scalar_prefetch=0,
            grid=(1,),                                  # whole model, one step
            in_specs=[
                pl.BlockSpec((T, B, H4), im3),          # pre-projected input
                pl.BlockSpec((2, B, H), im3),           # h0
                pl.BlockSpec((2, B, H), im3),           # c0
                pl.BlockSpec((H, H4), im2),             # W_hh layer 0
                pl.BlockSpec((H, H4), im2),             # W_ih layer 1
                pl.BlockSpec((H, H4), im2),             # W_hh layer 1
                pl.BlockSpec((1, H4), im2),             # bias layer 1
                pl.BlockSpec((H, 1), im2),              # collapsed FC weight
                pl.BlockSpec((1, 1), im2),              # collapsed FC bias
            ],
            out_specs=[
                pl.BlockSpec((B, 128), im2),
                pl.BlockSpec((2, B, H), im3),
                pl.BlockSpec((2, B, H), im3),
            ],
        ),
        # NOTE: when scaling past demo shapes, chunk the time axis (double-
        # buffered streaming of xp) and set vmem_limit_bytes explicitly
        # (~100 MiB on v5e/v6e, <=~56 MiB on v7x); cast matmul operands to
        # bf16 on v6e/v7x and add a batch-parallel leading grid axis on v7x.
        compiler_params=pltpu.CompilerParams(
            dimension_semantics=("arbitrary",)),
    )(xp_tb, h0, c0, whh0, wih1, whh1, b1, wfc, bfc)


# ----------------------------------------------------------------------------
# Full forward pass.  Glue in plain JAX: one-time parameter folding (load-time
# in a real deployment), embedding gather of the pre-projected table, layout
# transpose.
# ----------------------------------------------------------------------------
def review_net_forward(x_tokens, hidden, params):
    """x_tokens: int32 (B, T); hidden: (h0, c0) each (2, B, H)."""
    h0, c0 = hidden

    # One-time parameter folds:
    #   * layer-0 input projection folded into the embedding table:
    #       (embedding @ W_ih0 + b0)[token] == embedding[token] @ W_ih0 + b0
    #   * fc1->fc2->fc3 collapsed (no nonlinearity between; dropout = id).
    table = params["embedding"] @ params["wih0"] + params["b0"]       # (V, 4H)
    wfc = params["w1"] @ params["w2"] @ params["w3"]                  # (H, 1)
    bfc = ((params["b1f"] @ params["w2"] + params["b2f"]) @ params["w3"]
           + params["b3f"])                                           # (1, 1)

    # Embedding gather of the projected table — glue.
    xp = jnp.take(table, x_tokens, axis=0)                            # (B, T, 4H)
    xp_tb = jnp.transpose(xp, (1, 0, 2))                              # (T, B, 4H)

    sig_pad, h_n, c_n = run_review_net(
        xp_tb, h0, c0,
        params["whh0"], params["wih1"], params["whh1"], params["b1"],
        wfc, bfc)

    # PyTorch applies the head to every row of lstm_out and keeps
    # view(B, -1)[:, -1]; that equals the head applied to the final top-layer
    # hidden state, which is exactly what the kernel computed.
    return sig_pad[:, 0], (h_n, c_n)


# ----------------------------------------------------------------------------
# Pure-JAX reference (same math as the PyTorch module in eval mode).
# ----------------------------------------------------------------------------
def reference_forward(x_tokens, hidden, params):
    B, T = x_tokens.shape
    H = params["whh0"].shape[0]
    h = [hidden[0][0], hidden[0][1]]
    c = [hidden[1][0], hidden[1][1]]
    emb = jnp.take(params["embedding"], x_tokens, axis=0)     # (B, T, E)

    def cell(x, hh, cc, wih, whh, b):
        g = x @ wih + hh @ whh + b
        i, f, gg, o = (jax.nn.sigmoid(g[:, :H]), jax.nn.sigmoid(g[:, H:2 * H]),
                       jnp.tanh(g[:, 2 * H:3 * H]), jax.nn.sigmoid(g[:, 3 * H:]))
        cc = f * cc + i * gg
        return o * jnp.tanh(cc), cc

    outs = []
    for t in range(T):
        h[0], c[0] = cell(emb[:, t], h[0], c[0],
                          params["wih0"], params["whh0"], params["b0"])
        h[1], c[1] = cell(h[0], h[1], c[1],
                          params["wih1"], params["whh1"], params["b1"])
        outs.append(h[1])
    lstm_out = jnp.stack(outs, axis=1).reshape(B * T, H)
    o = lstm_out @ params["w1"] + params["b1f"]
    o = o @ params["w2"] + params["b2f"]
    o = jax.nn.sigmoid(o @ params["w3"] + params["b3f"])
    sig = o.reshape(B, T)[:, -1]
    h_n = jnp.stack([h[0], h[1]], axis=0)
    c_n = jnp.stack([c[0], c[1]], axis=0)
    return sig, h_n, c_n


if __name__ == "__main__":
    # Small, deterministic shapes consistent with the module structure.
    B, T = 2, 8           # batch, sequence length
    V = 50                # vocab_size
    E = 16                # embedding_dim
    H = 32                # hidden_dim
    OUT = 1               # output_size

    key = jax.random.PRNGKey(0)
    ks = jax.random.split(key, 16)
    u = lambda k, shape, s=0.1: jax.random.uniform(k, shape, jnp.float32, -s, s)

    params = {
        "embedding": u(ks[0], (V, E), 1.0),
        # LSTM weights stored transposed for x @ W convenience.
        "wih0": u(ks[1], (E, 4 * H)),
        "whh0": u(ks[2], (H, 4 * H)),
        "b0":   u(ks[3], (1, 4 * H)),       # b_ih + b_hh combined
        "wih1": u(ks[4], (H, 4 * H)),
        "whh1": u(ks[5], (H, 4 * H)),
        "b1":   u(ks[6], (1, 4 * H)),
        # FC head (stored as (in, out) for x @ W).
        "w1":  u(ks[7],  (H, 64)),
        "b1f": u(ks[8],  (1, 64)),
        "w2":  u(ks[9],  (64, 16)),
        "b2f": u(ks[10], (1, 16)),
        "w3":  u(ks[11], (16, OUT)),
        "b3f": u(ks[12], (1, OUT)),
    }

    x_tokens = jax.random.randint(ks[13], (B, T), 1, V).astype(jnp.int32)
    # init_hidden: zeros
    h0 = jnp.zeros((2, B, H), jnp.float32)
    c0 = jnp.zeros((2, B, H), jnp.float32)

    sig_out, (h_n, c_n) = review_net_forward(x_tokens, (h0, c0), params)
    jax.block_until_ready((sig_out, h_n, c_n))

    ref_sig, ref_hn, ref_cn = reference_forward(x_tokens, (h0, c0), params)
    assert sig_out.shape == (B,)
    assert h_n.shape == (2, B, H) and c_n.shape == (2, B, H)
    assert jnp.allclose(sig_out, ref_sig, rtol=2e-3, atol=2e-3)
    assert jnp.allclose(h_n, ref_hn, rtol=2e-3, atol=2e-3)
    assert jnp.allclose(c_n, ref_cn, rtol=2e-3, atol=2e-3)

    # TODO(synk): training-mode dropout (PRNG masking) not implemented; this
    # matches PyTorch eval() semantics (FC-head collapse is only valid there).
    print("KERNEL_OK")
</pallas_src>

<mosaic_0001>
module attributes {stable_mosaic.version = 11 : i64} {
  func.func @review_net_kernel(%arg0: i32, %arg1: memref<8x2x128xf32, #tpu.memory_space<vmem>>, %arg2: memref<2x2x32xf32, #tpu.memory_space<vmem>>, %arg3: memref<2x2x32xf32, #tpu.memory_space<vmem>>, %arg4: memref<32x128xf32, #tpu.memory_space<vmem>>, %arg5: memref<32x128xf32, #tpu.memory_space<vmem>>, %arg6: memref<32x128xf32, #tpu.memory_space<vmem>>, %arg7: memref<1x128xf32, #tpu.memory_space<vmem>>, %arg8: memref<32x1xf32, #tpu.memory_space<vmem>>, %arg9: memref<1x1xf32, #tpu.memory_space<vmem>>, %arg10: memref<2x128xf32, #tpu.memory_space<vmem>>, %arg11: memref<2x2x32xf32, #tpu.memory_space<vmem>>, %arg12: memref<2x2x32xf32, #tpu.memory_space<vmem>>) attributes {dimension_semantics = [#tpu.dimension_semantics<arbitrary>], iteration_bounds = array<i64: 1>, scalar_prefetch = 0 : i64, scratch_operands = 0 : i64, tpu.core_type = #tpu.core_type<tc>, window_params = [{pipeline_mode = #tpu.pipeline_mode<synchronous>, transform_indices = @transform_0, window_bounds = array<i64: 8, 2, 128>}, {pipeline_mode = #tpu.pipeline_mode<synchronous>, transform_indices = @transform_1, window_bounds = array<i64: 2, 2, 32>}, {pipeline_mode = #tpu.pipeline_mode<synchronous>, transform_indices = @transform_2, window_bounds = array<i64: 2, 2, 32>}, {pipeline_mode = #tpu.pipeline_mode<synchronous>, transform_indices = @transform_3, window_bounds = array<i64: 32, 128>}, {pipeline_mode = #tpu.pipeline_mode<synchronous>, transform_indices = @transform_4, window_bounds = array<i64: 32, 128>}, {pipeline_mode = #tpu.pipeline_mode<synchronous>, transform_indices = @transform_5, window_bounds = array<i64: 32, 128>}, {pipeline_mode = #tpu.pipeline_mode<synchronous>, transform_indices = @transform_6, window_bounds = array<i64: 1, 128>}, {pipeline_mode = #tpu.pipeline_mode<synchronous>, transform_indices = @transform_7, window_bounds = array<i64: 32, 1>}, {pipeline_mode = #tpu.pipeline_mode<synchronous>, transform_indices = @transform_8, window_bounds = array<i64: 1, 1>}, {pipeline_mode = #tpu.pipeline_mode<synchronous>, transform_indices = @transform_9, window_bounds = array<i64: 2, 128>}, {pipeline_mode = #tpu.pipeline_mode<synchronous>, transform_indices = @transform_10, window_bounds = array<i64: 2, 2, 32>}, {pipeline_mode = #tpu.pipeline_mode<synchronous>, transform_indices = @transform_11, window_bounds = array<i64: 2, 2, 32>}]} {
    %c0 = arith.constant 0 : index
    %c0_0 = arith.constant 0 : index
    %0 = vector.load %arg4[%c0, %c0_0] : memref<32x128xf32, #tpu.memory_space<vmem>>, vector<32x128xf32>
    %c0_1 = arith.constant 0 : index
    %c0_2 = arith.constant 0 : index
    %1 = vector.load %arg5[%c0_1, %c0_2] : memref<32x128xf32, #tpu.memory_space<vmem>>, vector<32x128xf32>
    %c0_3 = arith.constant 0 : index
    %c0_4 = arith.constant 0 : index
    %2 = vector.load %arg6[%c0_3, %c0_4] : memref<32x128xf32, #tpu.memory_space<vmem>>, vector<32x128xf32>
    %c0_5 = arith.constant 0 : index
    %c0_6 = arith.constant 0 : index
    %3 = vector.load %arg7[%c0_5, %c0_6] : memref<1x128xf32, #tpu.memory_space<vmem>>, vector<1x128xf32>
    %c0_7 = arith.constant 0 : index
    %c0_8 = arith.constant 0 : index
    %c0_9 = arith.constant 0 : index
    %4 = vector.load %arg2[%c0_7, %c0_8, %c0_9] : memref<2x2x32xf32, #tpu.memory_space<vmem>>, vector<1x2x32xf32>
    %5 = vector.shape_cast %4 : vector<1x2x32xf32> to vector<2x32xf32>
    %c0_10 = arith.constant 0 : index
    %c0_11 = arith.constant 0 : index
    %c0_12 = arith.constant 0 : index
    %6 = vector.load %arg3[%c0_10, %c0_11, %c0_12] : memref<2x2x32xf32, #tpu.memory_space<vmem>>, vector<1x2x32xf32>
    %7 = vector.shape_cast %6 : vector<1x2x32xf32> to vector<2x32xf32>
    %c0_13 = arith.constant 0 : index
    %c0_14 = arith.constant 0 : index
    %c0_15 = arith.constant 0 : index
    %8 = vector.load %arg1[%c0_13, %c0_14, %c0_15] : memref<8x2x128xf32, #tpu.memory_space<vmem>>, vector<1x2x128xf32>
    %9 = vector.shape_cast %8 : vector<1x2x128xf32> to vector<2x128xf32>
    %cst = arith.constant dense<0.000000e+00> : vector<2x128xf32>
    %10 = tpu.matmul %5, %0, %cst {dimension_numbers = #tpu.dot_dimension_numbers<[1], [0], [0], [1], [0, 0, 1, 1], [], []>} : vector<2x32xf32>, vector<32x128xf32>, vector<2x128xf32> -> vector<2x128xf32>
    %11 = arith.addf %9, %10 : vector<2x128xf32>
    %12 = vector.extract_strided_slice %11 {offsets = [0, 0], sizes = [2, 64], strides = [1, 1]} : vector<2x128xf32> to vector<2x64xf32>
    %13 = arith.negf %12 : vector<2x64xf32>
    %14 = math.exp %13 : vector<2x64xf32>
    %cst_16 = arith.constant 1.000000e+00 : f32
    %15 = vector.broadcast %cst_16 : f32 to vector<2x64xf32>
    %16 = arith.addf %15, %14 : vector<2x64xf32>
    %17 = arith.divf %15, %16 : vector<2x64xf32>
    %18 = vector.extract_strided_slice %17 {offsets = [0, 0], sizes = [2, 32], strides = [1, 1]} : vector<2x64xf32> to vector<2x32xf32>
    %19 = vector.extract_strided_slice %17 {offsets = [0, 32], sizes = [2, 32], strides = [1, 1]} : vector<2x64xf32> to vector<2x32xf32>
    %20 = vector.extract_strided_slice %11 {offsets = [0, 64], sizes = [2, 32], strides = [1, 1]} : vector<2x128xf32> to vector<2x32xf32>
    %21 = math.tanh %20 : vector<2x32xf32>
    %22 = vector.extract_strided_slice %11 {offsets = [0, 96], sizes = [2, 32], strides = [1, 1]} : vector<2x128xf32> to vector<2x32xf32>
    %23 = arith.negf %22 : vector<2x32xf32>
    %24 = math.exp %23 : vector<2x32xf32>
    %cst_17 = arith.constant 1.000000e+00 : f32
    %25 = vector.broadcast %cst_17 : f32 to vector<2x32xf32>
    %26 = arith.addf %25, %24 : vector<2x32xf32>
    %27 = arith.divf %25, %26 : vector<2x32xf32>
    %28 = arith.mulf %19, %7 : vector<2x32xf32>
    %29 = arith.mulf %18, %21 : vector<2x32xf32>
    %30 = arith.addf %28, %29 : vector<2x32xf32>
    %31 = math.tanh %30 : vector<2x32xf32>
    %32 = arith.mulf %27, %31 : vector<2x32xf32>
    %c1 = arith.constant 1 : index
    %c0_18 = arith.constant 0 : index
    %c0_19 = arith.constant 0 : index
    %33 = vector.load %arg2[%c1, %c0_18, %c0_19] : memref<2x2x32xf32, #tpu.memory_space<vmem>>, vector<1x2x32xf32>
    %34 = vector.shape_cast %33 : vector<1x2x32xf32> to vector<2x32xf32>
    %c1_20 = arith.constant 1 : index
    %c0_21 = arith.constant 0 : index
    %c0_22 = arith.constant 0 : index
    %35 = vector.load %arg3[%c1_20, %c0_21, %c0_22] : memref<2x2x32xf32, #tpu.memory_space<vmem>>, vector<1x2x32xf32>
    %36 = vector.shape_cast %35 : vector<1x2x32xf32> to vector<2x32xf32>
    %c0_i32 = arith.constant 0 : i32
    %cst_23 = arith.constant dense<0.000000e+00> : vector<2x128xf32>
    %37 = tpu.matmul %32, %1, %cst_23 {dimension_numbers = #tpu.dot_dimension_numbers<[1], [0], [0], [1], [0, 0, 1, 1], [], []>} : vector<2x32xf32>, vector<32x128xf32>, vector<2x128xf32> -> vector<2x128xf32>
    %cst_24 = arith.constant dense<0.000000e+00> : vector<2x128xf32>
    %38 = tpu.matmul %34, %2, %cst_24 {dimension_numbers = #tpu.dot_dimension_numbers<[1], [0], [0], [1], [0, 0, 1, 1], [], []>} : vector<2x32xf32>, vector<32x128xf32>, vector<2x128xf32> -> vector<2x128xf32>
    %39 = arith.addf %37, %38 : vector<2x128xf32>
    %40 = vector.broadcast %3 : vector<1x128xf32> to vector<2x128xf32>
    %41 = arith.addf %39, %40 : vector<2x128xf32>
    %42 = vector.extract_strided_slice %41 {offsets = [0, 0], sizes = [2, 64], strides = [1, 1]} : vector<2x128xf32> to vector<2x64xf32>
    %43 = arith.negf %42 : vector<2x64xf32>
    %44 = math.exp %43 : vector<2x64xf32>
    %cst_25 = arith.constant 1.000000e+00 : f32
    %45 = vector.broadcast %cst_25 : f32 to vector<2x64xf32>
    %46 = arith.addf %45, %44 : vector<2x64xf32>
    %47 = arith.divf %45, %46 : vector<2x64xf32>
    %48 = vector.extract_strided_slice %47 {offsets = [0, 0], sizes = [2, 32], strides = [1, 1]} : vector<2x64xf32> to vector<2x32xf32>
    %49 = vector.extract_strided_slice %47 {offsets = [0, 32], sizes = [2, 32], strides = [1, 1]} : vector<2x64xf32> to vector<2x32xf32>
    %50 = vector.extract_strided_slice %41 {offsets = [0, 64], sizes = [2, 32], strides = [1, 1]} : vector<2x128xf32> to vector<2x32xf32>
    %51 = math.tanh %50 : vector<2x32xf32>
    %52 = vector.extract_strided_slice %41 {offsets = [0, 96], sizes = [2, 32], strides = [1, 1]} : vector<2x128xf32> to vector<2x32xf32>
    %53 = arith.negf %52 : vector<2x32xf32>
    %54 = math.exp %53 : vector<2x32xf32>
    %cst_26 = arith.constant 1.000000e+00 : f32
    %55 = vector.broadcast %cst_26 : f32 to vector<2x32xf32>
    %56 = arith.addf %55, %54 : vector<2x32xf32>
    %57 = arith.divf %55, %56 : vector<2x32xf32>
    %58 = arith.mulf %49, %36 : vector<2x32xf32>
    %59 = arith.mulf %48, %51 : vector<2x32xf32>
    %60 = arith.addf %58, %59 : vector<2x32xf32>
    %61 = math.tanh %60 : vector<2x32xf32>
    %62 = arith.mulf %57, %61 : vector<2x32xf32>
    %c1_i32 = arith.constant 1 : i32
    %63 = arith.addi %c0_i32, %c1_i32 : i32
    %64 = arith.index_cast %63 : i32 to index
    %c0_27 = arith.constant 0 : index
    %c0_28 = arith.constant 0 : index
    %65 = vector.load %arg1[%64, %c0_27, %c0_28] : memref<8x2x128xf32, #tpu.memory_space<vmem>>, vector<1x2x128xf32>
    %66 = vector.shape_cast %65 : vector<1x2x128xf32> to vector<2x128xf32>
    %cst_29 = arith.constant dense<0.000000e+00> : vector<2x128xf32>
    %67 = tpu.matmul %32, %0, %cst_29 {dimension_numbers = #tpu.dot_dimension_numbers<[1], [0], [0], [1], [0, 0, 1, 1], [], []>} : vector<2x32xf32>, vector<32x128xf32>, vector<2x128xf32> -> vector<2x128xf32>
    %68 = arith.addf %66, %67 : vector<2x128xf32>
    %69 = vector.extract_strided_slice %68 {offsets = [0, 0], sizes = [2, 64], strides = [1, 1]} : vector<2x128xf32> to vector<2x64xf32>
    %70 = arith.negf %69 : vector<2x64xf32>
    %71 = math.exp %70 : vector<2x64xf32>
    %cst_30 = arith.constant 1.000000e+00 : f32
    %72 = vector.broadcast %cst_30 : f32 to vector<2x64xf32>
    %73 = arith.addf %72, %71 : vector<2x64xf32>
    %74 = arith.divf %72, %73 : vector<2x64xf32>
    %75 = vector.extract_strided_slice %74 {offsets = [0, 0], sizes = [2, 32], strides = [1, 1]} : vector<2x64xf32> to vector<2x32xf32>
    %76 = vector.extract_strided_slice %74 {offsets = [0, 32], sizes = [2, 32], strides = [1, 1]} : vector<2x64xf32> to vector<2x32xf32>
    %77 = vector.extract_strided_slice %68 {offsets = [0, 64], sizes = [2, 32], strides = [1, 1]} : vector<2x128xf32> to vector<2x32xf32>
    %78 = math.tanh %77 : vector<2x32xf32>
    %79 = vector.extract_strided_slice %68 {offsets = [0, 96], sizes = [2, 32], strides = [1, 1]} : vector<2x128xf32> to vector<2x32xf32>
    %80 = arith.negf %79 : vector<2x32xf32>
    %81 = math.exp %80 : vector<2x32xf32>
    %cst_31 = arith.constant 1.000000e+00 : f32
    %82 = vector.broadcast %cst_31 : f32 to vector<2x32xf32>
    %83 = arith.addf %82, %81 : vector<2x32xf32>
    %84 = arith.divf %82, %83 : vector<2x32xf32>
    %85 = arith.mulf %76, %30 : vector<2x32xf32>
    %86 = arith.mulf %75, %78 : vector<2x32xf32>
    %87 = arith.addf %85, %86 : vector<2x32xf32>
    %88 = math.tanh %87 : vector<2x32xf32>
    %89 = arith.mulf %84, %88 : vector<2x32xf32>
    %c1_i32_32 = arith.constant 1 : i32
    %cst_33 = arith.constant dense<0.000000e+00> : vector<2x128xf32>
    %90 = tpu.matmul %89, %1, %cst_33 {dimension_numbers = #tpu.dot_dimension_numbers<[1], [0], [0], [1], [0, 0, 1, 1], [], []>} : vector<2x32xf32>, vector<32x128xf32>, vector<2x128xf32> -> vector<2x128xf32>
    %cst_34 = arith.constant dense<0.000000e+00> : vector<2x128xf32>
    %91 = tpu.matmul %62, %2, %cst_34 {dimension_numbers = #tpu.dot_dimension_numbers<[1], [0], [0], [1], [0, 0, 1, 1], [], []>} : vector<2x32xf32>, vector<32x128xf32>, vector<2x128xf32> -> vector<2x128xf32>
    %92 = arith.addf %90, %91 : vector<2x128xf32>
    %93 = vector.broadcast %3 : vector<1x128xf32> to vector<2x128xf32>
    %94 = arith.addf %92, %93 : vector<2x128xf32>
    %95 = vector.extract_strided_slice %94 {offsets = [0, 0], sizes = [2, 64], strides = [1, 1]} : vector<2x128xf32> to vector<2x64xf32>
    %96 = arith.negf %95 : vector<2x64xf32>
    %97 = math.exp %96 : vector<2x64xf32>
    %cst_35 = arith.constant 1.000000e+00 : f32
    %98 = vector.broadcast %cst_35 : f32 to vector<2x64xf32>
    %99 = arith.addf %98, %97 : vector<2x64xf32>
    %100 = arith.divf %98, %99 : vector<2x64xf32>
    %101 = vector.extract_strided_slice %100 {offsets = [0, 0], sizes = [2, 32], strides = [1, 1]} : vector<2x64xf32> to vector<2x32xf32>
    %102 = vector.extract_strided_slice %100 {offsets = [0, 32], sizes = [2, 32], strides = [1, 1]} : vector<2x64xf32> to vector<2x32xf32>
    %103 = vector.extract_strided_slice %94 {offsets = [0, 64], sizes = [2, 32], strides = [1, 1]} : vector<2x128xf32> to vector<2x32xf32>
    %104 = math.tanh %103 : vector<2x32xf32>
    %105 = vector.extract_strided_slice %94 {offsets = [0, 96], sizes = [2, 32], strides = [1, 1]} : vector<2x128xf32> to vector<2x32xf32>
    %106 = arith.negf %105 : vector<2x32xf32>
    %107 = math.exp %106 : vector<2x32xf32>
    %cst_36 = arith.constant 1.000000e+00 : f32
    %108 = vector.broadcast %cst_36 : f32 to vector<2x32xf32>
    %109 = arith.addf %108, %107 : vector<2x32xf32>
    %110 = arith.divf %108, %109 : vector<2x32xf32>
    %111 = arith.mulf %102, %60 : vector<2x32xf32>
    %112 = arith.mulf %101, %104 : vector<2x32xf32>
    %113 = arith.addf %111, %112 : vector<2x32xf32>
    %114 = math.tanh %113 : vector<2x32xf32>
    %115 = arith.mulf %110, %114 : vector<2x32xf32>
    %c1_i32_37 = arith.constant 1 : i32
    %116 = arith.addi %c1_i32_32, %c1_i32_37 : i32
    %117 = arith.index_cast %116 : i32 to index
    %c0_38 = arith.constant 0 : index
    %c0_39 = arith.constant 0 : index
    %118 = vector.load %arg1[%117, %c0_38, %c0_39] : memref<8x2x128xf32, #tpu.memory_space<vmem>>, vector<1x2x128xf32>
    %119 = vector.shape_cast %118 : vector<1x2x128xf32> to vector<2x128xf32>
    %cst_40 = arith.constant dense<0.000000e+00> : vector<2x128xf32>
    %120 = tpu.matmul %89, %0, %cst_40 {dimension_numbers = #tpu.dot_dimension_numbers<[1], [0], [0], [1], [0, 0, 1, 1], [], []>} : vector<2x32xf32>, vector<32x128xf32>, vector<2x128xf32> -> vector<2x128xf32>
    %121 = arith.addf %119, %120 : vector<2x128xf32>
    %122 = vector.extract_strided_slice %121 {offsets = [0, 0], sizes = [2, 64], strides = [1, 1]} : vector<2x128xf32> to vector<2x64xf32>
    %123 = arith.negf %122 : vector<2x64xf32>
    %124 = math.exp %123 : vector<2x64xf32>
    %cst_41 = arith.constant 1.000000e+00 : f32
    %125 = vector.broadcast %cst_41 : f32 to vector<2x64xf32>
    %126 = arith.addf %125, %124 : vector<2x64xf32>
    %127 = arith.divf %125, %126 : vector<2x64xf32>
    %128 = vector.extract_strided_slice %127 {offsets = [0, 0], sizes = [2, 32], strides = [1, 1]} : vector<2x64xf32> to vector<2x32xf32>
    %129 = vector.extract_strided_slice %127 {offsets = [0, 32], sizes = [2, 32], strides = [1, 1]} : vector<2x64xf32> to vector<2x32xf32>
    %130 = vector.extract_strided_slice %121 {offsets = [0, 64], sizes = [2, 32], strides = [1, 1]} : vector<2x128xf32> to vector<2x32xf32>
    %131 = math.tanh %130 : vector<2x32xf32>
    %132 = vector.extract_strided_slice %121 {offsets = [0, 96], sizes = [2, 32], strides = [1, 1]} : vector<2x128xf32> to vector<2x32xf32>
    %133 = arith.negf %132 : vector<2x32xf32>
    %134 = math.exp %133 : vector<2x32xf32>
    %cst_42 = arith.constant 1.000000e+00 : f32
    %135 = vector.broadcast %cst_42 : f32 to vector<2x32xf32>
    %136 = arith.addf %135, %134 : vector<2x32xf32>
    %137 = arith.divf %135, %136 : vector<2x32xf32>
    %138 = arith.mulf %129, %87 : vector<2x32xf32>
    %139 = arith.mulf %128, %131 : vector<2x32xf32>
    %140 = arith.addf %138, %139 : vector<2x32xf32>
    %141 = math.tanh %140 : vector<2x32xf32>
    %142 = arith.mulf %137, %141 : vector<2x32xf32>
    %c2_i32 = arith.constant 2 : i32
    %cst_43 = arith.constant dense<0.000000e+00> : vector<2x128xf32>
    %143 = tpu.matmul %142, %1, %cst_43 {dimension_numbers = #tpu.dot_dimension_numbers<[1], [0], [0], [1], [0, 0, 1, 1], [], []>} : vector<2x32xf32>, vector<32x128xf32>, vector<2x128xf32> -> vector<2x128xf32>
    %cst_44 = arith.constant dense<0.000000e+00> : vector<2x128xf32>
    %144 = tpu.matmul %115, %2, %cst_44 {dimension_numbers = #tpu.dot_dimension_numbers<[1], [0], [0], [1], [0, 0, 1, 1], [], []>} : vector<2x32xf32>, vector<32x128xf32>, vector<2x128xf32> -> vector<2x128xf32>
    %145 = arith.addf %143, %144 : vector<2x128xf32>
    %146 = vector.broadcast %3 : vector<1x128xf32> to vector<2x128xf32>
    %147 = arith.addf %145, %146 : vector<2x128xf32>
    %148 = vector.extract_strided_slice %147 {offsets = [0, 0], sizes = [2, 64], strides = [1, 1]} : vector<2x128xf32> to vector<2x64xf32>
    %149 = arith.negf %148 : vector<2x64xf32>
    %150 = math.exp %149 : vector<2x64xf32>
    %cst_45 = arith.constant 1.000000e+00 : f32
    %151 = vector.broadcast %cst_45 : f32 to vector<2x64xf32>
    %152 = arith.addf %151, %150 : vector<2x64xf32>
    %153 = arith.divf %151, %152 : vector<2x64xf32>
    %154 = vector.extract_strided_slice %153 {offsets = [0, 0], sizes = [2, 32], strides = [1, 1]} : vector<2x64xf32> to vector<2x32xf32>
    %155 = vector.extract_strided_slice %153 {offsets = [0, 32], sizes = [2, 32], strides = [1, 1]} : vector<2x64xf32> to vector<2x32xf32>
    %156 = vector.extract_strided_slice %147 {offsets = [0, 64], sizes = [2, 32], strides = [1, 1]} : vector<2x128xf32> to vector<2x32xf32>
    %157 = math.tanh %156 : vector<2x32xf32>
    %158 = vector.extract_strided_slice %147 {offsets = [0, 96], sizes = [2, 32], strides = [1, 1]} : vector<2x128xf32> to vector<2x32xf32>
    %159 = arith.negf %158 : vector<2x32xf32>
    %160 = math.exp %159 : vector<2x32xf32>
    %cst_46 = arith.constant 1.000000e+00 : f32
    %161 = vector.broadcast %cst_46 : f32 to vector<2x32xf32>
    %162 = arith.addf %161, %160 : vector<2x32xf32>
    %163 = arith.divf %161, %162 : vector<2x32xf32>
    %164 = arith.mulf %155, %113 : vector<2x32xf32>
    %165 = arith.mulf %154, %157 : vector<2x32xf32>
    %166 = arith.addf %164, %165 : vector<2x32xf32>
    %167 = math.tanh %166 : vector<2x32xf32>
    %168 = arith.mulf %163, %167 : vector<2x32xf32>
    %c1_i32_47 = arith.constant 1 : i32
    %169 = arith.addi %c2_i32, %c1_i32_47 : i32
    %170 = arith.index_cast %169 : i32 to index
    %c0_48 = arith.constant 0 : index
    %c0_49 = arith.constant 0 : index
    %171 = vector.load %arg1[%170, %c0_48, %c0_49] : memref<8x2x128xf32, #tpu.memory_space<vmem>>, vector<1x2x128xf32>
    %172 = vector.shape_cast %171 : vector<1x2x128xf32> to vector<2x128xf32>
    %cst_50 = arith.constant dense<0.000000e+00> : vector<2x128xf32>
    %173 = tpu.matmul %142, %0, %cst_50 {dimension_numbers = #tpu.dot_dimension_numbers<[1], [0], [0], [1], [0, 0, 1, 1], [], []>} : vector<2x32xf32>, vector<32x128xf32>, vector<2x128xf32> -> vector<2x128xf32>
    %174 = arith.addf %172, %173 : vector<2x128xf32>
    %175 = vector.extract_strided_slice %174 {offsets = [0, 0], sizes = [2, 64], strides = [1, 1]} : vector<2x128xf32> to vector<2x64xf32>
    %176 = arith.negf %175 : vector<2x64xf32>
    %177 = math.exp %176 : vector<2x64xf32>
    %cst_51 = arith.constant 1.000000e+00 : f32
    %178 = vector.broadcast %cst_51 : f32 to vector<2x64xf32>
    %179 = arith.addf %178, %177 : vector<2x64xf32>
    %180 = arith.divf %178, %179 : vector<2x64xf32>
    %181 = vector.extract_strided_slice %180 {offsets = [0, 0], sizes = [2, 32], strides = [1, 1]} : vector<2x64xf32> to vector<2x32xf32>
    %182 = vector.extract_strided_slice %180 {offsets = [0, 32], sizes = [2, 32], strides = [1, 1]} : vector<2x64xf32> to vector<2x32xf32>
    %183 = vector.extract_strided_slice %174 {offsets = [0, 64], sizes = [2, 32], strides = [1, 1]} : vector<2x128xf32> to vector<2x32xf32>
    %184 = math.tanh %183 : vector<2x32xf32>
    %185 = vector.extract_strided_slice %174 {offsets = [0, 96], sizes = [2, 32], strides = [1, 1]} : vector<2x128xf32> to vector<2x32xf32>
    %186 = arith.negf %185 : vector<2x32xf32>
    %187 = math.exp %186 : vector<2x32xf32>
    %cst_52 = arith.constant 1.000000e+00 : f32
    %188 = vector.broadcast %cst_52 : f32 to vector<2x32xf32>
    %189 = arith.addf %188, %187 : vector<2x32xf32>
    %190 = arith.divf %188, %189 : vector<2x32xf32>
    %191 = arith.mulf %182, %140 : vector<2x32xf32>
    %192 = arith.mulf %181, %184 : vector<2x32xf32>
    %193 = arith.addf %191, %192 : vector<2x32xf32>
    %194 = math.tanh %193 : vector<2x32xf32>
    %195 = arith.mulf %190, %194 : vector<2x32xf32>
    %c3_i32 = arith.constant 3 : i32
    %cst_53 = arith.constant dense<0.000000e+00> : vector<2x128xf32>
    %196 = tpu.matmul %195, %1, %cst_53 {dimension_numbers = #tpu.dot_dimension_numbers<[1], [0], [0], [1], [0, 0, 1, 1], [], []>} : vector<2x32xf32>, vector<32x128xf32>, vector<2x128xf32> -> vector<2x128xf32>
    %cst_54 = arith.constant dense<0.000000e+00> : vector<2x128xf32>
    %197 = tpu.matmul %168, %2, %cst_54 {dimension_numbers = #tpu.dot_dimension_numbers<[1], [0], [0], [1], [0, 0, 1, 1], [], []>} : vector<2x32xf32>, vector<32x128xf32>, vector<2x128xf32> -> vector<2x128xf32>
    %198 = arith.addf %196, %197 : vector<2x128xf32>
    %199 = vector.broadcast %3 : vector<1x128xf32> to vector<2x128xf32>
    %200 = arith.addf %198, %199 : vector<2x128xf32>
    %201 = vector.extract_strided_slice %200 {offsets = [0, 0], sizes = [2, 64], strides = [1, 1]} : vector<2x128xf32> to vector<2x64xf32>
    %202 = arith.negf %201 : vector<2x64xf32>
    %203 = math.exp %202 : vector<2x64xf32>
    %cst_55 = arith.constant 1.000000e+00 : f32
    %204 = vector.broadcast %cst_55 : f32 to vector<2x64xf32>
    %205 = arith.addf %204, %203 : vector<2x64xf32>
    %206 = arith.divf %204, %205 : vector<2x64xf32>
    %207 = vector.extract_strided_slice %206 {offsets = [0, 0], sizes = [2, 32], strides = [1, 1]} : vector<2x64xf32> to vector<2x32xf32>
    %208 = vector.extract_strided_slice %206 {offsets = [0, 32], sizes = [2, 32], strides = [1, 1]} : vector<2x64xf32> to vector<2x32xf32>
    %209 = vector.extract_strided_slice %200 {offsets = [0, 64], sizes = [2, 32], strides = [1, 1]} : vector<2x128xf32> to vector<2x32xf32>
    %210 = math.tanh %209 : vector<2x32xf32>
    %211 = vector.extract_strided_slice %200 {offsets = [0, 96], sizes = [2, 32], strides = [1, 1]} : vector<2x128xf32> to vector<2x32xf32>
    %212 = arith.negf %211 : vector<2x32xf32>
    %213 = math.exp %212 : vector<2x32xf32>
    %cst_56 = arith.constant 1.000000e+00 : f32
    %214 = vector.broadcast %cst_56 : f32 to vector<2x32xf32>
    %215 = arith.addf %214, %213 : vector<2x32xf32>
    %216 = arith.divf %214, %215 : vector<2x32xf32>
    %217 = arith.mulf %208, %166 : vector<2x32xf32>
    %218 = arith.mulf %207, %210 : vector<2x32xf32>
    %219 = arith.addf %217, %218 : vector<2x32xf32>
    %220 = math.tanh %219 : vector<2x32xf32>
    %221 = arith.mulf %216, %220 : vector<2x32xf32>
    %c1_i32_57 = arith.constant 1 : i32
    %222 = arith.addi %c3_i32, %c1_i32_57 : i32
    %223 = arith.index_cast %222 : i32 to index
    %c0_58 = arith.constant 0 : index
    %c0_59 = arith.constant 0 : index
    %224 = vector.load %arg1[%223, %c0_58, %c0_59] : memref<8x2x128xf32, #tpu.memory_space<vmem>>, vector<1x2x128xf32>
    %225 = vector.shape_cast %224 : vector<1x2x128xf32> to vector<2x128xf32>
    %cst_60 = arith.constant dense<0.000000e+00> : vector<2x128xf32>
    %226 = tpu.matmul %195, %0, %cst_60 {dimension_numbers = #tpu.dot_dimension_numbers<[1], [0], [0], [1], [0, 0, 1, 1], [], []>} : vector<2x32xf32>, vector<32x128xf32>, vector<2x128xf32> -> vector<2x128xf32>
    %227 = arith.addf %225, %226 : vector<2x128xf32>
    %228 = vector.extract_strided_slice %227 {offsets = [0, 0], sizes = [2, 64], strides = [1, 1]} : vector<2x128xf32> to vector<2x64xf32>
    %229 = arith.negf %228 : vector<2x64xf32>
    %230 = math.exp %229 : vector<2x64xf32>
    %cst_61 = arith.constant 1.000000e+00 : f32
    %231 = vector.broadcast %cst_61 : f32 to vector<2x64xf32>
    %232 = arith.addf %231, %230 : vector<2x64xf32>
    %233 = arith.divf %231, %232 : vector<2x64xf32>
    %234 = vector.extract_strided_slice %233 {offsets = [0, 0], sizes = [2, 32], strides = [1, 1]} : vector<2x64xf32> to vector<2x32xf32>
    %235 = vector.extract_strided_slice %233 {offsets = [0, 32], sizes = [2, 32], strides = [1, 1]} : vector<2x64xf32> to vector<2x32xf32>
    %236 = vector.extract_strided_slice %227 {offsets = [0, 64], sizes = [2, 32], strides = [1, 1]} : vector<2x128xf32> to vector<2x32xf32>
    %237 = math.tanh %236 : vector<2x32xf32>
    %238 = vector.extract_strided_slice %227 {offsets = [0, 96], sizes = [2, 32], strides = [1, 1]} : vector<2x128xf32> to vector<2x32xf32>
    %239 = arith.negf %238 : vector<2x32xf32>
    %240 = math.exp %239 : vector<2x32xf32>
    %cst_62 = arith.constant 1.000000e+00 : f32
    %241 = vector.broadcast %cst_62 : f32 to vector<2x32xf32>
    %242 = arith.addf %241, %240 : vector<2x32xf32>
    %243 = arith.divf %241, %242 : vector<2x32xf32>
    %244 = arith.mulf %235, %193 : vector<2x32xf32>
    %245 = arith.mulf %234, %237 : vector<2x32xf32>
    %246 = arith.addf %244, %245 : vector<2x32xf32>
    %247 = math.tanh %246 : vector<2x32xf32>
    %248 = arith.mulf %243, %247 : vector<2x32xf32>
    %c4_i32 = arith.constant 4 : i32
    %cst_63 = arith.constant dense<0.000000e+00> : vector<2x128xf32>
    %249 = tpu.matmul %248, %1, %cst_63 {dimension_numbers = #tpu.dot_dimension_numbers<[1], [0], [0], [1], [0, 0, 1, 1], [], []>} : vector<2x32xf32>, vector<32x128xf32>, vector<2x128xf32> -> vector<2x128xf32>
    %cst_64 = arith.constant dense<0.000000e+00> : vector<2x128xf32>
    %250 = tpu.matmul %221, %2, %cst_64 {dimension_numbers = #tpu.dot_dimension_numbers<[1], [0], [0], [1], [0, 0, 1, 1], [], []>} : vector<2x32xf32>, vector<32x128xf32>, vector<2x128xf32> -> vector<2x128xf32>
    %251 = arith.addf %249, %250 : vector<2x128xf32>
    %252 = vector.broadcast %3 : vector<1x128xf32> to vector<2x128xf32>
    %253 = arith.addf %251, %252 : vector<2x128xf32>
    %254 = vector.extract_strided_slice %253 {offsets = [0, 0], sizes = [2, 64], strides = [1, 1]} : vector<2x128xf32> to vector<2x64xf32>
    %255 = arith.negf %254 : vector<2x64xf32>
    %256 = math.exp %255 : vector<2x64xf32>
    %cst_65 = arith.constant 1.000000e+00 : f32
    %257 = vector.broadcast %cst_65 : f32 to vector<2x64xf32>
    %258 = arith.addf %257, %256 : vector<2x64xf32>
    %259 = arith.divf %257, %258 : vector<2x64xf32>
    %260 = vector.extract_strided_slice %259 {offsets = [0, 0], sizes = [2, 32], strides = [1, 1]} : vector<2x64xf32> to vector<2x32xf32>
    %261 = vector.extract_strided_slice %259 {offsets = [0, 32], sizes = [2, 32], strides = [1, 1]} : vector<2x64xf32> to vector<2x32xf32>
    %262 = vector.extract_strided_slice %253 {offsets = [0, 64], sizes = [2, 32], strides = [1, 1]} : vector<2x128xf32> to vector<2x32xf32>
    %263 = math.tanh %262 : vector<2x32xf32>
    %264 = vector.extract_strided_slice %253 {offsets = [0, 96], sizes = [2, 32], strides = [1, 1]} : vector<2x128xf32> to vector<2x32xf32>
    %265 = arith.negf %264 : vector<2x32xf32>
    %266 = math.exp %265 : vector<2x32xf32>
    %cst_66 = arith.constant 1.000000e+00 : f32
    %267 = vector.broadcast %cst_66 : f32 to vector<2x32xf32>
    %268 = arith.addf %267, %266 : vector<2x32xf32>
    %269 = arith.divf %267, %268 : vector<2x32xf32>
    %270 = arith.mulf %261, %219 : vector<2x32xf32>
    %271 = arith.mulf %260, %263 : vector<2x32xf32>
    %272 = arith.addf %270, %271 : vector<2x32xf32>
    %273 = math.tanh %272 : vector<2x32xf32>
    %274 = arith.mulf %269, %273 : vector<2x32xf32>
    %c1_i32_67 = arith.constant 1 : i32
    %275 = arith.addi %c4_i32, %c1_i32_67 : i32
    %276 = arith.index_cast %275 : i32 to index
    %c0_68 = arith.constant 0 : index
    %c0_69 = arith.constant 0 : index
    %277 = vector.load %arg1[%276, %c0_68, %c0_69] : memref<8x2x128xf32, #tpu.memory_space<vmem>>, vector<1x2x128xf32>
    %278 = vector.shape_cast %277 : vector<1x2x128xf32> to vector<2x128xf32>
    %cst_70 = arith.constant dense<0.000000e+00> : vector<2x128xf32>
    %279 = tpu.matmul %248, %0, %cst_70 {dimension_numbers = #tpu.dot_dimension_numbers<[1], [0], [0], [1], [0, 0, 1, 1], [], []>} : vector<2x32xf32>, vector<32x128xf32>, vector<2x128xf32> -> vector<2x128xf32>
    %280 = arith.addf %278, %279 : vector<2x128xf32>
    %281 = vector.extract_strided_slice %280 {offsets = [0, 0], sizes = [2, 64], strides = [1, 1]} : vector<2x128xf32> to vector<2x64xf32>
    %282 = arith.negf %281 : vector<2x64xf32>
    %283 = math.exp %282 : vector<2x64xf32>
    %cst_71 = arith.constant 1.000000e+00 : f32
    %284 = vector.broadcast %cst_71 : f32 to vector<2x64xf32>
    %285 = arith.addf %284, %283 : vector<2x64xf32>
    %286 = arith.divf %284, %285 : vector<2x64xf32>
    %287 = vector.extract_strided_slice %286 {offsets = [0, 0], sizes = [2, 32], strides = [1, 1]} : vector<2x64xf32> to vector<2x32xf32>
    %288 = vector.extract_strided_slice %286 {offsets = [0, 32], sizes = [2, 32], strides = [1, 1]} : vector<2x64xf32> to vector<2x32xf32>
    %289 = vector.extract_strided_slice %280 {offsets = [0, 64], sizes = [2, 32], strides = [1, 1]} : vector<2x128xf32> to vector<2x32xf32>
    %290 = math.tanh %289 : vector<2x32xf32>
    %291 = vector.extract_strided_slice %280 {offsets = [0, 96], sizes = [2, 32], strides = [1, 1]} : vector<2x128xf32> to vector<2x32xf32>
    %292 = arith.negf %291 : vector<2x32xf32>
    %293 = math.exp %292 : vector<2x32xf32>
    %cst_72 = arith.constant 1.000000e+00 : f32
    %294 = vector.broadcast %cst_72 : f32 to vector<2x32xf32>
    %295 = arith.addf %294, %293 : vector<2x32xf32>
    %296 = arith.divf %294, %295 : vector<2x32xf32>
    %297 = arith.mulf %288, %246 : vector<2x32xf32>
    %298 = arith.mulf %287, %290 : vector<2x32xf32>
    %299 = arith.addf %297, %298 : vector<2x32xf32>
    %300 = math.tanh %299 : vector<2x32xf32>
    %301 = arith.mulf %296, %300 : vector<2x32xf32>
    %c5_i32 = arith.constant 5 : i32
    %cst_73 = arith.constant dense<0.000000e+00> : vector<2x128xf32>
    %302 = tpu.matmul %301, %1, %cst_73 {dimension_numbers = #tpu.dot_dimension_numbers<[1], [0], [0], [1], [0, 0, 1, 1], [], []>} : vector<2x32xf32>, vector<32x128xf32>, vector<2x128xf32> -> vector<2x128xf32>
    %cst_74 = arith.constant dense<0.000000e+00> : vector<2x128xf32>
    %303 = tpu.matmul %274, %2, %cst_74 {dimension_numbers = #tpu.dot_dimension_numbers<[1], [0], [0], [1], [0, 0, 1, 1], [], []>} : vector<2x32xf32>, vector<32x128xf32>, vector<2x128xf32> -> vector<2x128xf32>
    %304 = arith.addf %302, %303 : vector<2x128xf32>
    %305 = vector.broadcast %3 : vector<1x128xf32> to vector<2x128xf32>
    %306 = arith.addf %304, %305 : vector<2x128xf32>
    %307 = vector.extract_strided_slice %306 {offsets = [0, 0], sizes = [2, 64], strides = [1, 1]} : vector<2x128xf32> to vector<2x64xf32>
    %308 = arith.negf %307 : vector<2x64xf32>
    %309 = math.exp %308 : vector<2x64xf32>
    %cst_75 = arith.constant 1.000000e+00 : f32
    %310 = vector.broadcast %cst_75 : f32 to vector<2x64xf32>
    %311 = arith.addf %310, %309 : vector<2x64xf32>
    %312 = arith.divf %310, %311 : vector<2x64xf32>
    %313 = vector.extract_strided_slice %312 {offsets = [0, 0], sizes = [2, 32], strides = [1, 1]} : vector<2x64xf32> to vector<2x32xf32>
    %314 = vector.extract_strided_slice %312 {offsets = [0, 32], sizes = [2, 32], strides = [1, 1]} : vector<2x64xf32> to vector<2x32xf32>
    %315 = vector.extract_strided_slice %306 {offsets = [0, 64], sizes = [2, 32], strides = [1, 1]} : vector<2x128xf32> to vector<2x32xf32>
    %316 = math.tanh %315 : vector<2x32xf32>
    %317 = vector.extract_strided_slice %306 {offsets = [0, 96], sizes = [2, 32], strides = [1, 1]} : vector<2x128xf32> to vector<2x32xf32>
    %318 = arith.negf %317 : vector<2x32xf32>
    %319 = math.exp %318 : vector<2x32xf32>
    %cst_76 = arith.constant 1.000000e+00 : f32
    %320 = vector.broadcast %cst_76 : f32 to vector<2x32xf32>
    %321 = arith.addf %320, %319 : vector<2x32xf32>
    %322 = arith.divf %320, %321 : vector<2x32xf32>
    %323 = arith.mulf %314, %272 : vector<2x32xf32>
    %324 = arith.mulf %313, %316 : vector<2x32xf32>
    %325 = arith.addf %323, %324 : vector<2x32xf32>
    %326 = math.tanh %325 : vector<2x32xf32>
    %327 = arith.mulf %322, %326 : vector<2x32xf32>
    %c1_i32_77 = arith.constant 1 : i32
    %328 = arith.addi %c5_i32, %c1_i32_77 : i32
    %329 = arith.index_cast %328 : i32 to index
    %c0_78 = arith.constant 0 : index
    %c0_79 = arith.constant 0 : index
    %330 = vector.load %arg1[%329, %c0_78, %c0_79] : memref<8x2x128xf32, #tpu.memory_space<vmem>>, vector<1x2x128xf32>
    %331 = vector.shape_cast %330 : vector<1x2x128xf32> to vector<2x128xf32>
    %cst_80 = arith.constant dense<0.000000e+00> : vector<2x128xf32>
    %332 = tpu.matmul %301, %0, %cst_80 {dimension_numbers = #tpu.dot_dimension_numbers<[1], [0], [0], [1], [0, 0, 1, 1], [], []>} : vector<2x32xf32>, vector<32x128xf32>, vector<2x128xf32> -> vector<2x128xf32>
    %333 = arith.addf %331, %332 : vector<2x128xf32>
    %334 = vector.extract_strided_slice %333 {offsets = [0, 0], sizes = [2, 64], strides = [1, 1]} : vector<2x128xf32> to vector<2x64xf32>
    %335 = arith.negf %334 : vector<2x64xf32>
    %336 = math.exp %335 : vector<2x64xf32>
    %cst_81 = arith.constant 1.000000e+00 : f32
    %337 = vector.broadcast %cst_81 : f32 to vector<2x64xf32>
    %338 = arith.addf %337, %336 : vector<2x64xf32>
    %339 = arith.divf %337, %338 : vector<2x64xf32>
    %340 = vector.extract_strided_slice %339 {offsets = [0, 0], sizes = [2, 32], strides = [1, 1]} : vector<2x64xf32> to vector<2x32xf32>
    %341 = vector.extract_strided_slice %339 {offsets = [0, 32], sizes = [2, 32], strides = [1, 1]} : vector<2x64xf32> to vector<2x32xf32>
    %342 = vector.extract_strided_slice %333 {offsets = [0, 64], sizes = [2, 32], strides = [1, 1]} : vector<2x128xf32> to vector<2x32xf32>
    %343 = math.tanh %342 : vector<2x32xf32>
    %344 = vector.extract_strided_slice %333 {offsets = [0, 96], sizes = [2, 32], strides = [1, 1]} : vector<2x128xf32> to vector<2x32xf32>
    %345 = arith.negf %344 : vector<2x32xf32>
    %346 = math.exp %345 : vector<2x32xf32>
    %cst_82 = arith.constant 1.000000e+00 : f32
    %347 = vector.broadcast %cst_82 : f32 to vector<2x32xf32>
    %348 = arith.addf %347, %346 : vector<2x32xf32>
    %349 = arith.divf %347, %348 : vector<2x32xf32>
    %350 = arith.mulf %341, %299 : vector<2x32xf32>
    %351 = arith.mulf %340, %343 : vector<2x32xf32>
    %352 = arith.addf %350, %351 : vector<2x32xf32>
    %353 = math.tanh %352 : vector<2x32xf32>
    %354 = arith.mulf %349, %353 : vector<2x32xf32>
    %c6_i32 = arith.constant 6 : i32
    %cst_83 = arith.constant dense<0.000000e+00> : vector<2x128xf32>
    %355 = tpu.matmul %354, %1, %cst_83 {dimension_numbers = #tpu.dot_dimension_numbers<[1], [0], [0], [1], [0, 0, 1, 1], [], []>} : vector<2x32xf32>, vector<32x128xf32>, vector<2x128xf32> -> vector<2x128xf32>
    %cst_84 = arith.constant dense<0.000000e+00> : vector<2x128xf32>
    %356 = tpu.matmul %327, %2, %cst_84 {dimension_numbers = #tpu.dot_dimension_numbers<[1], [0], [0], [1], [0, 0, 1, 1], [], []>} : vector<2x32xf32>, vector<32x128xf32>, vector<2x128xf32> -> vector<2x128xf32>
    %357 = arith.addf %355, %356 : vector<2x128xf32>
    %358 = vector.broadcast %3 : vector<1x128xf32> to vector<2x128xf32>
    %359 = arith.addf %357, %358 : vector<2x128xf32>
    %360 = vector.extract_strided_slice %359 {offsets = [0, 0], sizes = [2, 64], strides = [1, 1]} : vector<2x128xf32> to vector<2x64xf32>
    %361 = arith.negf %360 : vector<2x64xf32>
    %362 = math.exp %361 : vector<2x64xf32>
    %cst_85 = arith.constant 1.000000e+00 : f32
    %363 = vector.broadcast %cst_85 : f32 to vector<2x64xf32>
    %364 = arith.addf %363, %362 : vector<2x64xf32>
    %365 = arith.divf %363, %364 : vector<2x64xf32>
    %366 = vector.extract_strided_slice %365 {offsets = [0, 0], sizes = [2, 32], strides = [1, 1]} : vector<2x64xf32> to vector<2x32xf32>
    %367 = vector.extract_strided_slice %365 {offsets = [0, 32], sizes = [2, 32], strides = [1, 1]} : vector<2x64xf32> to vector<2x32xf32>
    %368 = vector.extract_strided_slice %359 {offsets = [0, 64], sizes = [2, 32], strides = [1, 1]} : vector<2x128xf32> to vector<2x32xf32>
    %369 = math.tanh %368 : vector<2x32xf32>
    %370 = vector.extract_strided_slice %359 {offsets = [0, 96], sizes = [2, 32], strides = [1, 1]} : vector<2x128xf32> to vector<2x32xf32>
    %371 = arith.negf %370 : vector<2x32xf32>
    %372 = math.exp %371 : vector<2x32xf32>
    %cst_86 = arith.constant 1.000000e+00 : f32
    %373 = vector.broadcast %cst_86 : f32 to vector<2x32xf32>
    %374 = arith.addf %373, %372 : vector<2x32xf32>
    %375 = arith.divf %373, %374 : vector<2x32xf32>
    %376 = arith.mulf %367, %325 : vector<2x32xf32>
    %377 = arith.mulf %366, %369 : vector<2x32xf32>
    %378 = arith.addf %376, %377 : vector<2x32xf32>
    %379 = math.tanh %378 : vector<2x32xf32>
    %380 = arith.mulf %375, %379 : vector<2x32xf32>
    %c1_i32_87 = arith.constant 1 : i32
    %381 = arith.addi %c6_i32, %c1_i32_87 : i32
    %382 = arith.index_cast %381 : i32 to index
    %c0_88 = arith.constant 0 : index
    %c0_89 = arith.constant 0 : index
    %383 = vector.load %arg1[%382, %c0_88, %c0_89] : memref<8x2x128xf32, #tpu.memory_space<vmem>>, vector<1x2x128xf32>
    %384 = vector.shape_cast %383 : vector<1x2x128xf32> to vector<2x128xf32>
    %cst_90 = arith.constant dense<0.000000e+00> : vector<2x128xf32>
    %385 = tpu.matmul %354, %0, %cst_90 {dimension_numbers = #tpu.dot_dimension_numbers<[1], [0], [0], [1], [0, 0, 1, 1], [], []>} : vector<2x32xf32>, vector<32x128xf32>, vector<2x128xf32> -> vector<2x128xf32>
    %386 = arith.addf %384, %385 : vector<2x128xf32>
    %387 = vector.extract_strided_slice %386 {offsets = [0, 0], sizes = [2, 64], strides = [1, 1]} : vector<2x128xf32> to vector<2x64xf32>
    %388 = arith.negf %387 : vector<2x64xf32>
    %389 = math.exp %388 : vector<2x64xf32>
    %cst_91 = arith.constant 1.000000e+00 : f32
    %390 = vector.broadcast %cst_91 : f32 to vector<2x64xf32>
    %391 = arith.addf %390, %389 : vector<2x64xf32>
    %392 = arith.divf %390, %391 : vector<2x64xf32>
    %393 = vector.extract_strided_slice %392 {offsets = [0, 0], sizes = [2, 32], strides = [1, 1]} : vector<2x64xf32> to vector<2x32xf32>
    %394 = vector.extract_strided_slice %392 {offsets = [0, 32], sizes = [2, 32], strides = [1, 1]} : vector<2x64xf32> to vector<2x32xf32>
    %395 = vector.extract_strided_slice %386 {offsets = [0, 64], sizes = [2, 32], strides = [1, 1]} : vector<2x128xf32> to vector<2x32xf32>
    %396 = math.tanh %395 : vector<2x32xf32>
    %397 = vector.extract_strided_slice %386 {offsets = [0, 96], sizes = [2, 32], strides = [1, 1]} : vector<2x128xf32> to vector<2x32xf32>
    %398 = arith.negf %397 : vector<2x32xf32>
    %399 = math.exp %398 : vector<2x32xf32>
    %cst_92 = arith.constant 1.000000e+00 : f32
    %400 = vector.broadcast %cst_92 : f32 to vector<2x32xf32>
    %401 = arith.addf %400, %399 : vector<2x32xf32>
    %402 = arith.divf %400, %401 : vector<2x32xf32>
    %403 = arith.mulf %394, %352 : vector<2x32xf32>
    %404 = arith.mulf %393, %396 : vector<2x32xf32>
    %405 = arith.addf %403, %404 : vector<2x32xf32>
    %406 = math.tanh %405 : vector<2x32xf32>
    %407 = arith.mulf %402, %406 : vector<2x32xf32>
    %c7_i32 = arith.constant 7 : i32
    %cst_93 = arith.constant dense<0.000000e+00> : vector<2x128xf32>
    %408 = tpu.matmul %407, %1, %cst_93 {dimension_numbers = #tpu.dot_dimension_numbers<[1], [0], [0], [1], [0, 0, 1, 1], [], []>} : vector<2x32xf32>, vector<32x128xf32>, vector<2x128xf32> -> vector<2x128xf32>
    %cst_94 = arith.constant dense<0.000000e+00> : vector<2x128xf32>
    %409 = tpu.matmul %380, %2, %cst_94 {dimension_numbers = #tpu.dot_dimension_numbers<[1], [0], [0], [1], [0, 0, 1, 1], [], []>} : vector<2x32xf32>, vector<32x128xf32>, vector<2x128xf32> -> vector<2x128xf32>
    %410 = arith.addf %408, %409 : vector<2x128xf32>
    %411 = vector.broadcast %3 : vector<1x128xf32> to vector<2x128xf32>
    %412 = arith.addf %410, %411 : vector<2x128xf32>
    %413 = vector.extract_strided_slice %412 {offsets = [0, 0], sizes = [2, 64], strides = [1, 1]} : vector<2x128xf32> to vector<2x64xf32>
    %414 = arith.negf %413 : vector<2x64xf32>
    %415 = math.exp %414 : vector<2x64xf32>
    %cst_95 = arith.constant 1.000000e+00 : f32
    %416 = vector.broadcast %cst_95 : f32 to vector<2x64xf32>
    %417 = arith.addf %416, %415 : vector<2x64xf32>
    %418 = arith.divf %416, %417 : vector<2x64xf32>
    %419 = vector.extract_strided_slice %418 {offsets = [0, 0], sizes = [2, 32], strides = [1, 1]} : vector<2x64xf32> to vector<2x32xf32>
    %420 = vector.extract_strided_slice %418 {offsets = [0, 32], sizes = [2, 32], strides = [1, 1]} : vector<2x64xf32> to vector<2x32xf32>
    %421 = vector.extract_strided_slice %412 {offsets = [0, 64], sizes = [2, 32], strides = [1, 1]} : vector<2x128xf32> to vector<2x32xf32>
    %422 = math.tanh %421 : vector<2x32xf32>
    %423 = vector.extract_strided_slice %412 {offsets = [0, 96], sizes = [2, 32], strides = [1, 1]} : vector<2x128xf32> to vector<2x32xf32>
    %424 = arith.negf %423 : vector<2x32xf32>
    %425 = math.exp %424 : vector<2x32xf32>
    %cst_96 = arith.constant 1.000000e+00 : f32
    %426 = vector.broadcast %cst_96 : f32 to vector<2x32xf32>
    %427 = arith.addf %426, %425 : vector<2x32xf32>
    %428 = arith.divf %426, %427 : vector<2x32xf32>
    %429 = arith.mulf %420, %378 : vector<2x32xf32>
    %430 = arith.mulf %419, %422 : vector<2x32xf32>
    %431 = arith.addf %429, %430 : vector<2x32xf32>
    %432 = math.tanh %431 : vector<2x32xf32>
    %433 = arith.mulf %428, %432 : vector<2x32xf32>
    %c0_97 = arith.constant 0 : index
    %c0_98 = arith.constant 0 : index
    %c0_99 = arith.constant 0 : index
    %434 = vector.load %arg11[%c0_97, %c0_98, %c0_99] : memref<2x2x32xf32, #tpu.memory_space<vmem>>, vector<1x2x32xf32>
    %435 = vector.shape_cast %434 : vector<1x2x32xf32> to vector<2x32xf32>
    %436 = vector.shape_cast %407 : vector<2x32xf32> to vector<1x2x32xf32>
    tpu.vector_store %arg11[%c0_97, %c0_98, %c0_99], %436 {strides = array<i32>} : memref<2x2x32xf32, #tpu.memory_space<vmem>>, vector<1x2x32xf32>,
    %c1_100 = arith.constant 1 : index
    %c0_101 = arith.constant 0 : index
    %c0_102 = arith.constant 0 : index
    %437 = vector.load %arg11[%c1_100, %c0_101, %c0_102] : memref<2x2x32xf32, #tpu.memory_space<vmem>>, vector<1x2x32xf32>
    %438 = vector.shape_cast %437 : vector<1x2x32xf32> to vector<2x32xf32>
    %439 = vector.shape_cast %433 : vector<2x32xf32> to vector<1x2x32xf32>
    tpu.vector_store %arg11[%c1_100, %c0_101, %c0_102], %439 {strides = array<i32>} : memref<2x2x32xf32, #tpu.memory_space<vmem>>, vector<1x2x32xf32>,
    %c0_103 = arith.constant 0 : index
    %c0_104 = arith.constant 0 : index
    %c0_105 = arith.constant 0 : index
    %440 = vector.load %arg12[%c0_103, %c0_104, %c0_105] : memref<2x2x32xf32, #tpu.memory_space<vmem>>, vector<1x2x32xf32>
    %441 = vector.shape_cast %440 : vector<1x2x32xf32> to vector<2x32xf32>
    %442 = vector.shape_cast %405 : vector<2x32xf32> to vector<1x2x32xf32>
    tpu.vector_store %arg12[%c0_103, %c0_104, %c0_105], %442 {strides = array<i32>} : memref<2x2x32xf32, #tpu.memory_space<vmem>>, vector<1x2x32xf32>,
    %c1_106 = arith.constant 1 : index
    %c0_107 = arith.constant 0 : index
    %c0_108 = arith.constant 0 : index
    %443 = vector.load %arg12[%c1_106, %c0_107, %c0_108] : memref<2x2x32xf32, #tpu.memory_space<vmem>>, vector<1x2x32xf32>
    %444 = vector.shape_cast %443 : vector<1x2x32xf32> to vector<2x32xf32>
    %445 = vector.shape_cast %431 : vector<2x32xf32> to vector<1x2x32xf32>
    tpu.vector_store %arg12[%c1_106, %c0_107, %c0_108], %445 {strides = array<i32>} : memref<2x2x32xf32, #tpu.memory_space<vmem>>, vector<1x2x32xf32>,
    %c0_109 = arith.constant 0 : index
    %c0_110 = arith.constant 0 : index
    %446 = vector.load %arg8[%c0_109, %c0_110] : memref<32x1xf32, #tpu.memory_space<vmem>>, vector<32x1xf32>
    %cst_111 = arith.constant dense<0.000000e+00> : vector<2x1xf32>
    %447 = tpu.matmul %433, %446, %cst_111 {dimension_numbers = #tpu.dot_dimension_numbers<[1], [0], [0], [1], [0, 0, 1, 1], [], []>} : vector<2x32xf32>, vector<32x1xf32>, vector<2x1xf32> -> vector<2x1xf32>
    %c0_112 = arith.constant 0 : index
    %c0_113 = arith.constant 0 : index
    %448 = vector.load %arg9[%c0_112, %c0_113] : memref<1x1xf32, #tpu.memory_space<vmem>>, vector<1x1xf32>
    %449 = vector.broadcast %448 : vector<1x1xf32> to vector<2x1xf32>
    %450 = arith.addf %447, %449 : vector<2x1xf32>
    %451 = arith.negf %450 : vector<2x1xf32>
    %452 = math.exp %451 : vector<2x1xf32>
    %cst_114 = arith.constant 1.000000e+00 : f32
    %453 = vector.broadcast %cst_114 : f32 to vector<2x1xf32>
    %454 = arith.addf %453, %452 : vector<2x1xf32>
    %455 = arith.divf %453, %454 : vector<2x1xf32>
    %456 = vector.shape_cast %455 : vector<2x1xf32> to vector<2x1xf32>
    %457 = vector.broadcast %456 : vector<2x1xf32> to vector<2x128xf32>
    %c0_115 = arith.constant 0 : index
    %c0_116 = arith.constant 0 : index
    %458 = vector.load %arg10[%c0_115, %c0_116] : memref<2x128xf32, #tpu.memory_space<vmem>>, vector<2x128xf32>
    tpu.vector_store %arg10[%c0_115, %c0_116], %457 {strides = array<i32>} : memref<2x128xf32, #tpu.memory_space<vmem>>, vector<2x128xf32>,
    return
  }
  func.func @transform_0(%arg0: i32) -> (i32, i32, i32) {
    %c0_i32 = arith.constant 0 : i32
    %c0_i32_0 = arith.constant 0 : i32
    %c0_i32_1 = arith.constant 0 : i32
    %c0_i32_2 = arith.constant 0 : i32
    return %c0_i32, %c0_i32_0, %c0_i32_1 : i32, i32, i32
  }
  func.func @transform_1(%arg0: i32) -> (i32, i32, i32) {
    %c0_i32 = arith.constant 0 : i32
    %c0_i32_0 = arith.constant 0 : i32
    %c0_i32_1 = arith.constant 0 : i32
    %c0_i32_2 = arith.constant 0 : i32
    return %c0_i32, %c0_i32_0, %c0_i32_1 : i32, i32, i32
  }
  func.func @transform_2(%arg0: i32) -> (i32, i32, i32) {
    %c0_i32 = arith.constant 0 : i32
    %c0_i32_0 = arith.constant 0 : i32
    %c0_i32_1 = arith.constant 0 : i32
    %c0_i32_2 = arith.constant 0 : i32
    return %c0_i32, %c0_i32_0, %c0_i32_1 : i32, i32, i32
  }
  func.func @transform_3(%arg0: i32) -> (i32, i32) {
    %c0_i32 = arith.constant 0 : i32
    %c0_i32_0 = arith.constant 0 : i32
    %c0_i32_1 = arith.constant 0 : i32
    return %c0_i32, %c0_i32_0 : i32, i32
  }
  func.func @transform_4(%arg0: i32) -> (i32, i32) {
    %c0_i32 = arith.constant 0 : i32
    %c0_i32_0 = arith.constant 0 : i32
    %c0_i32_1 = arith.constant 0 : i32
    return %c0_i32, %c0_i32_0 : i32, i32
  }
  func.func @transform_5(%arg0: i32) -> (i32, i32) {
    %c0_i32 = arith.constant 0 : i32
    %c0_i32_0 = arith.constant 0 : i32
    %c0_i32_1 = arith.constant 0 : i32
    return %c0_i32, %c0_i32_0 : i32, i32
  }
  func.func @transform_6(%arg0: i32) -> (i32, i32) {
    %c0_i32 = arith.constant 0 : i32
    %c0_i32_0 = arith.constant 0 : i32
    %c0_i32_1 = arith.constant 0 : i32
    return %c0_i32, %c0_i32_0 : i32, i32
  }
  func.func @transform_7(%arg0: i32) -> (i32, i32) {
    %c0_i32 = arith.constant 0 : i32
    %c0_i32_0 = arith.constant 0 : i32
    %c0_i32_1 = arith.constant 0 : i32
    return %c0_i32, %c0_i32_0 : i32, i32
  }
  func.func @transform_8(%arg0: i32) -> (i32, i32) {
    %c0_i32 = arith.constant 0 : i32
    %c0_i32_0 = arith.constant 0 : i32
    %c0_i32_1 = arith.constant 0 : i32
    return %c0_i32, %c0_i32_0 : i32, i32
  }
  func.func @transform_9(%arg0: i32) -> (i32, i32) {
    %c0_i32 = arith.constant 0 : i32
    %c0_i32_0 = arith.constant 0 : i32
    %c0_i32_1 = arith.constant 0 : i32
    return %c0_i32, %c0_i32_0 : i32, i32
  }
  func.func @transform_10(%arg0: i32) -> (i32, i32, i32) {
    %c0_i32 = arith.constant 0 : i32
    %c0_i32_0 = arith.constant 0 : i32
    %c0_i32_1 = arith.constant 0 : i32
    %c0_i32_2 = arith.constant 0 : i32
    return %c0_i32, %c0_i32_0, %c0_i32_1 : i32, i32, i32
  }
  func.func @transform_11(%arg0: i32) -> (i32, i32, i32) {
    %c0_i32 = arith.constant 0 : i32
    %c0_i32_0 = arith.constant 0 : i32
    %c0_i32_1 = arith.constant 0 : i32
    %c0_i32_2 = arith.constant 0 : i32
    return %c0_i32, %c0_i32_0, %c0_i32_1 : i32, i32, i32
  }
}

</mosaic_0001>

<llo_original>
// kernel: tpu_custom_call.1
$region0: #{tpu_custom_call.1}
  #allocation0 [shape = 'u32[]', space=smem, size = 0x4, offset = 0x4, fixed_abs, tag = 'smem constant byte address 0x4 - core index']
  #allocation1 [shape = 'u32[144,128]{1,0:T(1,128)}', space=vmem, size = 0x12000, scoped, tag = 'internal scratch']
  #allocation2 [shape = 'f32[1,1]{1,0:T(1,128)S(1)}', space=vmem, size = 0x200, scoped, tag = 'scoped memory for tpu_custom_call.1']
  %s0 = inlined_call_operand.hbm [shape: f32[8,2,128], index: 0, kind: input, shape index: {}]
  %s1 = inlined_call_operand.vmem [shape: f32[2,2,32], index: 1, kind: input, shape index: {}]
  %s2 = inlined_call_operand.vmem [shape: f32[2,2,32], index: 2, kind: input, shape index: {}]
  %s3 = inlined_call_operand.vmem [shape: f32[32,128], index: 3, kind: input, shape index: {}]
  %s4 = inlined_call_operand.hbm [shape: f32[32,128], index: 4, kind: input, shape index: {}]
  %s5 = inlined_call_operand.hbm [shape: f32[32,128], index: 5, kind: input, shape index: {}]
  %s6 = inlined_call_operand.vmem [shape: f32[1,128], index: 6, kind: input, shape index: {}]
  %s7 = inlined_call_operand.vmem [shape: f32[32,1], index: 7, kind: input, shape index: {}]
  %s8 = inlined_call_operand.<no memory space> [shape: f32[1,1], index: 8, kind: input, shape index: {}]
  %s9 = inlined_call_operand.hbm [shape: f32[2,128], index: 9, kind: output, shape index: {0}]
  %s10 = inlined_call_operand.hbm [shape: f32[2,2,32], index: 10, kind: output, shape index: {1}]
  %s11 = inlined_call_operand.hbm [shape: f32[2,2,32], index: 11, kind: output, shape index: {2}]
  %12 = xla_tuple %s9, %s10, %s11
  %s13 = sld [smem:[#allocation0]]
  $region74: #{tpu_custom_call.1} parent=0
    _
  %s15 = ssub.s32 1, %s13
  %s16 = scalar_select 0, %s15, %s13
  %v17 = vstv %s8
  %18 = vst [vmem:[#allocation2] sm:$0x1] %v17
  $region1: #{tpu_custom_call.1} parent=0
    #allocation3 [shape = 'u8[8192]{0}', space=vmem, size = 0x2000, scoped, tag = 'input window, operand 0, single buffered']
    #allocation4 [shape = 's32[1]{0}', space=sflag, size = 0x4, scoped, tag = 'scoped memory for tpu_custom_call.1']
    #allocation5 [shape = 's32[1]{0}', space=sflag, size = 0x4, scoped, tag = 'scoped memory for tpu_custom_call.1']
    #allocation6 [shape = 'u8[16384]{0}', space=vmem, size = 0x4000, scoped, tag = 'input window, operand 4, single buffered']
    #allocation7 [shape = 's32[1]{0}', space=sflag, size = 0x4, scoped, tag = 'scoped memory for tpu_custom_call.1']
    #allocation8 [shape = 'u8[16384]{0}', space=vmem, size = 0x4000, scoped, tag = 'input window, operand 5, single buffered']
    #allocation9 [shape = 'u8[1024]{0}', space=vmem, size = 0x400, scoped, tag = 'output window, operand 0, single buffered']
    #allocation10 [shape = 'u8[2048]{0}', space=vmem, size = 0x800, scoped, tag = 'output window, operand 1, single buffered']
    #allocation11 [shape = 's32[1]{0}', space=sflag, size = 0x4, scoped, tag = 'scoped memory for tpu_custom_call.1']
    #allocation12 [shape = 'u8[2048]{0}', space=vmem, size = 0x800, scoped, tag = 'output window, operand 2, single buffered']
    %19 = vsyncpa [#allocation4], 0
    %20 = vsyncpa [#allocation7], 0
    %21 = vsyncpa [#allocation5], 0
    %22 = vsyncpa [#allocation11], 0
    // Predicated region
    $region2: #{tpu_custom_call.1} parent=1 // pred_check
      _
    $region3: #{tpu_custom_call.1} parent=1 // pred_check_branch
      %24 = sbr.rel (0) target = $region5
    $region4: #{tpu_custom_call.1} parent=1 // pred_region
      %s26 = ssub.s32 256, 256
      %27 = vsyncadd [#allocation4], %s26
      %s28 = sshll.u32 [#allocation3], 4
      %s29 = int_to_ptr.vmem [resolvable:$true] %s28
      %34 = dma.hbm_to_vmem [thread:$0]  %s0, 256, %s29, [#allocation4], 32, 32, 2
    $region5: #{tpu_custom_call.1} parent=1 // pred_fallthru
      _
    // Predicated region
    $region6: #{tpu_custom_call.1} parent=1 // pred_check
      _
    $region7: #{tpu_custom_call.1} parent=1 // pred_check_branch
      %36 = sbr.rel (0) target = $region9
    $region8: #{tpu_custom_call.1} parent=1 // pred_region
      _
    $region9: #{tpu_custom_call.1} parent=1 // pred_fallthru
      _
    // Predicated region
    $region10: #{tpu_custom_call.1} parent=1 // pred_check
      _
    $region11: #{tpu_custom_call.1} parent=1 // pred_check_branch
      %38 = sbr.rel (0) target = $region13
    $region12: #{tpu_custom_call.1} parent=1 // pred_region
      _
    $region13: #{tpu_custom_call.1} parent=1 // pred_fallthru
      _
    // Predicated region
    $region14: #{tpu_custom_call.1} parent=1 // pred_check
      _
    $region15: #{tpu_custom_call.1} parent=1 // pred_check_branch
      %40 = sbr.rel (0) target = $region17
    $region16: #{tpu_custom_call.1} parent=1 // pred_region
      _
    $region17: #{tpu_custom_call.1} parent=1 // pred_fallthru
      _
    // Predicated region
    $region18: #{tpu_custom_call.1} parent=1 // pred_check
      _
    $region19: #{tpu_custom_call.1} parent=1 // pred_check_branch
      %42 = sbr.rel (0) target = $region21
    $region20: #{tpu_custom_call.1} parent=1 // pred_region
      %s44 = ssub.s32 512, 512
      %45 = vsyncadd [#allocation7], %s44
      %s46 = sshll.u32 [#allocation6], 4
      %s47 = int_to_ptr.vmem [resolvable:$true] %s46
      %52 = dma.hbm_to_vmem [thread:$0]  %s4, 512, %s47, [#allocation7], 128, 128, 8
    $region21: #{tpu_custom_call.1} parent=1 // pred_fallthru
      _
    // Predicated region
    $region22: #{tpu_custom_call.1} parent=1 // pred_check
      _
    $region23: #{tpu_custom_call.1} parent=1 // pred_check_branch
      %54 = sbr.rel (0) target = $region25
    $region24: #{tpu_custom_call.1} parent=1 // pred_region
      %s56 = ssub.s32 512, 512
      %57 = vsyncadd [#allocation7], %s56
      %s58 = sshll.u32 [#allocation8], 4
      %s59 = int_to_ptr.vmem [resolvable:$true] %s58
      %64 = dma.hbm_to_vmem [thread:$0]  %s5, 512, %s59, [#allocation7], 128, 128, 8
    $region25: #{tpu_custom_call.1} parent=1 // pred_fallthru
      _
    // Predicated region
    $region26: #{tpu_custom_call.1} parent=1 // pred_check
      _
    $region27: #{tpu_custom_call.1} parent=1 // pred_check_branch
      %66 = sbr.rel (0) target = $region29
    $region28: #{tpu_custom_call.1} parent=1 // pred_region
      _
    $region29: #{tpu_custom_call.1} parent=1 // pred_fallthru
      _
    // Predicated region
    $region30: #{tpu_custom_call.1} parent=1 // pred_check
      _
    $region31: #{tpu_custom_call.1} parent=1 // pred_check_branch
      %68 = sbr.rel (0) target = $region33
    $region32: #{tpu_custom_call.1} parent=1 // pred_region
      _
    $region33: #{tpu_custom_call.1} parent=1 // pred_fallthru
      _
    // Predicated region
    $region34: #{tpu_custom_call.1} parent=1 // pred_check
      _
    $region35: #{tpu_custom_call.1} parent=1 // pred_check_branch
      %70 = sbr.rel (0) target = $region37
    $region36: #{tpu_custom_call.1} parent=1 // pred_region
      _
    $region37: #{tpu_custom_call.1} parent=1 // pred_fallthru
      _
    // Predicated region
    $region38: #{tpu_custom_call.1} parent=1 // pred_check
      _
    $region39: #{tpu_custom_call.1} parent=1 // pred_check_branch
      %72 = sbr.rel (0) target = $region41
    $region40: #{tpu_custom_call.1} parent=1 // pred_region
      %73 = dma.done [#allocation4], 256
    $region41: #{tpu_custom_call.1} parent=1 // pred_fallthru
      _
    // Predicated region
    $region42: #{tpu_custom_call.1} parent=1 // pred_check
      _
    $region43: #{tpu_custom_call.1} parent=1 // pred_check_branch
      %75 = sbr.rel (0) target = $region45
    $region44: #{tpu_custom_call.1} parent=1 // pred_region
      %76 = dma.done [#allocation7], 512
    $region45: #{tpu_custom_call.1} parent=1 // pred_fallthru
      _
    // Predicated region
    $region46: #{tpu_custom_call.1} parent=1 // pred_check
      _
    $region47: #{tpu_custom_call.1} parent=1 // pred_check_branch
      %78 = sbr.rel (0) target = $region49
    $region48: #{tpu_custom_call.1} parent=1 // pred_region
      %79 = dma.done [#allocation7], 512
    $region49: #{tpu_custom_call.1} parent=1 // pred_fallthru
      _
    %v80 = vld [vmem:[%s3] sm:$0xff]
    %v81 = vld [vmem:[%s3 + $0x8] sm:$0xff]
    %v82 = vld [vmem:[%s3 + $0x10] sm:$0xff]
    %v83 = vld [vmem:[%s3 + $0x18] sm:$0xff]
    %v84 = vld [vmem:[#allocation6] sm:$0xff]
    %v85 = vld [vmem:[#allocation6 + $0x8] sm:$0xff]
    %v86 = vld [vmem:[#allocation6 + $0x10] sm:$0xff]
    %v87 = vld [vmem:[#allocation6 + $0x18] sm:$0xff]
    %v88 = vld [vmem:[#allocation8] sm:$0xff]
    %v89 = vld [vmem:[#allocation8 + $0x8] sm:$0xff]
    %v90 = vld [vmem:[#allocation8 + $0x10] sm:$0xff]
    %v91 = vld [vmem:[#allocation8 + $0x18] sm:$0xff]
    %v92 = vld [vmem:[%s6] sm:$0x1]
    %v93 = vld [vmem:[%s1] sm:$0x3]
    %v94 = vld [vmem:[%s2] sm:$0x3]
    %v95 = vld [vmem:[#allocation3] sm:$0x3]
    %vm96 = vcmask 261120
    %v98 = vsel %vm96, %v93, 0
    %100 = vmatprep.subr.mxu0 0.0
    %101 = vmatpush1.msra.mxu0 0.0
    %102 = vmatprep.subr.mxu0 0.0
    %103 = vmatpush1.msra.mxu0 0.0
    %104 = vmatprep.subr.mxu0 0.0
    %105 = vmatpush1.msra.mxu0 0.0
    %106 = vmatprep.subr.mxu0 0.0
    %107 = vmatpush1.msra.mxu0 0.0
    %108 = vmatprep.subr.mxu0 0.0
    %109 = vmatpush1.msra.mxu0 0.0
    %110 = vmatprep.subr.mxu0 0.0
    %111 = vmatpush1.msra.mxu0 0.0
    %112 = vmatprep.subr.mxu0 0.0
    %113 = vmatpush1.msra.mxu0 0.0
    %114 = vmatprep.subr.mxu0 0.0
    %115 = vmatpush1.msra.mxu0 0.0
    %116 = vmatprep.subr.mxu0 0.0
    %117 = vmatpush1.msra.mxu0 0.0
    %118 = vmatprep.subr.mxu0 0.0
    %119 = vmatpush1.msra.mxu0 0.0
    %120 = vmatprep.subr.mxu0 0.0
    %121 = vmatpush1.msra.mxu0 0.0
    %122 = vmatprep.subr.mxu0 0.0
    %123 = vmatpush1.msra.mxu0 0.0
    %124 = vmatprep.subr.mxu0 0.0
    %125 = vmatpush1.msra.mxu0 %v83
    %126 = vmatprep.subr.mxu0 0.0
    %127 = vmatpush1.msra.mxu0 %v82
    %128 = vmatprep.subr.mxu0 0.0
    %129 = vmatpush1.msra.mxu0 %v81
    %130 = vmatprep.subr.mxu0 0.0
    %131 = vmatpush1.msra.mxu0 %v80
    %132 = vmatprep.subr.mxu0 0.0
    %133 = vmatpush2.msra.mxu0 0.0
    %134 = vmatprep.subr.mxu0 0.0
    %135 = vmatpush2.msra.mxu0 0.0
    %136 = vmatprep.subr.mxu0 0.0
    %137 = vmatpush2.msra.mxu0 0.0
    %138 = vmatprep.subr.mxu0 0.0
    %139 = vmatpush2.msra.mxu0 0.0
    %140 = vmatprep.subr.mxu0 0.0
    %141 = vmatpush2.msra.mxu0 0.0
    %142 = vmatprep.subr.mxu0 0.0
    %143 = vmatpush2.msra.mxu0 0.0
    %144 = vmatprep.subr.mxu0 0.0
    %145 = vmatpush2.msra.mxu0 0.0
    %146 = vmatprep.subr.mxu0 0.0
    %147 = vmatpush2.msra.mxu0 0.0
    %148 = vmatprep.subr.mxu0 0.0
    %149 = vmatpush2.msra.mxu0 0.0
    %150 = vmatprep.subr.mxu0 0.0
    %151 = vmatpush2.msra.mxu0 0.0
    %152 = vmatprep.subr.mxu0 0.0
    %153 = vmatpush2.msra.mxu0 0.0
    %154 = vmatprep.subr.mxu0 0.0
    %155 = vmatpush2.msra.mxu0 0.0
    %156 = vmatprep.subr.mxu0 0.0
    %157 = vmatpush2.msra.mxu0 0.0
    %158 = vmatprep.subr.mxu0 0.0
    %159 = vmatpush2.msra.mxu0 0.0
    %160 = vmatprep.subr.mxu0 0.0
    %161 = vmatpush2.msra.mxu0 0.0
    %162 = vmatprep.subr.mxu0 0.0
    %163 = vmatpush2.msra.mxu0 0.0
    %164 = vmatprep.mubr.f32.mxu0 0.0
    %165 = vmatmul.mubr.f32.gmra.mxu0 %v98
    %v166 = vpop.f32.mrf.mxu0
    %v167 = vadd.f32 0.0, %v166
    %v168 = vpop.f32.mrf.mxu0
    %169 = vdwg.mxu0
    %v170 = vadd.f32 %v95, %v167
    %v171 = vxor.u32 %v170, 2147483648
    %v172 = vmul.f32 %v171, 1.442695
    %v173 = vpow.pop %v172
    %v174 = vadd.f32 %v173, 1.0
    %v175 = vrcp.pop %v174
    %v176 = vmul.f32 1.0, %v175
    %v177 = vtanh.pop %v170
    %179 = vrot.lane.b32.xlu0 %v94, 32
    %v180 = vpop.permute.xlu0 %179
    %v182 = vmul.f32 %v176, %v180
    %184 = vrot.lane.b32.xlu0 %v177, 64
    %v185 = vpop.permute.xlu0 %184
    %v187 = vmul.f32 %v176, %v185
    %189 = vrot.lane.b32.xlu0 %v187, 32
    %v190 = vpop.permute.xlu0 %189
    %v192 = vadd.f32 %v182, %v190
    %v193 = vtanh.pop %v192
    %195 = vrot.lane.b32.xlu0 %v193, 64
    %v196 = vpop.permute.xlu0 %195
    %v198 = vmul.f32 %v176, %v196
    %s199 = scalar_lea.vmem %s1, 2
    %v200 = vld [vmem:[%s199] sm:$0x3]
    %s201 = scalar_lea.vmem %s2, 2
    %v202 = vld [vmem:[%s201] sm:$0x3]
    %v204 = vsel %vm96, %v200, 0
    %206 = vmatprep.subr.mxu0 0.0
    %207 = vmatpush1.msra.mxu0 0.0
    %208 = vmatprep.subr.mxu0 0.0
    %209 = vmatpush1.msra.mxu0 0.0
    %210 = vmatprep.subr.mxu0 0.0
    %211 = vmatpush1.msra.mxu0 0.0
    %212 = vmatprep.subr.mxu0 0.0
    %213 = vmatpush1.msra.mxu0 0.0
    %214 = vmatprep.subr.mxu0 0.0
    %215 = vmatpush1.msra.mxu0 0.0
    %216 = vmatprep.subr.mxu0 0.0
    %217 = vmatpush1.msra.mxu0 0.0
    %218 = vmatprep.subr.mxu0 0.0
    %219 = vmatpush1.msra.mxu0 0.0
    %220 = vmatprep.subr.mxu0 0.0
    %221 = vmatpush1.msra.mxu0 0.0
    %222 = vmatprep.subr.mxu0 0.0
    %223 = vmatpush1.msra.mxu0 0.0
    %224 = vmatprep.subr.mxu0 0.0
    %225 = vmatpush1.msra.mxu0 0.0
    %226 = vmatprep.subr.mxu0 0.0
    %227 = vmatpush1.msra.mxu0 0.0
    %228 = vmatprep.subr.mxu0 0.0
    %229 = vmatpush1.msra.mxu0 0.0
    %230 = vmatprep.subr.mxu0 0.0
    %231 = vmatpush1.msra.mxu0 %v91
    %232 = vmatprep.subr.mxu0 0.0
    %233 = vmatpush1.msra.mxu0 %v90
    %234 = vmatprep.subr.mxu0 0.0
    %235 = vmatpush1.msra.mxu0 %v89
    %236 = vmatprep.subr.mxu0 0.0
    %237 = vmatpush1.msra.mxu0 %v88
    %238 = vmatprep.subr.mxu0 0.0
    %239 = vmatpush2.msra.mxu0 0.0
    %240 = vmatprep.subr.mxu0 0.0
    %241 = vmatpush2.msra.mxu0 0.0
    %242 = vmatprep.subr.mxu0 0.0
    %243 = vmatpush2.msra.mxu0 0.0
    %244 = vmatprep.subr.mxu0 0.0
    %245 = vmatpush2.msra.mxu0 0.0
    %246 = vmatprep.subr.mxu0 0.0
    %247 = vmatpush2.msra.mxu0 0.0
    %248 = vmatprep.subr.mxu0 0.0
    %249 = vmatpush2.msra.mxu0 0.0
    %250 = vmatprep.subr.mxu0 0.0
    %251 = vmatpush2.msra.mxu0 0.0
    %252 = vmatprep.subr.mxu0 0.0
    %253 = vmatpush2.msra.mxu0 0.0
    %254 = vmatprep.subr.mxu0 0.0
    %255 = vmatpush2.msra.mxu0 0.0
    %256 = vmatprep.subr.mxu0 0.0
    %257 = vmatpush2.msra.mxu0 0.0
    %258 = vmatprep.subr.mxu0 0.0
    %259 = vmatpush2.msra.mxu0 0.0
    %260 = vmatprep.subr.mxu0 0.0
    %261 = vmatpush2.msra.mxu0 0.0
    %262 = vmatprep.subr.mxu0 0.0
    %263 = vmatpush2.msra.mxu0 0.0
    %264 = vmatprep.subr.mxu0 0.0
    %265 = vmatpush2.msra.mxu0 0.0
    %266 = vmatprep.subr.mxu0 0.0
    %267 = vmatpush2.msra.mxu0 0.0
    %268 = vmatprep.subr.mxu0 0.0
    %269 = vmatpush2.msra.mxu0 0.0
    %270 = vmatprep.mubr.f32.mxu0 0.0
    %271 = vmatmul.mubr.f32.gmra.mxu0 %v204
    %v272 = vpop.f32.mrf.mxu0
    %v273 = vadd.f32 0.0, %v272
    %v274 = vpop.f32.mrf.mxu0
    %275 = vdwg.mxu0
    %277 = vrot.lane.b32.xlu0 %v198, 32
    %v278 = vpop.permute.xlu0 %277
    %v279 = vsel %vm96, %v278, 0
    %281 = vmatprep.subr.mxu0 0.0
    %282 = vmatpush1.msra.mxu0 0.0
    %283 = vmatprep.subr.mxu0 0.0
    %284 = vmatpush1.msra.mxu0 0.0
    %285 = vmatprep.subr.mxu0 0.0
    %286 = vmatpush1.msra.mxu0 0.0
    %287 = vmatprep.subr.mxu0 0.0
    %288 = vmatpush1.msra.mxu0 0.0
    %289 = vmatprep.subr.mxu0 0.0
    %290 = vmatpush1.msra.mxu0 0.0
    %291 = vmatprep.subr.mxu0 0.0
    %292 = vmatpush1.msra.mxu0 0.0
    %293 = vmatprep.subr.mxu0 0.0
    %294 = vmatpush1.msra.mxu0 0.0
    %295 = vmatprep.subr.mxu0 0.0
    %296 = vmatpush1.msra.mxu0 0.0
    %297 = vmatprep.subr.mxu0 0.0
    %298 = vmatpush1.msra.mxu0 0.0
    %299 = vmatprep.subr.mxu0 0.0
    %300 = vmatpush1.msra.mxu0 0.0
    %301 = vmatprep.subr.mxu0 0.0
    %302 = vmatpush1.msra.mxu0 0.0
    %303 = vmatprep.subr.mxu0 0.0
    %304 = vmatpush1.msra.mxu0 0.0
    %305 = vmatprep.subr.mxu0 0.0
    %306 = vmatpush1.msra.mxu0 %v87
    %307 = vmatprep.subr.mxu0 0.0
    %308 = vmatpush1.msra.mxu0 %v86
    %309 = vmatprep.subr.mxu0 0.0
    %310 = vmatpush1.msra.mxu0 %v85
    %311 = vmatprep.subr.mxu0 0.0
    %312 = vmatpush1.msra.mxu0 %v84
    %313 = vmatprep.subr.mxu0 0.0
    %314 = vmatpush2.msra.mxu0 0.0
    %315 = vmatprep.subr.mxu0 0.0
    %316 = vmatpush2.msra.mxu0 0.0
    %317 = vmatprep.subr.mxu0 0.0
    %318 = vmatpush2.msra.mxu0 0.0
    %319 = vmatprep.subr.mxu0 0.0
    %320 = vmatpush2.msra.mxu0 0.0
    %321 = vmatprep.subr.mxu0 0.0
    %322 = vmatpush2.msra.mxu0 0.0
    %323 = vmatprep.subr.mxu0 0.0
    %324 = vmatpush2.msra.mxu0 0.0
    %325 = vmatprep.subr.mxu0 0.0
    %326 = vmatpush2.msra.mxu0 0.0
    %327 = vmatprep.subr.mxu0 0.0
    %328 = vmatpush2.msra.mxu0 0.0
    %329 = vmatprep.subr.mxu0 0.0
    %330 = vmatpush2.msra.mxu0 0.0
    %331 = vmatprep.subr.mxu0 0.0
    %332 = vmatpush2.msra.mxu0 0.0
    %333 = vmatprep.subr.mxu0 0.0
    %334 = vmatpush2.msra.mxu0 0.0
    %335 = vmatprep.subr.mxu0 0.0
    %336 = vmatpush2.msra.mxu0 0.0
    %337 = vmatprep.subr.mxu0 0.0
    %338 = vmatpush2.msra.mxu0 0.0
    %339 = vmatprep.subr.mxu0 0.0
    %340 = vmatpush2.msra.mxu0 0.0
    %341 = vmatprep.subr.mxu0 0.0
    %342 = vmatpush2.msra.mxu0 0.0
    %343 = vmatprep.subr.mxu0 0.0
    %344 = vmatpush2.msra.mxu0 0.0
    %345 = vmatprep.mubr.f32.mxu0 0.0
    %346 = vmatmul.mubr.f32.gmra.mxu0 %v279
    %v347 = vpop.f32.mrf.mxu0
    %v348 = vadd.f32 %v273, %v347
    %v349 = vpop.f32.mrf.mxu0
    %350 = vdwg.mxu0
    %v352 = vlaneseq
    %v353 = vshrl.u32 %v352, 7
    %v354 = vsub.s32 0, %v353
    %v355 = vrot.slane %v92, %v354
    %v357 = vadd.f32 %v348, %v355
    %v358 = vxor.u32 %v357, 2147483648
    %v359 = vmul.f32 %v358, 1.442695
    %v360 = vpow.pop %v359
    %v361 = vadd.f32 %v360, 1.0
    %v362 = vrcp.pop %v361
    %v363 = vmul.f32 1.0, %v362
    %v364 = vtanh.pop %v357
    %366 = vrot.lane.b32.xlu0 %v202, 32
    %v367 = vpop.permute.xlu0 %366
    %v369 = vmul.f32 %v363, %v367
    %371 = vrot.lane.b32.xlu0 %v364, 64
    %v372 = vpop.permute.xlu0 %371
    %v374 = vmul.f32 %v363, %v372
    %376 = vrot.lane.b32.xlu0 %v374, 32
    %v377 = vpop.permute.xlu0 %376
    %v379 = vadd.f32 %v369, %v377
    %v380 = vtanh.pop %v379
    %382 = vrot.lane.b32.xlu0 %v380, 64
    %v383 = vpop.permute.xlu0 %382
    %v385 = vmul.f32 %v363, %v383
    %s386 = scalar_lea.vmem [#allocation3], 2
    %v387 = vld [vmem:[%s386] sm:$0x3]
    %388 = vmatprep.subr.mxu0 0.0
    %389 = vmatpush1.msra.mxu0 0.0
    %390 = vmatprep.subr.mxu0 0.0
    %391 = vmatpush1.msra.mxu0 0.0
    %392 = vmatprep.subr.mxu0 0.0
    %393 = vmatpush1.msra.mxu0 0.0
    %394 = vmatprep.subr.mxu0 0.0
    %395 = vmatpush1.msra.mxu0 0.0
    %396 = vmatprep.subr.mxu0 0.0
    %397 = vmatpush1.msra.mxu0 0.0
    %398 = vmatprep.subr.mxu0 0.0
    %399 = vmatpush1.msra.mxu0 0.0
    %400 = vmatprep.subr.mxu0 0.0
    %401 = vmatpush1.msra.mxu0 0.0
    %402 = vmatprep.subr.mxu0 0.0
    %403 = vmatpush1.msra.mxu0 0.0
    %404 = vmatprep.subr.mxu0 0.0
    %405 = vmatpush1.msra.mxu0 0.0
    %406 = vmatprep.subr.mxu0 0.0
    %407 = vmatpush1.msra.mxu0 0.0
    %408 = vmatprep.subr.mxu0 0.0
    %409 = vmatpush1.msra.mxu0 0.0
    %410 = vmatprep.subr.mxu0 0.0
    %411 = vmatpush1.msra.mxu0 0.0
    %412 = vmatprep.subr.mxu0 0.0
    %413 = vmatpush1.msra.mxu0 %v83
    %414 = vmatprep.subr.mxu0 0.0
    %415 = vmatpush1.msra.mxu0 %v82
    %416 = vmatprep.subr.mxu0 0.0
    %417 = vmatpush1.msra.mxu0 %v81
    %418 = vmatprep.subr.mxu0 0.0
    %419 = vmatpush1.msra.mxu0 %v80
    %420 = vmatprep.subr.mxu0 0.0
    %421 = vmatpush2.msra.mxu0 0.0
    %422 = vmatprep.subr.mxu0 0.0
    %423 = vmatpush2.msra.mxu0 0.0
    %424 = vmatprep.subr.mxu0 0.0
    %425 = vmatpush2.msra.mxu0 0.0
    %426 = vmatprep.subr.mxu0 0.0
    %427 = vmatpush2.msra.mxu0 0.0
    %428 = vmatprep.subr.mxu0 0.0
    %429 = vmatpush2.msra.mxu0 0.0
    %430 = vmatprep.subr.mxu0 0.0
    %431 = vmatpush2.msra.mxu0 0.0
    %432 = vmatprep.subr.mxu0 0.0
    %433 = vmatpush2.msra.mxu0 0.0
    %434 = vmatprep.subr.mxu0 0.0
    %435 = vmatpush2.msra.mxu0 0.0
    %436 = vmatprep.subr.mxu0 0.0
    %437 = vmatpush2.msra.mxu0 0.0
    %438 = vmatprep.subr.mxu0 0.0
    %439 = vmatpush2.msra.mxu0 0.0
    %440 = vmatprep.subr.mxu0 0.0
    %441 = vmatpush2.msra.mxu0 0.0
    %442 = vmatprep.subr.mxu0 0.0
    %443 = vmatpush2.msra.mxu0 0.0
    %444 = vmatprep.subr.mxu0 0.0
    %445 = vmatpush2.msra.mxu0 0.0
    %446 = vmatprep.subr.mxu0 0.0
    %447 = vmatpush2.msra.mxu0 0.0
    %448 = vmatprep.subr.mxu0 0.0
    %449 = vmatpush2.msra.mxu0 0.0
    %450 = vmatprep.subr.mxu0 0.0
    %451 = vmatpush2.msra.mxu0 0.0
    %452 = vmatprep.mubr.f32.mxu0 0.0
    %453 = vmatmul.mubr.f32.gmra.mxu0 %v279
    %v454 = vpop.f32.mrf.mxu0
    %v455 = vadd.f32 0.0, %v454
    %v456 = vpop.f32.mrf.mxu0
    %457 = vdwg.mxu0
    %v458 = vadd.f32 %v387, %v455
    %v459 = vxor.u32 %v458, 2147483648
    %v460 = vmul.f32 %v459, 1.442695
    %v461 = vpow.pop %v460
    %v462 = vadd.f32 %v461, 1.0
    %v463 = vrcp.pop %v462
    %v464 = vmul.f32 1.0, %v463
    %v465 = vtanh.pop %v458
    %v466 = vmul.f32 %v464, %v192
    %468 = vrot.lane.b32.xlu0 %v465, 64
    %v469 = vpop.permute.xlu0 %468
    %v471 = vmul.f32 %v464, %v469
    %473 = vrot.lane.b32.xlu0 %v471, 32
    %v474 = vpop.permute.xlu0 %473
    %v476 = vadd.f32 %v466, %v474
    %v477 = vtanh.pop %v476
    %479 = vrot.lane.b32.xlu0 %v477, 64
    %v480 = vpop.permute.xlu0 %479
    %v482 = vmul.f32 %v464, %v480
    %484 = vrot.lane.b32.xlu0 %v385, 32
    %v485 = vpop.permute.xlu0 %484
    %v486 = vsel %vm96, %v485, 0
    %488 = vmatprep.subr.mxu0 0.0
    %489 = vmatpush1.msra.mxu0 0.0
    %490 = vmatprep.subr.mxu0 0.0
    %491 = vmatpush1.msra.mxu0 0.0
    %492 = vmatprep.subr.mxu0 0.0
    %493 = vmatpush1.msra.mxu0 0.0
    %494 = vmatprep.subr.mxu0 0.0
    %495 = vmatpush1.msra.mxu0 0.0
    %496 = vmatprep.subr.mxu0 0.0
    %497 = vmatpush1.msra.mxu0 0.0
    %498 = vmatprep.subr.mxu0 0.0
    %499 = vmatpush1.msra.mxu0 0.0
    %500 = vmatprep.subr.mxu0 0.0
    %501 = vmatpush1.msra.mxu0 0.0
    %502 = vmatprep.subr.mxu0 0.0
    %503 = vmatpush1.msra.mxu0 0.0
    %504 = vmatprep.subr.mxu0 0.0
    %505 = vmatpush1.msra.mxu0 0.0
    %506 = vmatprep.subr.mxu0 0.0
    %507 = vmatpush1.msra.mxu0 0.0
    %508 = vmatprep.subr.mxu0 0.0
    %509 = vmatpush1.msra.mxu0 0.0
    %510 = vmatprep.subr.mxu0 0.0
    %511 = vmatpush1.msra.mxu0 0.0
    %512 = vmatprep.subr.mxu0 0.0
    %513 = vmatpush1.msra.mxu0 %v91
    %514 = vmatprep.subr.mxu0 0.0
    %515 = vmatpush1.msra.mxu0 %v90
    %516 = vmatprep.subr.mxu0 0.0
    %517 = vmatpush1.msra.mxu0 %v89
    %518 = vmatprep.subr.mxu0 0.0
    %519 = vmatpush1.msra.mxu0 %v88
    %520 = vmatprep.subr.mxu0 0.0
    %521 = vmatpush2.msra.mxu0 0.0
    %522 = vmatprep.subr.mxu0 0.0
    %523 = vmatpush2.msra.mxu0 0.0
    %524 = vmatprep.subr.mxu0 0.0
    %525 = vmatpush2.msra.mxu0 0.0
    %526 = vmatprep.subr.mxu0 0.0
    %527 = vmatpush2.msra.mxu0 0.0
    %528 = vmatprep.subr.mxu0 0.0
    %529 = vmatpush2.msra.mxu0 0.0
    %530 = vmatprep.subr.mxu0 0.0
    %531 = vmatpush2.msra.mxu0 0.0
    %532 = vmatprep.subr.mxu0 0.0
    %533 = vmatpush2.msra.mxu0 0.0
    %534 = vmatprep.subr.mxu0 0.0
    %535 = vmatpush2.msra.mxu0 0.0
    %536 = vmatprep.subr.mxu0 0.0
    %537 = vmatpush2.msra.mxu0 0.0
    %538 = vmatprep.subr.mxu0 0.0
    %539 = vmatpush2.msra.mxu0 0.0
    %540 = vmatprep.subr.mxu0 0.0
    %541 = vmatpush2.msra.mxu0 0.0
    %542 = vmatprep.subr.mxu0 0.0
    %543 = vmatpush2.msra.mxu0 0.0
    %544 = vmatprep.subr.mxu0 0.0
    %545 = vmatpush2.msra.mxu0 0.0
    %546 = vmatprep.subr.mxu0 0.0
    %547 = vmatpush2.msra.mxu0 0.0
    %548 = vmatprep.subr.mxu0 0.0
    %549 = vmatpush2.msra.mxu0 0.0
    %550 = vmatprep.subr.mxu0 0.0
    %551 = vmatpush2.msra.mxu0 0.0
    %552 = vmatprep.mubr.f32.mxu0 0.0
    %553 = vmatmul.mubr.f32.gmra.mxu0 %v486
    %v554 = vpop.f32.mrf.mxu0
    %v555 = vadd.f32 0.0, %v554
    %v556 = vpop.f32.mrf.mxu0
    %557 = vdwg.mxu0
    %559 = vrot.lane.b32.xlu0 %v482, 32
    %v560 = vpop.permute.xlu0 %559
    %v561 = vsel %vm96, %v560, 0
    %563 = vmatprep.subr.mxu0 0.0
    %564 = vmatpush1.msra.mxu0 0.0
    %565 = vmatprep.subr.mxu0 0.0
    %566 = vmatpush1.msra.mxu0 0.0
    %567 = vmatprep.subr.mxu0 0.0
    %568 = vmatpush1.msra.mxu0 0.0
    %569 = vmatprep.subr.mxu0 0.0
    %570 = vmatpush1.msra.mxu0 0.0
    %571 = vmatprep.subr.mxu0 0.0
    %572 = vmatpush1.msra.mxu0 0.0
    %573 = vmatprep.subr.mxu0 0.0
    %574 = vmatpush1.msra.mxu0 0.0
    %575 = vmatprep.subr.mxu0 0.0
    %576 = vmatpush1.msra.mxu0 0.0
    %577 = vmatprep.subr.mxu0 0.0
    %578 = vmatpush1.msra.mxu0 0.0
    %579 = vmatprep.subr.mxu0 0.0
    %580 = vmatpush1.msra.mxu0 0.0
    %581 = vmatprep.subr.mxu0 0.0
    %582 = vmatpush1.msra.mxu0 0.0
    %583 = vmatprep.subr.mxu0 0.0
    %584 = vmatpush1.msra.mxu0 0.0
    %585 = vmatprep.subr.mxu0 0.0
    %586 = vmatpush1.msra.mxu0 0.0
    %587 = vmatprep.subr.mxu0 0.0
    %588 = vmatpush1.msra.mxu0 %v87
    %589 = vmatprep.subr.mxu0 0.0
    %590 = vmatpush1.msra.mxu0 %v86
    %591 = vmatprep.subr.mxu0 0.0
    %592 = vmatpush1.msra.mxu0 %v85
    %593 = vmatprep.subr.mxu0 0.0
    %594 = vmatpush1.msra.mxu0 %v84
    %595 = vmatprep.subr.mxu0 0.0
    %596 = vmatpush2.msra.mxu0 0.0
    %597 = vmatprep.subr.mxu0 0.0
    %598 = vmatpush2.msra.mxu0 0.0
    %599 = vmatprep.subr.mxu0 0.0
    %600 = vmatpush2.msra.mxu0 0.0
    %601 = vmatprep.subr.mxu0 0.0
    %602 = vmatpush2.msra.mxu0 0.0
    %603 = vmatprep.subr.mxu0 0.0
    %604 = vmatpush2.msra.mxu0 0.0
    %605 = vmatprep.subr.mxu0 0.0
    %606 = vmatpush2.msra.mxu0 0.0
    %607 = vmatprep.subr.mxu0 0.0
    %608 = vmatpush2.msra.mxu0 0.0
    %609 = vmatprep.subr.mxu0 0.0
    %610 = vmatpush2.msra.mxu0 0.0
    %611 = vmatprep.subr.mxu0 0.0
    %612 = vmatpush2.msra.mxu0 0.0
    %613 = vmatprep.subr.mxu0 0.0
    %614 = vmatpush2.msra.mxu0 0.0
    %615 = vmatprep.subr.mxu0 0.0
    %616 = vmatpush2.msra.mxu0 0.0
    %617 = vmatprep.subr.mxu0 0.0
    %618 = vmatpush2.msra.mxu0 0.0
    %619 = vmatprep.subr.mxu0 0.0
    %620 = vmatpush2.msra.mxu0 0.0
    %621 = vmatprep.subr.mxu0 0.0
    %622 = vmatpush2.msra.mxu0 0.0
    %623 = vmatprep.subr.mxu0 0.0
    %624 = vmatpush2.msra.mxu0 0.0
    %625 = vmatprep.subr.mxu0 0.0
    %626 = vmatpush2.msra.mxu0 0.0
    %627 = vmatprep.mubr.f32.mxu0 0.0
    %628 = vmatmul.mubr.f32.gmra.mxu0 %v561
    %v629 = vpop.f32.mrf.mxu0
    %v630 = vadd.f32 %v555, %v629
    %v631 = vpop.f32.mrf.mxu0
    %632 = vdwg.mxu0
    %v633 = vadd.f32 %v630, %v355
    %v634 = vxor.u32 %v633, 2147483648
    %v635 = vmul.f32 %v634, 1.442695
    %v636 = vpow.pop %v635
    %v637 = vadd.f32 %v636, 1.0
    %v638 = vrcp.pop %v637
    %v639 = vmul.f32 1.0, %v638
    %v640 = vtanh.pop %v633
    %v641 = vmul.f32 %v639, %v379
    %643 = vrot.lane.b32.xlu0 %v640, 64
    %v644 = vpop.permute.xlu0 %643
    %v646 = vmul.f32 %v639, %v644
    %648 = vrot.lane.b32.xlu0 %v646, 32
    %v649 = vpop.permute.xlu0 %648
    %v651 = vadd.f32 %v641, %v649
    %v652 = vtanh.pop %v651
    %654 = vrot.lane.b32.xlu0 %v652, 64
    %v655 = vpop.permute.xlu0 %654
    %v657 = vmul.f32 %v639, %v655
    %s658 = scalar_lea.vmem [#allocation3], 4
    %v659 = vld [vmem:[%s658] sm:$0x3]
    %660 = vmatprep.subr.mxu0 0.0
    %661 = vmatpush1.msra.mxu0 0.0
    %662 = vmatprep.subr.mxu0 0.0
    %663 = vmatpush1.msra.mxu0 0.0
    %664 = vmatprep.subr.mxu0 0.0
    %665 = vmatpush1.msra.mxu0 0.0
    %666 = vmatprep.subr.mxu0 0.0
    %667 = vmatpush1.msra.mxu0 0.0
    %668 = vmatprep.subr.mxu0 0.0
    %669 = vmatpush1.msra.mxu0 0.0
    %670 = vmatprep.subr.mxu0 0.0
    %671 = vmatpush1.msra.mxu0 0.0
    %672 = vmatprep.subr.mxu0 0.0
    %673 = vmatpush1.msra.mxu0 0.0
    %674 = vmatprep.subr.mxu0 0.0
    %675 = vmatpush1.msra.mxu0 0.0
    %676 = vmatprep.subr.mxu0 0.0
    %677 = vmatpush1.msra.mxu0 0.0
    %678 = vmatprep.subr.mxu0 0.0
    %679 = vmatpush1.msra.mxu0 0.0
    %680 = vmatprep.subr.mxu0 0.0
    %681 = vmatpush1.msra.mxu0 0.0
    %682 = vmatprep.subr.mxu0 0.0
    %683 = vmatpush1.msra.mxu0 0.0
    %684 = vmatprep.subr.mxu0 0.0
    %685 = vmatpush1.msra.mxu0 %v83
    %686 = vmatprep.subr.mxu0 0.0
    %687 = vmatpush1.msra.mxu0 %v82
    %688 = vmatprep.subr.mxu0 0.0
    %689 = vmatpush1.msra.mxu0 %v81
    %690 = vmatprep.subr.mxu0 0.0
    %691 = vmatpush1.msra.mxu0 %v80
    %692 = vmatprep.subr.mxu0 0.0
    %693 = vmatpush2.msra.mxu0 0.0
    %694 = vmatprep.subr.mxu0 0.0
    %695 = vmatpush2.msra.mxu0 0.0
    %696 = vmatprep.subr.mxu0 0.0
    %697 = vmatpush2.msra.mxu0 0.0
    %698 = vmatprep.subr.mxu0 0.0
    %699 = vmatpush2.msra.mxu0 0.0
    %700 = vmatprep.subr.mxu0 0.0
    %701 = vmatpush2.msra.mxu0 0.0
    %702 = vmatprep.subr.mxu0 0.0
    %703 = vmatpush2.msra.mxu0 0.0
    %704 = vmatprep.subr.mxu0 0.0
    %705 = vmatpush2.msra.mxu0 0.0
    %706 = vmatprep.subr.mxu0 0.0
    %707 = vmatpush2.msra.mxu0 0.0
    %708 = vmatprep.subr.mxu0 0.0
    %709 = vmatpush2.msra.mxu0 0.0
    %710 = vmatprep.subr.mxu0 0.0
    %711 = vmatpush2.msra.mxu0 0.0
    %712 = vmatprep.subr.mxu0 0.0
    %713 = vmatpush2.msra.mxu0 0.0
    %714 = vmatprep.subr.mxu0 0.0
    %715 = vmatpush2.msra.mxu0 0.0
    %716 = vmatprep.subr.mxu0 0.0
    %717 = vmatpush2.msra.mxu0 0.0
    %718 = vmatprep.subr.mxu0 0.0
    %719 = vmatpush2.msra.mxu0 0.0
    %720 = vmatprep.subr.mxu0 0.0
    %721 = vmatpush2.msra.mxu0 0.0
    %722 = vmatprep.subr.mxu0 0.0
    %723 = vmatpush2.msra.mxu0 0.0
    %724 = vmatprep.mubr.f32.mxu0 0.0
    %725 = vmatmul.mubr.f32.gmra.mxu0 %v561
    %v726 = vpop.f32.mrf.mxu0
    %v727 = vadd.f32 0.0, %v726
    %v728 = vpop.f32.mrf.mxu0
    %729 = vdwg.mxu0
    %v730 = vadd.f32 %v659, %v727
    %v731 = vxor.u32 %v730, 2147483648
    %v732 = vmul.f32 %v731, 1.442695
    %v733 = vpow.pop %v732
    %v734 = vadd.f32 %v733, 1.0
    %v735 = vrcp.pop %v734
    %v736 = vmul.f32 1.0, %v735
    %v737 = vtanh.pop %v730
    %v738 = vmul.f32 %v736, %v476
    %740 = vrot.lane.b32.xlu0 %v737, 64
    %v741 = vpop.permute.xlu0 %740
    %v743 = vmul.f32 %v736, %v741
    %745 = vrot.lane.b32.xlu0 %v743, 32
    %v746 = vpop.permute.xlu0 %745
    %v748 = vadd.f32 %v738, %v746
    %v749 = vtanh.pop %v748
    %751 = vrot.lane.b32.xlu0 %v749, 64
    %v752 = vpop.permute.xlu0 %751
    %v754 = vmul.f32 %v736, %v752
    %756 = vrot.lane.b32.xlu0 %v657, 32
    %v757 = vpop.permute.xlu0 %756
    %v758 = vsel %vm96, %v757, 0
    %760 = vmatprep.subr.mxu0 0.0
    %761 = vmatpush1.msra.mxu0 0.0
    %762 = vmatprep.subr.mxu0 0.0
    %763 = vmatpush1.msra.mxu0 0.0
    %764 = vmatprep.subr.mxu0 0.0
    %765 = vmatpush1.msra.mxu0 0.0
    %766 = vmatprep.subr.mxu0 0.0
    %767 = vmatpush1.msra.mxu0 0.0
    %768 = vmatprep.subr.mxu0 0.0
    %769 = vmatpush1.msra.mxu0 0.0
    %770 = vmatprep.subr.mxu0 0.0
    %771 = vmatpush1.msra.mxu0 0.0
    %772 = vmatprep.subr.mxu0 0.0
    %773 = vmatpush1.msra.mxu0 0.0
    %774 = vmatprep.subr.mxu0 0.0
    %775 = vmatpush1.msra.mxu0 0.0
    %776 = vmatprep.subr.mxu0 0.0
    %777 = vmatpush1.msra.mxu0 0.0
    %778 = vmatprep.subr.mxu0 0.0
    %779 = vmatpush1.msra.mxu0 0.0
    %780 = vmatprep.subr.mxu0 0.0
    %781 = vmatpush1.msra.mxu0 0.0
    %782 = vmatprep.subr.mxu0 0.0
    %783 = vmatpush1.msra.mxu0 0.0
    %784 = vmatprep.subr.mxu0 0.0
    %785 = vmatpush1.msra.mxu0 %v91
    %786 = vmatprep.subr.mxu0 0.0
    %787 = vmatpush1.msra.mxu0 %v90
    %788 = vmatprep.subr.mxu0 0.0
    %789 = vmatpush1.msra.mxu0 %v89
    %790 = vmatprep.subr.mxu0 0.0
    %791 = vmatpush1.msra.mxu0 %v88
    %792 = vmatprep.subr.mxu0 0.0
    %793 = vmatpush2.msra.mxu0 0.0
    %794 = vmatprep.subr.mxu0 0.0
    %795 = vmatpush2.msra.mxu0 0.0
    %796 = vmatprep.subr.mxu0 0.0
    %797 = vmatpush2.msra.mxu0 0.0
    %798 = vmatprep.subr.mxu0 0.0
    %799 = vmatpush2.msra.mxu0 0.0
    %800 = vmatprep.subr.mxu0 0.0
    %801 = vmatpush2.msra.mxu0 0.0
    %802 = vmatprep.subr.mxu0 0.0
    %803 = vmatpush2.msra.mxu0 0.0
    %804 = vmatprep.subr.mxu0 0.0
    %805 = vmatpush2.msra.mxu0 0.0
    %806 = vmatprep.subr.mxu0 0.0
    %807 = vmatpush2.msra.mxu0 0.0
    %808 = vmatprep.subr.mxu0 0.0
    %809 = vmatpush2.msra.mxu0 0.0
    %810 = vmatprep.subr.mxu0 0.0
    %811 = vmatpush2.msra.mxu0 0.0
    %812 = vmatprep.subr.mxu0 0.0
    %813 = vmatpush2.msra.mxu0 0.0
    %814 = vmatprep.subr.mxu0 0.0
    %815 = vmatpush2.msra.mxu0 0.0
    %816 = vmatprep.subr.mxu0 0.0
    %817 = vmatpush2.msra.mxu0 0.0
    %818 = vmatprep.subr.mxu0 0.0
    %819 = vmatpush2.msra.mxu0 0.0
    %820 = vmatprep.subr.mxu0 0.0
    %821 = vmatpush2.msra.mxu0 0.0
    %822 = vmatprep.subr.mxu0 0.0
    %823 = vmatpush2.msra.mxu0 0.0
    %824 = vmatprep.mubr.f32.mxu0 0.0
    %825 = vmatmul.mubr.f32.gmra.mxu0 %v758
    %v826 = vpop.f32.mrf.mxu0
    %v827 = vadd.f32 0.0, %v826
    %v828 = vpop.f32.mrf.mxu0
    %829 = vdwg.mxu0
    %831 = vrot.lane.b32.xlu0 %v754, 32
    %v832 = vpop.permute.xlu0 %831
    %v833 = vsel %vm96, %v832, 0
    %835 = vmatprep.subr.mxu0 0.0
    %836 = vmatpush1.msra.mxu0 0.0
    %837 = vmatprep.subr.mxu0 0.0
    %838 = vmatpush1.msra.mxu0 0.0
    %839 = vmatprep.subr.mxu0 0.0
    %840 = vmatpush1.msra.mxu0 0.0
    %841 = vmatprep.subr.mxu0 0.0
    %842 = vmatpush1.msra.mxu0 0.0
    %843 = vmatprep.subr.mxu0 0.0
    %844 = vmatpush1.msra.mxu0 0.0
    %845 = vmatprep.subr.mxu0 0.0
    %846 = vmatpush1.msra.mxu0 0.0
    %847 = vmatprep.subr.mxu0 0.0
    %848 = vmatpush1.msra.mxu0 0.0
    %849 = vmatprep.subr.mxu0 0.0
    %850 = vmatpush1.msra.mxu0 0.0
    %851 = vmatprep.subr.mxu0 0.0
    %852 = vmatpush1.msra.mxu0 0.0
    %853 = vmatprep.subr.mxu0 0.0
    %854 = vmatpush1.msra.mxu0 0.0
    %855 = vmatprep.subr.mxu0 0.0
    %856 = vmatpush1.msra.mxu0 0.0
    %857 = vmatprep.subr.mxu0 0.0
    %858 = vmatpush1.msra.mxu0 0.0
    %859 = vmatprep.subr.mxu0 0.0
    %860 = vmatpush1.msra.mxu0 %v87
    %861 = vmatprep.subr.mxu0 0.0
    %862 = vmatpush1.msra.mxu0 %v86
    %863 = vmatprep.subr.mxu0 0.0
    %864 = vmatpush1.msra.mxu0 %v85
    %865 = vmatprep.subr.mxu0 0.0
    %866 = vmatpush1.msra.mxu0 %v84
    %867 = vmatprep.subr.mxu0 0.0
    %868 = vmatpush2.msra.mxu0 0.0
    %869 = vmatprep.subr.mxu0 0.0
    %870 = vmatpush2.msra.mxu0 0.0
    %871 = vmatprep.subr.mxu0 0.0
    %872 = vmatpush2.msra.mxu0 0.0
    %873 = vmatprep.subr.mxu0 0.0
    %874 = vmatpush2.msra.mxu0 0.0
    %875 = vmatprep.subr.mxu0 0.0
    %876 = vmatpush2.msra.mxu0 0.0
    %877 = vmatprep.subr.mxu0 0.0
    %878 = vmatpush2.msra.mxu0 0.0
    %879 = vmatprep.subr.mxu0 0.0
    %880 = vmatpush2.msra.mxu0 0.0
    %881 = vmatprep.subr.mxu0 0.0
    %882 = vmatpush2.msra.mxu0 0.0
    %883 = vmatprep.subr.mxu0 0.0
    %884 = vmatpush2.msra.mxu0 0.0
    %885 = vmatprep.subr.mxu0 0.0
    %886 = vmatpush2.msra.mxu0 0.0
    %887 = vmatprep.subr.mxu0 0.0
    %888 = vmatpush2.msra.mxu0 0.0
    %889 = vmatprep.subr.mxu0 0.0
    %890 = vmatpush2.msra.mxu0 0.0
    %891 = vmatprep.subr.mxu0 0.0
    %892 = vmatpush2.msra.mxu0 0.0
    %893 = vmatprep.subr.mxu0 0.0
    %894 = vmatpush2.msra.mxu0 0.0
    %895 = vmatprep.subr.mxu0 0.0
    %896 = vmatpush2.msra.mxu0 0.0
    %897 = vmatprep.subr.mxu0 0.0
    %898 = vmatpush2.msra.mxu0 0.0
    %899 = vmatprep.mubr.f32.mxu0 0.0
    %900 = vmatmul.mubr.f32.gmra.mxu0 %v833
    %v901 = vpop.f32.mrf.mxu0
    %v902 = vadd.f32 %v827, %v901
    %v903 = vpop.f32.mrf.mxu0
    %904 = vdwg.mxu0
    %v905 = vadd.f32 %v902, %v355
    %v906 = vxor.u32 %v905, 2147483648
    %v907 = vmul.f32 %v906, 1.442695
    %v908 = vpow.pop %v907
    %v909 = vadd.f32 %v908, 1.0
    %v910 = vrcp.pop %v909
    %v911 = vmul.f32 1.0, %v910
    %v912 = vtanh.pop %v905
    %v913 = vmul.f32 %v911, %v651
    %915 = vrot.lane.b32.xlu0 %v912, 64
    %v916 = vpop.permute.xlu0 %915
    %v918 = vmul.f32 %v911, %v916
    %920 = vrot.lane.b32.xlu0 %v918, 32
    %v921 = vpop.permute.xlu0 %920
    %v923 = vadd.f32 %v913, %v921
    %v924 = vtanh.pop %v923
    %926 = vrot.lane.b32.xlu0 %v924, 64
    %v927 = vpop.permute.xlu0 %926
    %v929 = vmul.f32 %v911, %v927
    %s930 = scalar_lea.vmem [#allocation3], 6
    %v931 = vld [vmem:[%s930] sm:$0x3]
    %932 = vmatprep.subr.mxu0 0.0
    %933 = vmatpush1.msra.mxu0 0.0
    %934 = vmatprep.subr.mxu0 0.0
    %935 = vmatpush1.msra.mxu0 0.0
    %936 = vmatprep.subr.mxu0 0.0
    %937 = vmatpush1.msra.mxu0 0.0
    %938 = vmatprep.subr.mxu0 0.0
    %939 = vmatpush1.msra.mxu0 0.0
    %940 = vmatprep.subr.mxu0 0.0
    %941 = vmatpush1.msra.mxu0 0.0
    %942 = vmatprep.subr.mxu0 0.0
    %943 = vmatpush1.msra.mxu0 0.0
    %944 = vmatprep.subr.mxu0 0.0
    %945 = vmatpush1.msra.mxu0 0.0
    %946 = vmatprep.subr.mxu0 0.0
    %947 = vmatpush1.msra.mxu0 0.0
    %948 = vmatprep.subr.mxu0 0.0
    %949 = vmatpush1.msra.mxu0 0.0
    %950 = vmatprep.subr.mxu0 0.0
    %951 = vmatpush1.msra.mxu0 0.0
    %952 = vmatprep.subr.mxu0 0.0
    %953 = vmatpush1.msra.mxu0 0.0
    %954 = vmatprep.subr.mxu0 0.0
    %955 = vmatpush1.msra.mxu0 0.0
    %956 = vmatprep.subr.mxu0 0.0
    %957 = vmatpush1.msra.mxu0 %v83
    %958 = vmatprep.subr.mxu0 0.0
    %959 = vmatpush1.msra.mxu0 %v82
    %960 = vmatprep.subr.mxu0 0.0
    %961 = vmatpush1.msra.mxu0 %v81
    %962 = vmatprep.subr.mxu0 0.0
    %963 = vmatpush1.msra.mxu0 %v80
    %964 = vmatprep.subr.mxu0 0.0
    %965 = vmatpush2.msra.mxu0 0.0
    %966 = vmatprep.subr.mxu0 0.0
    %967 = vmatpush2.msra.mxu0 0.0
    %968 = vmatprep.subr.mxu0 0.0
    %969 = vmatpush2.msra.mxu0 0.0
    %970 = vmatprep.subr.mxu0 0.0
    %971 = vmatpush2.msra.mxu0 0.0
    %972 = vmatprep.subr.mxu0 0.0
    %973 = vmatpush2.msra.mxu0 0.0
    %974 = vmatprep.subr.mxu0 0.0
    %975 = vmatpush2.msra.mxu0 0.0
    %976 = vmatprep.subr.mxu0 0.0
    %977 = vmatpush2.msra.mxu0 0.0
    %978 = vmatprep.subr.mxu0 0.0
    %979 = vmatpush2.msra.mxu0 0.0
    %980 = vmatprep.subr.mxu0 0.0
    %981 = vmatpush2.msra.mxu0 0.0
    %982 = vmatprep.subr.mxu0 0.0
    %983 = vmatpush2.msra.mxu0 0.0
    %984 = vmatprep.subr.mxu0 0.0
    %985 = vmatpush2.msra.mxu0 0.0
    %986 = vmatprep.subr.mxu0 0.0
    %987 = vmatpush2.msra.mxu0 0.0
    %988 = vmatprep.subr.mxu0 0.0
    %989 = vmatpush2.msra.mxu0 0.0
    %990 = vmatprep.subr.mxu0 0.0
    %991 = vmatpush2.msra.mxu0 0.0
    %992 = vmatprep.subr.mxu0 0.0
    %993 = vmatpush2.msra.mxu0 0.0
    %994 = vmatprep.subr.mxu0 0.0
    %995 = vmatpush2.msra.mxu0 0.0
    %996 = vmatprep.mubr.f32.mxu0 0.0
    %997 = vmatmul.mubr.f32.gmra.mxu0 %v833
    %v998 = vpop.f32.mrf.mxu0
    %v999 = vadd.f32 0.0, %v998
    %v1000 = vpop.f32.mrf.mxu0
    %1001 = vdwg.mxu0
    %v1002 = vadd.f32 %v931, %v999
    %v1003 = vxor.u32 %v1002, 2147483648
    %v1004 = vmul.f32 %v1003, 1.442695
    %v1005 = vpow.pop %v1004
    %v1006 = vadd.f32 %v1005, 1.0
    %v1007 = vrcp.pop %v1006
    %v1008 = vmul.f32 1.0, %v1007
    %v1009 = vtanh.pop %v1002
    %v1010 = vmul.f32 %v1008, %v748
    %1012 = vrot.lane.b32.xlu0 %v1009, 64
    %v1013 = vpop.permute.xlu0 %1012
    %v1015 = vmul.f32 %v1008, %v1013
    %1017 = vrot.lane.b32.xlu0 %v1015, 32
    %v1018 = vpop.permute.xlu0 %1017
    %v1020 = vadd.f32 %v1010, %v1018
    %v1021 = vtanh.pop %v1020
    %1023 = vrot.lane.b32.xlu0 %v1021, 64
    %v1024 = vpop.permute.xlu0 %1023
    %v1026 = vmul.f32 %v1008, %v1024
    %1028 = vrot.lane.b32.xlu0 %v929, 32
    %v1029 = vpop.permute.xlu0 %1028
    %v1030 = vsel %vm96, %v1029, 0
    %1032 = vmatprep.subr.mxu0 0.0
    %1033 = vmatpush1.msra.mxu0 0.0
    %1034 = vmatprep.subr.mxu0 0.0
    %1035 = vmatpush1.msra.mxu0 0.0
    %1036 = vmatprep.subr.mxu0 0.0
    %1037 = vmatpush1.msra.mxu0 0.0
    %1038 = vmatprep.subr.mxu0 0.0
    %1039 = vmatpush1.msra.mxu0 0.0
    %1040 = vmatprep.subr.mxu0 0.0
    %1041 = vmatpush1.msra.mxu0 0.0
    %1042 = vmatprep.subr.mxu0 0.0
    %1043 = vmatpush1.msra.mxu0 0.0
    %1044 = vmatprep.subr.mxu0 0.0
    %1045 = vmatpush1.msra.mxu0 0.0
    %1046 = vmatprep.subr.mxu0 0.0
    %1047 = vmatpush1.msra.mxu0 0.0
    %1048 = vmatprep.subr.mxu0 0.0
    %1049 = vmatpush1.msra.mxu0 0.0
    %1050 = vmatprep.subr.mxu0 0.0
    %1051 = vmatpush1.msra.mxu0 0.0
    %1052 = vmatprep.subr.mxu0 0.0
    %1053 = vmatpush1.msra.mxu0 0.0
    %1054 = vmatprep.subr.mxu0 0.0
    %1055 = vmatpush1.msra.mxu0 0.0
    %1056 = vmatprep.subr.mxu0 0.0
    %1057 = vmatpush1.msra.mxu0 %v91
    %1058 = vmatprep.subr.mxu0 0.0
    %1059 = vmatpush1.msra.mxu0 %v90
    %1060 = vmatprep.subr.mxu0 0.0
    %1061 = vmatpush1.msra.mxu0 %v89
    %1062 = vmatprep.subr.mxu0 0.0
    %1063 = vmatpush1.msra.mxu0 %v88
    %1064 = vmatprep.subr.mxu0 0.0
    %1065 = vmatpush2.msra.mxu0 0.0
    %1066 = vmatprep.subr.mxu0 0.0
    %1067 = vmatpush2.msra.mxu0 0.0
    %1068 = vmatprep.subr.mxu0 0.0
    %1069 = vmatpush2.msra.mxu0 0.0
    %1070 = vmatprep.subr.mxu0 0.0
    %1071 = vmatpush2.msra.mxu0 0.0
    %1072 = vmatprep.subr.mxu0 0.0
    %1073 = vmatpush2.msra.mxu0 0.0
    %1074 = vmatprep.subr.mxu0 0.0
    %1075 = vmatpush2.msra.mxu0 0.0
    %1076 = vmatprep.subr.mxu0 0.0
    %1077 = vmatpush2.msra.mxu0 0.0
    %1078 = vmatprep.subr.mxu0 0.0
    %1079 = vmatpush2.msra.mxu0 0.0
    %1080 = vmatprep.subr.mxu0 0.0
    %1081 = vmatpush2.msra.mxu0 0.0
    %1082 = vmatprep.subr.mxu0 0.0
    %1083 = vmatpush2.msra.mxu0 0.0
    %1084 = vmatprep.subr.mxu0 0.0
    %1085 = vmatpush2.msra.mxu0 0.0
    %1086 = vmatprep.subr.mxu0 0.0
    %1087 = vmatpush2.msra.mxu0 0.0
    %1088 = vmatprep.subr.mxu0 0.0
    %1089 = vmatpush2.msra.mxu0 0.0
    %1090 = vmatprep.subr.mxu0 0.0
    %1091 = vmatpush2.msra.mxu0 0.0
    %1092 = vmatprep.subr.mxu0 0.0
    %1093 = vmatpush2.msra.mxu0 0.0
    %1094 = vmatprep.subr.mxu0 0.0
    %1095 = vmatpush2.msra.mxu0 0.0
    %1096 = vmatprep.mubr.f32.mxu0 0.0
    %1097 = vmatmul.mubr.f32.gmra.mxu0 %v1030
    %v1098 = vpop.f32.mrf.mxu0
    %v1099 = vadd.f32 0.0, %v1098
    %v1100 = vpop.f32.mrf.mxu0
    %1101 = vdwg.mxu0
    %1103 = vrot.lane.b32.xlu0 %v1026, 32
    %v1104 = vpop.permute.xlu0 %1103
    %v1105 = vsel %vm96, %v1104, 0
    %1107 = vmatprep.subr.mxu0 0.0
    %1108 = vmatpush1.msra.mxu0 0.0
    %1109 = vmatprep.subr.mxu0 0.0
    %1110 = vmatpush1.msra.mxu0 0.0
    %1111 = vmatprep.subr.mxu0 0.0
    %1112 = vmatpush1.msra.mxu0 0.0
    %1113 = vmatprep.subr.mxu0 0.0
    %1114 = vmatpush1.msra.mxu0 0.0
    %1115 = vmatprep.subr.mxu0 0.0
    %1116 = vmatpush1.msra.mxu0 0.0
    %1117 = vmatprep.subr.mxu0 0.0
    %1118 = vmatpush1.msra.mxu0 0.0
    %1119 = vmatprep.subr.mxu0 0.0
    %1120 = vmatpush1.msra.mxu0 0.0
    %1121 = vmatprep.subr.mxu0 0.0
    %1122 = vmatpush1.msra.mxu0 0.0
    %1123 = vmatprep.subr.mxu0 0.0
    %1124 = vmatpush1.msra.mxu0 0.0
    %1125 = vmatprep.subr.mxu0 0.0
    %1126 = vmatpush1.msra.mxu0 0.0
    %1127 = vmatprep.subr.mxu0 0.0
    %1128 = vmatpush1.msra.mxu0 0.0
    %1129 = vmatprep.subr.mxu0 0.0
    %1130 = vmatpush1.msra.mxu0 0.0
    %1131 = vmatprep.subr.mxu0 0.0
    %1132 = vmatpush1.msra.mxu0 %v87
    %1133 = vmatprep.subr.mxu0 0.0
    %1134 = vmatpush1.msra.mxu0 %v86
    %1135 = vmatprep.subr.mxu0 0.0
    %1136 = vmatpush1.msra.mxu0 %v85
    %1137 = vmatprep.subr.mxu0 0.0
    %1138 = vmatpush1.msra.mxu0 %v84
    %1139 = vmatprep.subr.mxu0 0.0
    %1140 = vmatpush2.msra.mxu0 0.0
    %1141 = vmatprep.subr.mxu0 0.0
    %1142 = vmatpush2.msra.mxu0 0.0
    %1143 = vmatprep.subr.mxu0 0.0
    %1144 = vmatpush2.msra.mxu0 0.0
    %1145 = vmatprep.subr.mxu0 0.0
    %1146 = vmatpush2.msra.mxu0 0.0
    %1147 = vmatprep.subr.mxu0 0.0
    %1148 = vmatpush2.msra.mxu0 0.0
    %1149 = vmatprep.subr.mxu0 0.0
    %1150 = vmatpush2.msra.mxu0 0.0
    %1151 = vmatprep.subr.mxu0 0.0
    %1152 = vmatpush2.msra.mxu0 0.0
    %1153 = vmatprep.subr.mxu0 0.0
    %1154 = vmatpush2.msra.mxu0 0.0
    %1155 = vmatprep.subr.mxu0 0.0
    %1156 = vmatpush2.msra.mxu0 0.0
    %1157 = vmatprep.subr.mxu0 0.0
    %1158 = vmatpush2.msra.mxu0 0.0
    %1159 = vmatprep.subr.mxu0 0.0
    %1160 = vmatpush2.msra.mxu0 0.0
    %1161 = vmatprep.subr.mxu0 0.0
    %1162 = vmatpush2.msra.mxu0 0.0
    %1163 = vmatprep.subr.mxu0 0.0
    %1164 = vmatpush2.msra.mxu0 0.0
    %1165 = vmatprep.subr.mxu0 0.0
    %1166 = vmatpush2.msra.mxu0 0.0
    %1167 = vmatprep.subr.mxu0 0.0
    %1168 = vmatpush2.msra.mxu0 0.0
    %1169 = vmatprep.subr.mxu0 0.0
    %1170 = vmatpush2.msra.mxu0 0.0
    %1171 = vmatprep.mubr.f32.mxu0 0.0
    %1172 = vmatmul.mubr.f32.gmra.mxu0 %v1105
    %v1173 = vpop.f32.mrf.mxu0
    %v1174 = vadd.f32 %v1099, %v1173
    %v1175 = vpop.f32.mrf.mxu0
    %1176 = vdwg.mxu0
    %v1177 = vadd.f32 %v1174, %v355
    %v1178 = vxor.u32 %v1177, 2147483648
    %v1179 = vmul.f32 %v1178, 1.442695
    %v1180 = vpow.pop %v1179
    %v1181 = vadd.f32 %v1180, 1.0
    %v1182 = vrcp.pop %v1181
    %v1183 = vmul.f32 1.0, %v1182
    %v1184 = vtanh.pop %v1177
    %v1185 = vmul.f32 %v1183, %v923
    %1187 = vrot.lane.b32.xlu0 %v1184, 64
    %v1188 = vpop.permute.xlu0 %1187
    %v1190 = vmul.f32 %v1183, %v1188
    %1192 = vrot.lane.b32.xlu0 %v1190, 32
    %v1193 = vpop.permute.xlu0 %1192
    %v1195 = vadd.f32 %v1185, %v1193
    %v1196 = vtanh.pop %v1195
    %1198 = vrot.lane.b32.xlu0 %v1196, 64
    %v1199 = vpop.permute.xlu0 %1198
    %v1201 = vmul.f32 %v1183, %v1199
    %s1202 = scalar_lea.vmem [#allocation3], 8
    %v1203 = vld [vmem:[%s1202] sm:$0x3]
    %1204 = vmatprep.subr.mxu0 0.0
    %1205 = vmatpush1.msra.mxu0 0.0
    %1206 = vmatprep.subr.mxu0 0.0
    %1207 = vmatpush1.msra.mxu0 0.0
    %1208 = vmatprep.subr.mxu0 0.0
    %1209 = vmatpush1.msra.mxu0 0.0
    %1210 = vmatprep.subr.mxu0 0.0
    %1211 = vmatpush1.msra.mxu0 0.0
    %1212 = vmatprep.subr.mxu0 0.0
    %1213 = vmatpush1.msra.mxu0 0.0
    %1214 = vmatprep.subr.mxu0 0.0
    %1215 = vmatpush1.msra.mxu0 0.0
    %1216 = vmatprep.subr.mxu0 0.0
    %1217 = vmatpush1.msra.mxu0 0.0
    %1218 = vmatprep.subr.mxu0 0.0
    %1219 = vmatpush1.msra.mxu0 0.0
    %1220 = vmatprep.subr.mxu0 0.0
    %1221 = vmatpush1.msra.mxu0 0.0
    %1222 = vmatprep.subr.mxu0 0.0
    %1223 = vmatpush1.msra.mxu0 0.0
    %1224 = vmatprep.subr.mxu0 0.0
    %1225 = vmatpush1.msra.mxu0 0.0
    %1226 = vmatprep.subr.mxu0 0.0
    %1227 = vmatpush1.msra.mxu0 0.0
    %1228 = vmatprep.subr.mxu0 0.0
    %1229 = vmatpush1.msra.mxu0 %v83
    %1230 = vmatprep.subr.mxu0 0.0
    %1231 = vmatpush1.msra.mxu0 %v82
    %1232 = vmatprep.subr.mxu0 0.0
    %1233 = vmatpush1.msra.mxu0 %v81
    %1234 = vmatprep.subr.mxu0 0.0
    %1235 = vmatpush1.msra.mxu0 %v80
    %1236 = vmatprep.subr.mxu0 0.0
    %1237 = vmatpush2.msra.mxu0 0.0
    %1238 = vmatprep.subr.mxu0 0.0
    %1239 = vmatpush2.msra.mxu0 0.0
    %1240 = vmatprep.subr.mxu0 0.0
    %1241 = vmatpush2.msra.mxu0 0.0
    %1242 = vmatprep.subr.mxu0 0.0
    %1243 = vmatpush2.msra.mxu0 0.0
    %1244 = vmatprep.subr.mxu0 0.0
    %1245 = vmatpush2.msra.mxu0 0.0
    %1246 = vmatprep.subr.mxu0 0.0
    %1247 = vmatpush2.msra.mxu0 0.0
    %1248 = vmatprep.subr.mxu0 0.0
    %1249 = vmatpush2.msra.mxu0 0.0
    %1250 = vmatprep.subr.mxu0 0.0
    %1251 = vmatpush2.msra.mxu0 0.0
    %1252 = vmatprep.subr.mxu0 0.0
    %1253 = vmatpush2.msra.mxu0 0.0
    %1254 = vmatprep.subr.mxu0 0.0
    %1255 = vmatpush2.msra.mxu0 0.0
    %1256 = vmatprep.subr.mxu0 0.0
    %1257 = vmatpush2.msra.mxu0 0.0
    %1258 = vmatprep.subr.mxu0 0.0
    %1259 = vmatpush2.msra.mxu0 0.0
    %1260 = vmatprep.subr.mxu0 0.0
    %1261 = vmatpush2.msra.mxu0 0.0
    %1262 = vmatprep.subr.mxu0 0.0
    %1263 = vmatpush2.msra.mxu0 0.0
    %1264 = vmatprep.subr.mxu0 0.0
    %1265 = vmatpush2.msra.mxu0 0.0
    %1266 = vmatprep.subr.mxu0 0.0
    %1267 = vmatpush2.msra.mxu0 0.0
    %1268 = vmatprep.mubr.f32.mxu0 0.0
    %1269 = vmatmul.mubr.f32.gmra.mxu0 %v1105
    %v1270 = vpop.f32.mrf.mxu0
    %v1271 = vadd.f32 0.0, %v1270
    %v1272 = vpop.f32.mrf.mxu0
    %1273 = vdwg.mxu0
    %v1274 = vadd.f32 %v1203, %v1271
    %v1275 = vxor.u32 %v1274, 2147483648
    %v1276 = vmul.f32 %v1275, 1.442695
    %v1277 = vpow.pop %v1276
    %v1278 = vadd.f32 %v1277, 1.0
    %v1279 = vrcp.pop %v1278
    %v1280 = vmul.f32 1.0, %v1279
    %v1281 = vtanh.pop %v1274
    %v1282 = vmul.f32 %v1280, %v1020
    %1284 = vrot.lane.b32.xlu0 %v1281, 64
    %v1285 = vpop.permute.xlu0 %1284
    %v1287 = vmul.f32 %v1280, %v1285
    %1289 = vrot.lane.b32.xlu0 %v1287, 32
    %v1290 = vpop.permute.xlu0 %1289
    %v1292 = vadd.f32 %v1282, %v1290
    %v1293 = vtanh.pop %v1292
    %1295 = vrot.lane.b32.xlu0 %v1293, 64
    %v1296 = vpop.permute.xlu0 %1295
    %v1298 = vmul.f32 %v1280, %v1296
    %1300 = vrot.lane.b32.xlu0 %v1201, 32
    %v1301 = vpop.permute.xlu0 %1300
    %v1302 = vsel %vm96, %v1301, 0
    %1304 = vmatprep.subr.mxu0 0.0
    %1305 = vmatpush1.msra.mxu0 0.0
    %1306 = vmatprep.subr.mxu0 0.0
    %1307 = vmatpush1.msra.mxu0 0.0
    %1308 = vmatprep.subr.mxu0 0.0
    %1309 = vmatpush1.msra.mxu0 0.0
    %1310 = vmatprep.subr.mxu0 0.0
    %1311 = vmatpush1.msra.mxu0 0.0
    %1312 = vmatprep.subr.mxu0 0.0
    %1313 = vmatpush1.msra.mxu0 0.0
    %1314 = vmatprep.subr.mxu0 0.0
    %1315 = vmatpush1.msra.mxu0 0.0
    %1316 = vmatprep.subr.mxu0 0.0
    %1317 = vmatpush1.msra.mxu0 0.0
    %1318 = vmatprep.subr.mxu0 0.0
    %1319 = vmatpush1.msra.mxu0 0.0
    %1320 = vmatprep.subr.mxu0 0.0
    %1321 = vmatpush1.msra.mxu0 0.0
    %1322 = vmatprep.subr.mxu0 0.0
    %1323 = vmatpush1.msra.mxu0 0.0
    %1324 = vmatprep.subr.mxu0 0.0
    %1325 = vmatpush1.msra.mxu0 0.0
    %1326 = vmatprep.subr.mxu0 0.0
    %1327 = vmatpush1.msra.mxu0 0.0
    %1328 = vmatprep.subr.mxu0 0.0
    %1329 = vmatpush1.msra.mxu0 %v91
    %1330 = vmatprep.subr.mxu0 0.0
    %1331 = vmatpush1.msra.mxu0 %v90
    %1332 = vmatprep.subr.mxu0 0.0
    %1333 = vmatpush1.msra.mxu0 %v89
    %1334 = vmatprep.subr.mxu0 0.0
    %1335 = vmatpush1.msra.mxu0 %v88
    %1336 = vmatprep.subr.mxu0 0.0
    %1337 = vmatpush2.msra.mxu0 0.0
    %1338 = vmatprep.subr.mxu0 0.0
    %1339 = vmatpush2.msra.mxu0 0.0
    %1340 = vmatprep.subr.mxu0 0.0
    %1341 = vmatpush2.msra.mxu0 0.0
    %1342 = vmatprep.subr.mxu0 0.0
    %1343 = vmatpush2.msra.mxu0 0.0
    %1344 = vmatprep.subr.mxu0 0.0
    %1345 = vmatpush2.msra.mxu0 0.0
    %1346 = vmatprep.subr.mxu0 0.0
    %1347 = vmatpush2.msra.mxu0 0.0
    %1348 = vmatprep.subr.mxu0 0.0
    %1349 = vmatpush2.msra.mxu0 0.0
    %1350 = vmatprep.subr.mxu0 0.0
    %1351 = vmatpush2.msra.mxu0 0.0
    %1352 = vmatprep.subr.mxu0 0.0
    %1353 = vmatpush2.msra.mxu0 0.0
    %1354 = vmatprep.subr.mxu0 0.0
    %1355 = vmatpush2.msra.mxu0 0.0
    %1356 = vmatprep.subr.mxu0 0.0
    %1357 = vmatpush2.msra.mxu0 0.0
    %1358 = vmatprep.subr.mxu0 0.0
    %1359 = vmatpush2.msra.mxu0 0.0
    %1360 = vmatprep.subr.mxu0 0.0
    %1361 = vmatpush2.msra.mxu0 0.0
    %1362 = vmatprep.subr.mxu0 0.0
    %1363 = vmatpush2.msra.mxu0 0.0
    %1364 = vmatprep.subr.mxu0 0.0
    %1365 = vmatpush2.msra.mxu0 0.0
    %1366 = vmatprep.subr.mxu0 0.0
    %1367 = vmatpush2.msra.mxu0 0.0
    %1368 = vmatprep.mubr.f32.mxu0 0.0
    %1369 = vmatmul.mubr.f32.gmra.mxu0 %v1302
    %v1370 = vpop.f32.mrf.mxu0
    %v1371 = vadd.f32 0.0, %v1370
    %v1372 = vpop.f32.mrf.mxu0
    %1373 = vdwg.mxu0
    %1375 = vrot.lane.b32.xlu0 %v1298, 32
    %v1376 = vpop.permute.xlu0 %1375
    %v1377 = vsel %vm96, %v1376, 0
    %1379 = vmatprep.subr.mxu0 0.0
    %1380 = vmatpush1.msra.mxu0 0.0
    %1381 = vmatprep.subr.mxu0 0.0
    %1382 = vmatpush1.msra.mxu0 0.0
    %1383 = vmatprep.subr.mxu0 0.0
    %1384 = vmatpush1.msra.mxu0 0.0
    %1385 = vmatprep.subr.mxu0 0.0
    %1386 = vmatpush1.msra.mxu0 0.0
    %1387 = vmatprep.subr.mxu0 0.0
    %1388 = vmatpush1.msra.mxu0 0.0
    %1389 = vmatprep.subr.mxu0 0.0
    %1390 = vmatpush1.msra.mxu0 0.0
    %1391 = vmatprep.subr.mxu0 0.0
    %1392 = vmatpush1.msra.mxu0 0.0
    %1393 = vmatprep.subr.mxu0 0.0
    %1394 = vmatpush1.msra.mxu0 0.0
    %1395 = vmatprep.subr.mxu0 0.0
    %1396 = vmatpush1.msra.mxu0 0.0
    %1397 = vmatprep.subr.mxu0 0.0
    %1398 = vmatpush1.msra.mxu0 0.0
    %1399 = vmatprep.subr.mxu0 0.0
    %1400 = vmatpush1.msra.mxu0 0.0
    %1401 = vmatprep.subr.mxu0 0.0
    %1402 = vmatpush1.msra.mxu0 0.0
    %1403 = vmatprep.subr.mxu0 0.0
    %1404 = vmatpush1.msra.mxu0 %v87
    %1405 = vmatprep.subr.mxu0 0.0
    %1406 = vmatpush1.msra.mxu0 %v86
    %1407 = vmatprep.subr.mxu0 0.0
    %1408 = vmatpush1.msra.mxu0 %v85
    %1409 = vmatprep.subr.mxu0 0.0
    %1410 = vmatpush1.msra.mxu0 %v84
    %1411 = vmatprep.subr.mxu0 0.0
    %1412 = vmatpush2.msra.mxu0 0.0
    %1413 = vmatprep.subr.mxu0 0.0
    %1414 = vmatpush2.msra.mxu0 0.0
    %1415 = vmatprep.subr.mxu0 0.0
    %1416 = vmatpush2.msra.mxu0 0.0
    %1417 = vmatprep.subr.mxu0 0.0
    %1418 = vmatpush2.msra.mxu0 0.0
    %1419 = vmatprep.subr.mxu0 0.0
    %1420 = vmatpush2.msra.mxu0 0.0
    %1421 = vmatprep.subr.mxu0 0.0
    %1422 = vmatpush2.msra.mxu0 0.0
    %1423 = vmatprep.subr.mxu0 0.0
    %1424 = vmatpush2.msra.mxu0 0.0
    %1425 = vmatprep.subr.mxu0 0.0
    %1426 = vmatpush2.msra.mxu0 0.0
    %1427 = vmatprep.subr.mxu0 0.0
    %1428 = vmatpush2.msra.mxu0 0.0
    %1429 = vmatprep.subr.mxu0 0.0
    %1430 = vmatpush2.msra.mxu0 0.0
    %1431 = vmatprep.subr.mxu0 0.0
    %1432 = vmatpush2.msra.mxu0 0.0
    %1433 = vmatprep.subr.mxu0 0.0
    %1434 = vmatpush2.msra.mxu0 0.0
    %1435 = vmatprep.subr.mxu0 0.0
    %1436 = vmatpush2.msra.mxu0 0.0
    %1437 = vmatprep.subr.mxu0 0.0
    %1438 = vmatpush2.msra.mxu0 0.0
    %1439 = vmatprep.subr.mxu0 0.0
    %1440 = vmatpush2.msra.mxu0 0.0
    %1441 = vmatprep.subr.mxu0 0.0
    %1442 = vmatpush2.msra.mxu0 0.0
    %1443 = vmatprep.mubr.f32.mxu0 0.0
    %1444 = vmatmul.mubr.f32.gmra.mxu0 %v1377
    %v1445 = vpop.f32.mrf.mxu0
    %v1446 = vadd.f32 %v1371, %v1445
    %v1447 = vpop.f32.mrf.mxu0
    %1448 = vdwg.mxu0
    %v1449 = vadd.f32 %v1446, %v355
    %v1450 = vxor.u32 %v1449, 2147483648
    %v1451 = vmul.f32 %v1450, 1.442695
    %v1452 = vpow.pop %v1451
    %v1453 = vadd.f32 %v1452, 1.0
    %v1454 = vrcp.pop %v1453
    %v1455 = vmul.f32 1.0, %v1454
    %v1456 = vtanh.pop %v1449
    %v1457 = vmul.f32 %v1455, %v1195
    %1459 = vrot.lane.b32.xlu0 %v1456, 64
    %v1460 = vpop.permute.xlu0 %1459
    %v1462 = vmul.f32 %v1455, %v1460
    %1464 = vrot.lane.b32.xlu0 %v1462, 32
    %v1465 = vpop.permute.xlu0 %1464
    %v1467 = vadd.f32 %v1457, %v1465
    %v1468 = vtanh.pop %v1467
    %1470 = vrot.lane.b32.xlu0 %v1468, 64
    %v1471 = vpop.permute.xlu0 %1470
    %v1473 = vmul.f32 %v1455, %v1471
    %s1474 = scalar_lea.vmem [#allocation3], 10
    %v1475 = vld [vmem:[%s1474] sm:$0x3]
    %1476 = vmatprep.subr.mxu0 0.0
    %1477 = vmatpush1.msra.mxu0 0.0
    %1478 = vmatprep.subr.mxu0 0.0
    %1479 = vmatpush1.msra.mxu0 0.0
    %1480 = vmatprep.subr.mxu0 0.0
    %1481 = vmatpush1.msra.mxu0 0.0
    %1482 = vmatprep.subr.mxu0 0.0
    %1483 = vmatpush1.msra.mxu0 0.0
    %1484 = vmatprep.subr.mxu0 0.0
    %1485 = vmatpush1.msra.mxu0 0.0
    %1486 = vmatprep.subr.mxu0 0.0
    %1487 = vmatpush1.msra.mxu0 0.0
    %1488 = vmatprep.subr.mxu0 0.0
    %1489 = vmatpush1.msra.mxu0 0.0
    %1490 = vmatprep.subr.mxu0 0.0
    %1491 = vmatpush1.msra.mxu0 0.0
    %1492 = vmatprep.subr.mxu0 0.0
    %1493 = vmatpush1.msra.mxu0 0.0
    %1494 = vmatprep.subr.mxu0 0.0
    %1495 = vmatpush1.msra.mxu0 0.0
    %1496 = vmatprep.subr.mxu0 0.0
    %1497 = vmatpush1.msra.mxu0 0.0
    %1498 = vmatprep.subr.mxu0 0.0
    %1499 = vmatpush1.msra.mxu0 0.0
    %1500 = vmatprep.subr.mxu0 0.0
    %1501 = vmatpush1.msra.mxu0 %v83
    %1502 = vmatprep.subr.mxu0 0.0
    %1503 = vmatpush1.msra.mxu0 %v82
    %1504 = vmatprep.subr.mxu0 0.0
    %1505 = vmatpush1.msra.mxu0 %v81
    %1506 = vmatprep.subr.mxu0 0.0
    %1507 = vmatpush1.msra.mxu0 %v80
    %1508 = vmatprep.subr.mxu0 0.0
    %1509 = vmatpush2.msra.mxu0 0.0
    %1510 = vmatprep.subr.mxu0 0.0
    %1511 = vmatpush2.msra.mxu0 0.0
    %1512 = vmatprep.subr.mxu0 0.0
    %1513 = vmatpush2.msra.mxu0 0.0
    %1514 = vmatprep.subr.mxu0 0.0
    %1515 = vmatpush2.msra.mxu0 0.0
    %1516 = vmatprep.subr.mxu0 0.0
    %1517 = vmatpush2.msra.mxu0 0.0
    %1518 = vmatprep.subr.mxu0 0.0
    %1519 = vmatpush2.msra.mxu0 0.0
    %1520 = vmatprep.subr.mxu0 0.0
    %1521 = vmatpush2.msra.mxu0 0.0
    %1522 = vmatprep.subr.mxu0 0.0
    %1523 = vmatpush2.msra.mxu0 0.0
    %1524 = vmatprep.subr.mxu0 0.0
    %1525 = vmatpush2.msra.mxu0 0.0
    %1526 = vmatprep.subr.mxu0 0.0
    %1527 = vmatpush2.msra.mxu0 0.0
    %1528 = vmatprep.subr.mxu0 0.0
    %1529 = vmatpush2.msra.mxu0 0.0
    %1530 = vmatprep.subr.mxu0 0.0
    %1531 = vmatpush2.msra.mxu0 0.0
    %1532 = vmatprep.subr.mxu0 0.0
    %1533 = vmatpush2.msra.mxu0 0.0
    %1534 = vmatprep.subr.mxu0 0.0
    %1535 = vmatpush2.msra.mxu0 0.0
    %1536 = vmatprep.subr.mxu0 0.0
    %1537 = vmatpush2.msra.mxu0 0.0
    %1538 = vmatprep.subr.mxu0 0.0
    %1539 = vmatpush2.msra.mxu0 0.0
    %1540 = vmatprep.mubr.f32.mxu0 0.0
    %1541 = vmatmul.mubr.f32.gmra.mxu0 %v1377
    %v1542 = vpop.f32.mrf.mxu0
    %v1543 = vadd.f32 0.0, %v1542
    %v1544 = vpop.f32.mrf.mxu0
    %1545 = vdwg.mxu0
    %v1546 = vadd.f32 %v1475, %v1543
    %v1547 = vxor.u32 %v1546, 2147483648
    %v1548 = vmul.f32 %v1547, 1.442695
    %v1549 = vpow.pop %v1548
    %v1550 = vadd.f32 %v1549, 1.0
    %v1551 = vrcp.pop %v1550
    %v1552 = vmul.f32 1.0, %v1551
    %v1553 = vtanh.pop %v1546
    %v1554 = vmul.f32 %v1552, %v1292
    %1556 = vrot.lane.b32.xlu0 %v1553, 64
    %v1557 = vpop.permute.xlu0 %1556
    %v1559 = vmul.f32 %v1552, %v1557
    %1561 = vrot.lane.b32.xlu0 %v1559, 32
    %v1562 = vpop.permute.xlu0 %1561
    %v1564 = vadd.f32 %v1554, %v1562
    %v1565 = vtanh.pop %v1564
    %1567 = vrot.lane.b32.xlu0 %v1565, 64
    %v1568 = vpop.permute.xlu0 %1567
    %v1570 = vmul.f32 %v1552, %v1568
    %1572 = vrot.lane.b32.xlu0 %v1473, 32
    %v1573 = vpop.permute.xlu0 %1572
    %v1574 = vsel %vm96, %v1573, 0
    %1576 = vmatprep.subr.mxu0 0.0
    %1577 = vmatpush1.msra.mxu0 0.0
    %1578 = vmatprep.subr.mxu0 0.0
    %1579 = vmatpush1.msra.mxu0 0.0
    %1580 = vmatprep.subr.mxu0 0.0
    %1581 = vmatpush1.msra.mxu0 0.0
    %1582 = vmatprep.subr.mxu0 0.0
    %1583 = vmatpush1.msra.mxu0 0.0
    %1584 = vmatprep.subr.mxu0 0.0
    %1585 = vmatpush1.msra.mxu0 0.0
    %1586 = vmatprep.subr.mxu0 0.0
    %1587 = vmatpush1.msra.mxu0 0.0
    %1588 = vmatprep.subr.mxu0 0.0
    %1589 = vmatpush1.msra.mxu0 0.0
    %1590 = vmatprep.subr.mxu0 0.0
    %1591 = vmatpush1.msra.mxu0 0.0
    %1592 = vmatprep.subr.mxu0 0.0
    %1593 = vmatpush1.msra.mxu0 0.0
    %1594 = vmatprep.subr.mxu0 0.0
    %1595 = vmatpush1.msra.mxu0 0.0
    %1596 = vmatprep.subr.mxu0 0.0
    %1597 = vmatpush1.msra.mxu0 0.0
    %1598 = vmatprep.subr.mxu0 0.0
    %1599 = vmatpush1.msra.mxu0 0.0
    %1600 = vmatprep.subr.mxu0 0.0
    %1601 = vmatpush1.msra.mxu0 %v91
    %1602 = vmatprep.subr.mxu0 0.0
    %1603 = vmatpush1.msra.mxu0 %v90
    %1604 = vmatprep.subr.mxu0 0.0
    %1605 = vmatpush1.msra.mxu0 %v89
    %1606 = vmatprep.subr.mxu0 0.0
    %1607 = vmatpush1.msra.mxu0 %v88
    %1608 = vmatprep.subr.mxu0 0.0
    %1609 = vmatpush2.msra.mxu0 0.0
    %1610 = vmatprep.subr.mxu0 0.0
    %1611 = vmatpush2.msra.mxu0 0.0
    %1612 = vmatprep.subr.mxu0 0.0
    %1613 = vmatpush2.msra.mxu0 0.0
    %1614 = vmatprep.subr.mxu0 0.0
    %1615 = vmatpush2.msra.mxu0 0.0
    %1616 = vmatprep.subr.mxu0 0.0
    %1617 = vmatpush2.msra.mxu0 0.0
    %1618 = vmatprep.subr.mxu0 0.0
    %1619 = vmatpush2.msra.mxu0 0.0
    %1620 = vmatprep.subr.mxu0 0.0
    %1621 = vmatpush2.msra.mxu0 0.0
    %1622 = vmatprep.subr.mxu0 0.0
    %1623 = vmatpush2.msra.mxu0 0.0
    %1624 = vmatprep.subr.mxu0 0.0
    %1625 = vmatpush2.msra.mxu0 0.0
    %1626 = vmatprep.subr.mxu0 0.0
    %1627 = vmatpush2.msra.mxu0 0.0
    %1628 = vmatprep.subr.mxu0 0.0
    %1629 = vmatpush2.msra.mxu0 0.0
    %1630 = vmatprep.subr.mxu0 0.0
    %1631 = vmatpush2.msra.mxu0 0.0
    %1632 = vmatprep.subr.mxu0 0.0
    %1633 = vmatpush2.msra.mxu0 0.0
    %1634 = vmatprep.subr.mxu0 0.0
    %1635 = vmatpush2.msra.mxu0 0.0
    %1636 = vmatprep.subr.mxu0 0.0
    %1637 = vmatpush2.msra.mxu0 0.0
    %1638 = vmatprep.subr.mxu0 0.0
    %1639 = vmatpush2.msra.mxu0 0.0
    %1640 = vmatprep.mubr.f32.mxu0 0.0
    %1641 = vmatmul.mubr.f32.gmra.mxu0 %v1574
    %v1642 = vpop.f32.mrf.mxu0
    %v1643 = vadd.f32 0.0, %v1642
    %v1644 = vpop.f32.mrf.mxu0
    %1645 = vdwg.mxu0
    %1647 = vrot.lane.b32.xlu0 %v1570, 32
    %v1648 = vpop.permute.xlu0 %1647
    %v1649 = vsel %vm96, %v1648, 0
    %1651 = vmatprep.subr.mxu0 0.0
    %1652 = vmatpush1.msra.mxu0 0.0
    %1653 = vmatprep.subr.mxu0 0.0
    %1654 = vmatpush1.msra.mxu0 0.0
    %1655 = vmatprep.subr.mxu0 0.0
    %1656 = vmatpush1.msra.mxu0 0.0
    %1657 = vmatprep.subr.mxu0 0.0
    %1658 = vmatpush1.msra.mxu0 0.0
    %1659 = vmatprep.subr.mxu0 0.0
    %1660 = vmatpush1.msra.mxu0 0.0
    %1661 = vmatprep.subr.mxu0 0.0
    %1662 = vmatpush1.msra.mxu0 0.0
    %1663 = vmatprep.subr.mxu0 0.0
    %1664 = vmatpush1.msra.mxu0 0.0
    %1665 = vmatprep.subr.mxu0 0.0
    %1666 = vmatpush1.msra.mxu0 0.0
    %1667 = vmatprep.subr.mxu0 0.0
    %1668 = vmatpush1.msra.mxu0 0.0
    %1669 = vmatprep.subr.mxu0 0.0
    %1670 = vmatpush1.msra.mxu0 0.0
    %1671 = vmatprep.subr.mxu0 0.0
    %1672 = vmatpush1.msra.mxu0 0.0
    %1673 = vmatprep.subr.mxu0 0.0
    %1674 = vmatpush1.msra.mxu0 0.0
    %1675 = vmatprep.subr.mxu0 0.0
    %1676 = vmatpush1.msra.mxu0 %v87
    %1677 = vmatprep.subr.mxu0 0.0
    %1678 = vmatpush1.msra.mxu0 %v86
    %1679 = vmatprep.subr.mxu0 0.0
    %1680 = vmatpush1.msra.mxu0 %v85
    %1681 = vmatprep.subr.mxu0 0.0
    %1682 = vmatpush1.msra.mxu0 %v84
    %1683 = vmatprep.subr.mxu0 0.0
    %1684 = vmatpush2.msra.mxu0 0.0
    %1685 = vmatprep.subr.mxu0 0.0
    %1686 = vmatpush2.msra.mxu0 0.0
    %1687 = vmatprep.subr.mxu0 0.0
    %1688 = vmatpush2.msra.mxu0 0.0
    %1689 = vmatprep.subr.mxu0 0.0
    %1690 = vmatpush2.msra.mxu0 0.0
    %1691 = vmatprep.subr.mxu0 0.0
    %1692 = vmatpush2.msra.mxu0 0.0
    %1693 = vmatprep.subr.mxu0 0.0
    %1694 = vmatpush2.msra.mxu0 0.0
    %1695 = vmatprep.subr.mxu0 0.0
    %1696 = vmatpush2.msra.mxu0 0.0
    %1697 = vmatprep.subr.mxu0 0.0
    %1698 = vmatpush2.msra.mxu0 0.0
    %1699 = vmatprep.subr.mxu0 0.0
    %1700 = vmatpush2.msra.mxu0 0.0
    %1701 = vmatprep.subr.mxu0 0.0
    %1702 = vmatpush2.msra.mxu0 0.0
    %1703 = vmatprep.subr.mxu0 0.0
    %1704 = vmatpush2.msra.mxu0 0.0
    %1705 = vmatprep.subr.mxu0 0.0
    %1706 = vmatpush2.msra.mxu0 0.0
    %1707 = vmatprep.subr.mxu0 0.0
    %1708 = vmatpush2.msra.mxu0 0.0
    %1709 = vmatprep.subr.mxu0 0.0
    %1710 = vmatpush2.msra.mxu0 0.0
    %1711 = vmatprep.subr.mxu0 0.0
    %1712 = vmatpush2.msra.mxu0 0.0
    %1713 = vmatprep.subr.mxu0 0.0
    %1714 = vmatpush2.msra.mxu0 0.0
    %1715 = vmatprep.mubr.f32.mxu0 0.0
    %1716 = vmatmul.mubr.f32.gmra.mxu0 %v1649
    %v1717 = vpop.f32.mrf.mxu0
    %v1718 = vadd.f32 %v1643, %v1717
    %v1719 = vpop.f32.mrf.mxu0
    %1720 = vdwg.mxu0
    %v1721 = vadd.f32 %v1718, %v355
    %v1722 = vxor.u32 %v1721, 2147483648
    %v1723 = vmul.f32 %v1722, 1.442695
    %v1724 = vpow.pop %v1723
    %v1725 = vadd.f32 %v1724, 1.0
    %v1726 = vrcp.pop %v1725
    %v1727 = vmul.f32 1.0, %v1726
    %v1728 = vtanh.pop %v1721
    %v1729 = vmul.f32 %v1727, %v1467
    %1731 = vrot.lane.b32.xlu0 %v1728, 64
    %v1732 = vpop.permute.xlu0 %1731
    %v1734 = vmul.f32 %v1727, %v1732
    %1736 = vrot.lane.b32.xlu0 %v1734, 32
    %v1737 = vpop.permute.xlu0 %1736
    %v1739 = vadd.f32 %v1729, %v1737
    %v1740 = vtanh.pop %v1739
    %1742 = vrot.lane.b32.xlu0 %v1740, 64
    %v1743 = vpop.permute.xlu0 %1742
    %v1745 = vmul.f32 %v1727, %v1743
    %s1746 = scalar_lea.vmem [#allocation3], 12
    %v1747 = vld [vmem:[%s1746] sm:$0x3]
    %1748 = vmatprep.subr.mxu0 0.0
    %1749 = vmatpush1.msra.mxu0 0.0
    %1750 = vmatprep.subr.mxu0 0.0
    %1751 = vmatpush1.msra.mxu0 0.0
    %1752 = vmatprep.subr.mxu0 0.0
    %1753 = vmatpush1.msra.mxu0 0.0
    %1754 = vmatprep.subr.mxu0 0.0
    %1755 = vmatpush1.msra.mxu0 0.0
    %1756 = vmatprep.subr.mxu0 0.0
    %1757 = vmatpush1.msra.mxu0 0.0
    %1758 = vmatprep.subr.mxu0 0.0
    %1759 = vmatpush1.msra.mxu0 0.0
    %1760 = vmatprep.subr.mxu0 0.0
    %1761 = vmatpush1.msra.mxu0 0.0
    %1762 = vmatprep.subr.mxu0 0.0
    %1763 = vmatpush1.msra.mxu0 0.0
    %1764 = vmatprep.subr.mxu0 0.0
    %1765 = vmatpush1.msra.mxu0 0.0
    %1766 = vmatprep.subr.mxu0 0.0
    %1767 = vmatpush1.msra.mxu0 0.0
    %1768 = vmatprep.subr.mxu0 0.0
    %1769 = vmatpush1.msra.mxu0 0.0
    %1770 = vmatprep.subr.mxu0 0.0
    %1771 = vmatpush1.msra.mxu0 0.0
    %1772 = vmatprep.subr.mxu0 0.0
    %1773 = vmatpush1.msra.mxu0 %v83
    %1774 = vmatprep.subr.mxu0 0.0
    %1775 = vmatpush1.msra.mxu0 %v82
    %1776 = vmatprep.subr.mxu0 0.0
    %1777 = vmatpush1.msra.mxu0 %v81
    %1778 = vmatprep.subr.mxu0 0.0
    %1779 = vmatpush1.msra.mxu0 %v80
    %1780 = vmatprep.subr.mxu0 0.0
    %1781 = vmatpush2.msra.mxu0 0.0
    %1782 = vmatprep.subr.mxu0 0.0
    %1783 = vmatpush2.msra.mxu0 0.0
    %1784 = vmatprep.subr.mxu0 0.0
    %1785 = vmatpush2.msra.mxu0 0.0
    %1786 = vmatprep.subr.mxu0 0.0
    %1787 = vmatpush2.msra.mxu0 0.0
    %1788 = vmatprep.subr.mxu0 0.0
    %1789 = vmatpush2.msra.mxu0 0.0
    %1790 = vmatprep.subr.mxu0 0.0
    %1791 = vmatpush2.msra.mxu0 0.0
    %1792 = vmatprep.subr.mxu0 0.0
    %1793 = vmatpush2.msra.mxu0 0.0
    %1794 = vmatprep.subr.mxu0 0.0
    %1795 = vmatpush2.msra.mxu0 0.0
    %1796 = vmatprep.subr.mxu0 0.0
    %1797 = vmatpush2.msra.mxu0 0.0
    %1798 = vmatprep.subr.mxu0 0.0
    %1799 = vmatpush2.msra.mxu0 0.0
    %1800 = vmatprep.subr.mxu0 0.0
    %1801 = vmatpush2.msra.mxu0 0.0
    %1802 = vmatprep.subr.mxu0 0.0
    %1803 = vmatpush2.msra.mxu0 0.0
    %1804 = vmatprep.subr.mxu0 0.0
    %1805 = vmatpush2.msra.mxu0 0.0
    %1806 = vmatprep.subr.mxu0 0.0
    %1807 = vmatpush2.msra.mxu0 0.0
    %1808 = vmatprep.subr.mxu0 0.0
    %1809 = vmatpush2.msra.mxu0 0.0
    %1810 = vmatprep.subr.mxu0 0.0
    %1811 = vmatpush2.msra.mxu0 0.0
    %1812 = vmatprep.mubr.f32.mxu0 0.0
    %1813 = vmatmul.mubr.f32.gmra.mxu0 %v1649
    %v1814 = vpop.f32.mrf.mxu0
    %v1815 = vadd.f32 0.0, %v1814
    %v1816 = vpop.f32.mrf.mxu0
    %1817 = vdwg.mxu0
    %v1818 = vadd.f32 %v1747, %v1815
    %v1819 = vxor.u32 %v1818, 2147483648
    %v1820 = vmul.f32 %v1819, 1.442695
    %v1821 = vpow.pop %v1820
    %v1822 = vadd.f32 %v1821, 1.0
    %v1823 = vrcp.pop %v1822
    %v1824 = vmul.f32 1.0, %v1823
    %v1825 = vtanh.pop %v1818
    %v1826 = vmul.f32 %v1824, %v1564
    %1828 = vrot.lane.b32.xlu0 %v1825, 64
    %v1829 = vpop.permute.xlu0 %1828
    %v1831 = vmul.f32 %v1824, %v1829
    %1833 = vrot.lane.b32.xlu0 %v1831, 32
    %v1834 = vpop.permute.xlu0 %1833
    %v1836 = vadd.f32 %v1826, %v1834
    %v1837 = vtanh.pop %v1836
    %1839 = vrot.lane.b32.xlu0 %v1837, 64
    %v1840 = vpop.permute.xlu0 %1839
    %v1842 = vmul.f32 %v1824, %v1840
    %1844 = vrot.lane.b32.xlu0 %v1745, 32
    %v1845 = vpop.permute.xlu0 %1844
    %v1846 = vsel %vm96, %v1845, 0
    %1848 = vmatprep.subr.mxu0 0.0
    %1849 = vmatpush1.msra.mxu0 0.0
    %1850 = vmatprep.subr.mxu0 0.0
    %1851 = vmatpush1.msra.mxu0 0.0
    %1852 = vmatprep.subr.mxu0 0.0
    %1853 = vmatpush1.msra.mxu0 0.0
    %1854 = vmatprep.subr.mxu0 0.0
    %1855 = vmatpush1.msra.mxu0 0.0
    %1856 = vmatprep.subr.mxu0 0.0
    %1857 = vmatpush1.msra.mxu0 0.0
    %1858 = vmatprep.subr.mxu0 0.0
    %1859 = vmatpush1.msra.mxu0 0.0
    %1860 = vmatprep.subr.mxu0 0.0
    %1861 = vmatpush1.msra.mxu0 0.0
    %1862 = vmatprep.subr.mxu0 0.0
    %1863 = vmatpush1.msra.mxu0 0.0
    %1864 = vmatprep.subr.mxu0 0.0
    %1865 = vmatpush1.msra.mxu0 0.0
    %1866 = vmatprep.subr.mxu0 0.0
    %1867 = vmatpush1.msra.mxu0 0.0
    %1868 = vmatprep.subr.mxu0 0.0
    %1869 = vmatpush1.msra.mxu0 0.0
    %1870 = vmatprep.subr.mxu0 0.0
    %1871 = vmatpush1.msra.mxu0 0.0
    %1872 = vmatprep.subr.mxu0 0.0
    %1873 = vmatpush1.msra.mxu0 %v91
    %1874 = vmatprep.subr.mxu0 0.0
    %1875 = vmatpush1.msra.mxu0 %v90
    %1876 = vmatprep.subr.mxu0 0.0
    %1877 = vmatpush1.msra.mxu0 %v89
    %1878 = vmatprep.subr.mxu0 0.0
    %1879 = vmatpush1.msra.mxu0 %v88
    %1880 = vmatprep.subr.mxu0 0.0
    %1881 = vmatpush2.msra.mxu0 0.0
    %1882 = vmatprep.subr.mxu0 0.0
    %1883 = vmatpush2.msra.mxu0 0.0
    %1884 = vmatprep.subr.mxu0 0.0
    %1885 = vmatpush2.msra.mxu0 0.0
    %1886 = vmatprep.subr.mxu0 0.0
    %1887 = vmatpush2.msra.mxu0 0.0
    %1888 = vmatprep.subr.mxu0 0.0
    %1889 = vmatpush2.msra.mxu0 0.0
    %1890 = vmatprep.subr.mxu0 0.0
    %1891 = vmatpush2.msra.mxu0 0.0
    %1892 = vmatprep.subr.mxu0 0.0
    %1893 = vmatpush2.msra.mxu0 0.0
    %1894 = vmatprep.subr.mxu0 0.0
    %1895 = vmatpush2.msra.mxu0 0.0
    %1896 = vmatprep.subr.mxu0 0.0
    %1897 = vmatpush2.msra.mxu0 0.0
    %1898 = vmatprep.subr.mxu0 0.0
    %1899 = vmatpush2.msra.mxu0 0.0
    %1900 = vmatprep.subr.mxu0 0.0
    %1901 = vmatpush2.msra.mxu0 0.0
    %1902 = vmatprep.subr.mxu0 0.0
    %1903 = vmatpush2.msra.mxu0 0.0
    %1904 = vmatprep.subr.mxu0 0.0
    %1905 = vmatpush2.msra.mxu0 0.0
    %1906 = vmatprep.subr.mxu0 0.0
    %1907 = vmatpush2.msra.mxu0 0.0
    %1908 = vmatprep.subr.mxu0 0.0
    %1909 = vmatpush2.msra.mxu0 0.0
    %1910 = vmatprep.subr.mxu0 0.0
    %1911 = vmatpush2.msra.mxu0 0.0
    %1912 = vmatprep.mubr.f32.mxu0 0.0
    %1913 = vmatmul.mubr.f32.gmra.mxu0 %v1846
    %v1914 = vpop.f32.mrf.mxu0
    %v1915 = vadd.f32 0.0, %v1914
    %v1916 = vpop.f32.mrf.mxu0
    %1917 = vdwg.mxu0
    %1919 = vrot.lane.b32.xlu0 %v1842, 32
    %v1920 = vpop.permute.xlu0 %1919
    %v1921 = vsel %vm96, %v1920, 0
    %1923 = vmatprep.subr.mxu0 0.0
    %1924 = vmatpush1.msra.mxu0 0.0
    %1925 = vmatprep.subr.mxu0 0.0
    %1926 = vmatpush1.msra.mxu0 0.0
    %1927 = vmatprep.subr.mxu0 0.0
    %1928 = vmatpush1.msra.mxu0 0.0
    %1929 = vmatprep.subr.mxu0 0.0
    %1930 = vmatpush1.msra.mxu0 0.0
    %1931 = vmatprep.subr.mxu0 0.0
    %1932 = vmatpush1.msra.mxu0 0.0
    %1933 = vmatprep.subr.mxu0 0.0
    %1934 = vmatpush1.msra.mxu0 0.0
    %1935 = vmatprep.subr.mxu0 0.0
    %1936 = vmatpush1.msra.mxu0 0.0
    %1937 = vmatprep.subr.mxu0 0.0
    %1938 = vmatpush1.msra.mxu0 0.0
    %1939 = vmatprep.subr.mxu0 0.0
    %1940 = vmatpush1.msra.mxu0 0.0
    %1941 = vmatprep.subr.mxu0 0.0
    %1942 = vmatpush1.msra.mxu0 0.0
    %1943 = vmatprep.subr.mxu0 0.0
    %1944 = vmatpush1.msra.mxu0 0.0
    %1945 = vmatprep.subr.mxu0 0.0
    %1946 = vmatpush1.msra.mxu0 0.0
    %1947 = vmatprep.subr.mxu0 0.0
    %1948 = vmatpush1.msra.mxu0 %v87
    %1949 = vmatprep.subr.mxu0 0.0
    %1950 = vmatpush1.msra.mxu0 %v86
    %1951 = vmatprep.subr.mxu0 0.0
    %1952 = vmatpush1.msra.mxu0 %v85
    %1953 = vmatprep.subr.mxu0 0.0
    %1954 = vmatpush1.msra.mxu0 %v84
    %1955 = vmatprep.subr.mxu0 0.0
    %1956 = vmatpush2.msra.mxu0 0.0
    %1957 = vmatprep.subr.mxu0 0.0
    %1958 = vmatpush2.msra.mxu0 0.0
    %1959 = vmatprep.subr.mxu0 0.0
    %1960 = vmatpush2.msra.mxu0 0.0
    %1961 = vmatprep.subr.mxu0 0.0
    %1962 = vmatpush2.msra.mxu0 0.0
    %1963 = vmatprep.subr.mxu0 0.0
    %1964 = vmatpush2.msra.mxu0 0.0
    %1965 = vmatprep.subr.mxu0 0.0
    %1966 = vmatpush2.msra.mxu0 0.0
    %1967 = vmatprep.subr.mxu0 0.0
    %1968 = vmatpush2.msra.mxu0 0.0
    %1969 = vmatprep.subr.mxu0 0.0
    %1970 = vmatpush2.msra.mxu0 0.0
    %1971 = vmatprep.subr.mxu0 0.0
    %1972 = vmatpush2.msra.mxu0 0.0
    %1973 = vmatprep.subr.mxu0 0.0
    %1974 = vmatpush2.msra.mxu0 0.0
    %1975 = vmatprep.subr.mxu0 0.0
    %1976 = vmatpush2.msra.mxu0 0.0
    %1977 = vmatprep.subr.mxu0 0.0
    %1978 = vmatpush2.msra.mxu0 0.0
    %1979 = vmatprep.subr.mxu0 0.0
    %1980 = vmatpush2.msra.mxu0 0.0
    %1981 = vmatprep.subr.mxu0 0.0
    %1982 = vmatpush2.msra.mxu0 0.0
    %1983 = vmatprep.subr.mxu0 0.0
    %1984 = vmatpush2.msra.mxu0 0.0
    %1985 = vmatprep.subr.mxu0 0.0
    %1986 = vmatpush2.msra.mxu0 0.0
    %1987 = vmatprep.mubr.f32.mxu0 0.0
    %1988 = vmatmul.mubr.f32.gmra.mxu0 %v1921
    %v1989 = vpop.f32.mrf.mxu0
    %v1990 = vadd.f32 %v1915, %v1989
    %v1991 = vpop.f32.mrf.mxu0
    %1992 = vdwg.mxu0
    %v1993 = vadd.f32 %v1990, %v355
    %v1994 = vxor.u32 %v1993, 2147483648
    %v1995 = vmul.f32 %v1994, 1.442695
    %v1996 = vpow.pop %v1995
    %v1997 = vadd.f32 %v1996, 1.0
    %v1998 = vrcp.pop %v1997
    %v1999 = vmul.f32 1.0, %v1998
    %v2000 = vtanh.pop %v1993
    %v2001 = vmul.f32 %v1999, %v1739
    %2003 = vrot.lane.b32.xlu0 %v2000, 64
    %v2004 = vpop.permute.xlu0 %2003
    %v2006 = vmul.f32 %v1999, %v2004
    %2008 = vrot.lane.b32.xlu0 %v2006, 32
    %v2009 = vpop.permute.xlu0 %2008
    %v2011 = vadd.f32 %v2001, %v2009
    %v2012 = vtanh.pop %v2011
    %2014 = vrot.lane.b32.xlu0 %v2012, 64
    %v2015 = vpop.permute.xlu0 %2014
    %v2017 = vmul.f32 %v1999, %v2015
    %s2018 = scalar_lea.vmem [#allocation3], 14
    %v2019 = vld [vmem:[%s2018] sm:$0x3]
    %2020 = vmatprep.subr.mxu0 0.0
    %2021 = vmatpush1.msra.mxu0 0.0
    %2022 = vmatprep.subr.mxu0 0.0
    %2023 = vmatpush1.msra.mxu0 0.0
    %2024 = vmatprep.subr.mxu0 0.0
    %2025 = vmatpush1.msra.mxu0 0.0
    %2026 = vmatprep.subr.mxu0 0.0
    %2027 = vmatpush1.msra.mxu0 0.0
    %2028 = vmatprep.subr.mxu0 0.0
    %2029 = vmatpush1.msra.mxu0 0.0
    %2030 = vmatprep.subr.mxu0 0.0
    %2031 = vmatpush1.msra.mxu0 0.0
    %2032 = vmatprep.subr.mxu0 0.0
    %2033 = vmatpush1.msra.mxu0 0.0
    %2034 = vmatprep.subr.mxu0 0.0
    %2035 = vmatpush1.msra.mxu0 0.0
    %2036 = vmatprep.subr.mxu0 0.0
    %2037 = vmatpush1.msra.mxu0 0.0
    %2038 = vmatprep.subr.mxu0 0.0
    %2039 = vmatpush1.msra.mxu0 0.0
    %2040 = vmatprep.subr.mxu0 0.0
    %2041 = vmatpush1.msra.mxu0 0.0
    %2042 = vmatprep.subr.mxu0 0.0
    %2043 = vmatpush1.msra.mxu0 0.0
    %2044 = vmatprep.subr.mxu0 0.0
    %2045 = vmatpush1.msra.mxu0 %v83
    %2046 = vmatprep.subr.mxu0 0.0
    %2047 = vmatpush1.msra.mxu0 %v82
    %2048 = vmatprep.subr.mxu0 0.0
    %2049 = vmatpush1.msra.mxu0 %v81
    %2050 = vmatprep.subr.mxu0 0.0
    %2051 = vmatpush1.msra.mxu0 %v80
    %2052 = vmatprep.subr.mxu0 0.0
    %2053 = vmatpush2.msra.mxu0 0.0
    %2054 = vmatprep.subr.mxu0 0.0
    %2055 = vmatpush2.msra.mxu0 0.0
    %2056 = vmatprep.subr.mxu0 0.0
    %2057 = vmatpush2.msra.mxu0 0.0
    %2058 = vmatprep.subr.mxu0 0.0
    %2059 = vmatpush2.msra.mxu0 0.0
    %2060 = vmatprep.subr.mxu0 0.0
    %2061 = vmatpush2.msra.mxu0 0.0
    %2062 = vmatprep.subr.mxu0 0.0
    %2063 = vmatpush2.msra.mxu0 0.0
    %2064 = vmatprep.subr.mxu0 0.0
    %2065 = vmatpush2.msra.mxu0 0.0
    %2066 = vmatprep.subr.mxu0 0.0
    %2067 = vmatpush2.msra.mxu0 0.0
    %2068 = vmatprep.subr.mxu0 0.0
    %2069 = vmatpush2.msra.mxu0 0.0
    %2070 = vmatprep.subr.mxu0 0.0
    %2071 = vmatpush2.msra.mxu0 0.0
    %2072 = vmatprep.subr.mxu0 0.0
    %2073 = vmatpush2.msra.mxu0 0.0
    %2074 = vmatprep.subr.mxu0 0.0
    %2075 = vmatpush2.msra.mxu0 0.0
    %2076 = vmatprep.subr.mxu0 0.0
    %2077 = vmatpush2.msra.mxu0 0.0
    %2078 = vmatprep.subr.mxu0 0.0
    %2079 = vmatpush2.msra.mxu0 0.0
    %2080 = vmatprep.subr.mxu0 0.0
    %2081 = vmatpush2.msra.mxu0 0.0
    %2082 = vmatprep.subr.mxu0 0.0
    %2083 = vmatpush2.msra.mxu0 0.0
    %2084 = vmatprep.mubr.f32.mxu0 0.0
    %2085 = vmatmul.mubr.f32.gmra.mxu0 %v1921
    %v2086 = vpop.f32.mrf.mxu0
    %v2087 = vadd.f32 0.0, %v2086
    %v2088 = vpop.f32.mrf.mxu0
    %2089 = vdwg.mxu0
    %v2090 = vadd.f32 %v2019, %v2087
    %v2091 = vxor.u32 %v2090, 2147483648
    %v2092 = vmul.f32 %v2091, 1.442695
    %v2093 = vpow.pop %v2092
    %v2094 = vadd.f32 %v2093, 1.0
    %v2095 = vrcp.pop %v2094
    %v2096 = vmul.f32 1.0, %v2095
    %v2097 = vtanh.pop %v2090
    %v2098 = vmul.f32 %v2096, %v1836
    %2100 = vrot.lane.b32.xlu0 %v2097, 64
    %v2101 = vpop.permute.xlu0 %2100
    %v2103 = vmul.f32 %v2096, %v2101
    %2105 = vrot.lane.b32.xlu0 %v2103, 32
    %v2106 = vpop.permute.xlu0 %2105
    %v2108 = vadd.f32 %v2098, %v2106
    %v2109 = vtanh.pop %v2108
    %2111 = vrot.lane.b32.xlu0 %v2109, 64
    %v2112 = vpop.permute.xlu0 %2111
    %v2114 = vmul.f32 %v2096, %v2112
    %2116 = vrot.lane.b32.xlu0 %v2017, 32
    %v2117 = vpop.permute.xlu0 %2116
    %v2118 = vsel %vm96, %v2117, 0
    %2120 = vmatprep.subr.mxu0 0.0
    %2121 = vmatpush1.msra.mxu0 0.0
    %2122 = vmatprep.subr.mxu0 0.0
    %2123 = vmatpush1.msra.mxu0 0.0
    %2124 = vmatprep.subr.mxu0 0.0
    %2125 = vmatpush1.msra.mxu0 0.0
    %2126 = vmatprep.subr.mxu0 0.0
    %2127 = vmatpush1.msra.mxu0 0.0
    %2128 = vmatprep.subr.mxu0 0.0
    %2129 = vmatpush1.msra.mxu0 0.0
    %2130 = vmatprep.subr.mxu0 0.0
    %2131 = vmatpush1.msra.mxu0 0.0
    %2132 = vmatprep.subr.mxu0 0.0
    %2133 = vmatpush1.msra.mxu0 0.0
    %2134 = vmatprep.subr.mxu0 0.0
    %2135 = vmatpush1.msra.mxu0 0.0
    %2136 = vmatprep.subr.mxu0 0.0
    %2137 = vmatpush1.msra.mxu0 0.0
    %2138 = vmatprep.subr.mxu0 0.0
    %2139 = vmatpush1.msra.mxu0 0.0
    %2140 = vmatprep.subr.mxu0 0.0
    %2141 = vmatpush1.msra.mxu0 0.0
    %2142 = vmatprep.subr.mxu0 0.0
    %2143 = vmatpush1.msra.mxu0 0.0
    %2144 = vmatprep.subr.mxu0 0.0
    %2145 = vmatpush1.msra.mxu0 %v91
    %2146 = vmatprep.subr.mxu0 0.0
    %2147 = vmatpush1.msra.mxu0 %v90
    %2148 = vmatprep.subr.mxu0 0.0
    %2149 = vmatpush1.msra.mxu0 %v89
    %2150 = vmatprep.subr.mxu0 0.0
    %2151 = vmatpush1.msra.mxu0 %v88
    %2152 = vmatprep.subr.mxu0 0.0
    %2153 = vmatpush2.msra.mxu0 0.0
    %2154 = vmatprep.subr.mxu0 0.0
    %2155 = vmatpush2.msra.mxu0 0.0
    %2156 = vmatprep.subr.mxu0 0.0
    %2157 = vmatpush2.msra.mxu0 0.0
    %2158 = vmatprep.subr.mxu0 0.0
    %2159 = vmatpush2.msra.mxu0 0.0
    %2160 = vmatprep.subr.mxu0 0.0
    %2161 = vmatpush2.msra.mxu0 0.0
    %2162 = vmatprep.subr.mxu0 0.0
    %2163 = vmatpush2.msra.mxu0 0.0
    %2164 = vmatprep.subr.mxu0 0.0
    %2165 = vmatpush2.msra.mxu0 0.0
    %2166 = vmatprep.subr.mxu0 0.0
    %2167 = vmatpush2.msra.mxu0 0.0
    %2168 = vmatprep.subr.mxu0 0.0
    %2169 = vmatpush2.msra.mxu0 0.0
    %2170 = vmatprep.subr.mxu0 0.0
    %2171 = vmatpush2.msra.mxu0 0.0
    %2172 = vmatprep.subr.mxu0 0.0
    %2173 = vmatpush2.msra.mxu0 0.0
    %2174 = vmatprep.subr.mxu0 0.0
    %2175 = vmatpush2.msra.mxu0 0.0
    %2176 = vmatprep.subr.mxu0 0.0
    %2177 = vmatpush2.msra.mxu0 0.0
    %2178 = vmatprep.subr.mxu0 0.0
    %2179 = vmatpush2.msra.mxu0 0.0
    %2180 = vmatprep.subr.mxu0 0.0
    %2181 = vmatpush2.msra.mxu0 0.0
    %2182 = vmatprep.subr.mxu0 0.0
    %2183 = vmatpush2.msra.mxu0 0.0
    %2184 = vmatprep.mubr.f32.mxu0 0.0
    %2185 = vmatmul.mubr.f32.gmra.mxu0 %v2118
    %v2186 = vpop.f32.mrf.mxu0
    %v2187 = vadd.f32 0.0, %v2186
    %v2188 = vpop.f32.mrf.mxu0
    %2189 = vdwg.mxu0
    %2191 = vrot.lane.b32.xlu0 %v2114, 32
    %v2192 = vpop.permute.xlu0 %2191
    %v2193 = vsel %vm96, %v2192, 0
    %2195 = vmatprep.subr.mxu0 0.0
    %2196 = vmatpush1.msra.mxu0 0.0
    %2197 = vmatprep.subr.mxu0 0.0
    %2198 = vmatpush1.msra.mxu0 0.0
    %2199 = vmatprep.subr.mxu0 0.0
    %2200 = vmatpush1.msra.mxu0 0.0
    %2201 = vmatprep.subr.mxu0 0.0
    %2202 = vmatpush1.msra.mxu0 0.0
    %2203 = vmatprep.subr.mxu0 0.0
    %2204 = vmatpush1.msra.mxu0 0.0
    %2205 = vmatprep.subr.mxu0 0.0
    %2206 = vmatpush1.msra.mxu0 0.0
    %2207 = vmatprep.subr.mxu0 0.0
    %2208 = vmatpush1.msra.mxu0 0.0
    %2209 = vmatprep.subr.mxu0 0.0
    %2210 = vmatpush1.msra.mxu0 0.0
    %2211 = vmatprep.subr.mxu0 0.0
    %2212 = vmatpush1.msra.mxu0 0.0
    %2213 = vmatprep.subr.mxu0 0.0
    %2214 = vmatpush1.msra.mxu0 0.0
    %2215 = vmatprep.subr.mxu0 0.0
    %2216 = vmatpush1.msra.mxu0 0.0
    %2217 = vmatprep.subr.mxu0 0.0
    %2218 = vmatpush1.msra.mxu0 0.0
    %2219 = vmatprep.subr.mxu0 0.0
    %2220 = vmatpush1.msra.mxu0 %v87
    %2221 = vmatprep.subr.mxu0 0.0
    %2222 = vmatpush1.msra.mxu0 %v86
    %2223 = vmatprep.subr.mxu0 0.0
    %2224 = vmatpush1.msra.mxu0 %v85
    %2225 = vmatprep.subr.mxu0 0.0
    %2226 = vmatpush1.msra.mxu0 %v84
    %2227 = vmatprep.subr.mxu0 0.0
    %2228 = vmatpush2.msra.mxu0 0.0
    %2229 = vmatprep.subr.mxu0 0.0
    %2230 = vmatpush2.msra.mxu0 0.0
    %2231 = vmatprep.subr.mxu0 0.0
    %2232 = vmatpush2.msra.mxu0 0.0
    %2233 = vmatprep.subr.mxu0 0.0
    %2234 = vmatpush2.msra.mxu0 0.0
    %2235 = vmatprep.subr.mxu0 0.0
    %2236 = vmatpush2.msra.mxu0 0.0
    %2237 = vmatprep.subr.mxu0 0.0
    %2238 = vmatpush2.msra.mxu0 0.0
    %2239 = vmatprep.subr.mxu0 0.0
    %2240 = vmatpush2.msra.mxu0 0.0
    %2241 = vmatprep.subr.mxu0 0.0
    %2242 = vmatpush2.msra.mxu0 0.0
    %2243 = vmatprep.subr.mxu0 0.0
    %2244 = vmatpush2.msra.mxu0 0.0
    %2245 = vmatprep.subr.mxu0 0.0
    %2246 = vmatpush2.msra.mxu0 0.0
    %2247 = vmatprep.subr.mxu0 0.0
    %2248 = vmatpush2.msra.mxu0 0.0
    %2249 = vmatprep.subr.mxu0 0.0
    %2250 = vmatpush2.msra.mxu0 0.0
    %2251 = vmatprep.subr.mxu0 0.0
    %2252 = vmatpush2.msra.mxu0 0.0
    %2253 = vmatprep.subr.mxu0 0.0
    %2254 = vmatpush2.msra.mxu0 0.0
    %2255 = vmatprep.subr.mxu0 0.0
    %2256 = vmatpush2.msra.mxu0 0.0
    %2257 = vmatprep.subr.mxu0 0.0
    %2258 = vmatpush2.msra.mxu0 0.0
    %2259 = vmatprep.mubr.f32.mxu0 0.0
    %2260 = vmatmul.mubr.f32.gmra.mxu0 %v2193
    %v2261 = vpop.f32.mrf.mxu0
    %v2262 = vadd.f32 %v2187, %v2261
    %v2263 = vpop.f32.mrf.mxu0
    %2264 = vdwg.mxu0
    %v2265 = vadd.f32 %v2262, %v355
    %v2266 = vxor.u32 %v2265, 2147483648
    %v2267 = vmul.f32 %v2266, 1.442695
    %v2268 = vpow.pop %v2267
    %v2269 = vadd.f32 %v2268, 1.0
    %v2270 = vrcp.pop %v2269
    %v2271 = vmul.f32 1.0, %v2270
    %v2272 = vtanh.pop %v2265
    %v2273 = vmul.f32 %v2271, %v2011
    %2275 = vrot.lane.b32.xlu0 %v2272, 64
    %v2276 = vpop.permute.xlu0 %2275
    %v2278 = vmul.f32 %v2271, %v2276
    %2280 = vrot.lane.b32.xlu0 %v2278, 32
    %v2281 = vpop.permute.xlu0 %2280
    %v2283 = vadd.f32 %v2273, %v2281
    %v2284 = vtanh.pop %v2283
    %2286 = vrot.lane.b32.xlu0 %v2284, 64
    %v2287 = vpop.permute.xlu0 %2286
    %v2289 = vmul.f32 %v2271, %v2287
    %vm2291 = vcmask 254976
    %2292 = vst.msk [vmem:[#allocation10] sm:$0x3] %vm2291, %v2192
    %2294 = vrot.lane.b32.xlu0 %v2289, 32
    %v2295 = vpop.permute.xlu0 %2294
    %s2297 = scalar_lea.vmem [#allocation10], 2
    %2298 = vst.msk [vmem:[%s2297] sm:$0x3] %vm2291, %v2295
    %2300 = vrot.lane.b32.xlu0 %v2108, 96
    %v2301 = vpop.permute.xlu0 %2300
    %2303 = vst.msk [vmem:[#allocation12] sm:$0x3] %vm2291, %v2301
    %2305 = vrot.lane.b32.xlu0 %v2283, 96
    %v2306 = vpop.permute.xlu0 %2305
    %s2308 = scalar_lea.vmem [#allocation12], 2
    %2309 = vst.msk [vmem:[%s2308] sm:$0x3] %vm2291, %v2306
    %v2310 = vld [vmem:[%s7] sm:$0xff]
    %v2311 = vld [vmem:[%s7 + $0x8] sm:$0xff]
    %v2312 = vld [vmem:[%s7 + $0x10] sm:$0xff]
    %v2313 = vld [vmem:[%s7 + $0x18] sm:$0xff]
    %v2314 = vld [vmem:[#allocation2] sm:$0x1]
    %v2316 = vlaneseq
    %v2317 = vshrl.u32 %v2316, 7
    %v2318 = vsub.s32 0, %v2317
    %v2319 = vrot.slane %v2314, %v2318
    %v2321 = vsel %vm96, %v2295, 0
    %2323 = vmatprep.subr.mxu0 0.0
    %2324 = vmatpush1.msra.mxu0 0.0
    %2325 = vmatprep.subr.mxu0 0.0
    %2326 = vmatpush1.msra.mxu0 0.0
    %2327 = vmatprep.subr.mxu0 0.0
    %2328 = vmatpush1.msra.mxu0 0.0
    %2329 = vmatprep.subr.mxu0 0.0
    %2330 = vmatpush1.msra.mxu0 0.0
    %2331 = vmatprep.subr.mxu0 0.0
    %2332 = vmatpush1.msra.mxu0 0.0
    %2333 = vmatprep.subr.mxu0 0.0
    %2334 = vmatpush1.msra.mxu0 0.0
    %2335 = vmatprep.subr.mxu0 0.0
    %2336 = vmatpush1.msra.mxu0 0.0
    %2337 = vmatprep.subr.mxu0 0.0
    %2338 = vmatpush1.msra.mxu0 0.0
    %2339 = vmatprep.subr.mxu0 0.0
    %2340 = vmatpush1.msra.mxu0 0.0
    %2341 = vmatprep.subr.mxu0 0.0
    %2342 = vmatpush1.msra.mxu0 0.0
    %2343 = vmatprep.subr.mxu0 0.0
    %2344 = vmatpush1.msra.mxu0 0.0
    %2345 = vmatprep.subr.mxu0 0.0
    %2346 = vmatpush1.msra.mxu0 0.0
    %2347 = vmatprep.subr.mxu0 0.0
    %2348 = vmatpush1.msra.mxu0 %v2313
    %2349 = vmatprep.subr.mxu0 0.0
    %2350 = vmatpush1.msra.mxu0 %v2312
    %2351 = vmatprep.subr.mxu0 0.0
    %2352 = vmatpush1.msra.mxu0 %v2311
    %2353 = vmatprep.subr.mxu0 0.0
    %2354 = vmatpush1.msra.mxu0 %v2310
    %2355 = vmatprep.subr.mxu0 0.0
    %2356 = vmatpush2.msra.mxu0 0.0
    %2357 = vmatprep.subr.mxu0 0.0
    %2358 = vmatpush2.msra.mxu0 0.0
    %2359 = vmatprep.subr.mxu0 0.0
    %2360 = vmatpush2.msra.mxu0 0.0
    %2361 = vmatprep.subr.mxu0 0.0
    %2362 = vmatpush2.msra.mxu0 0.0
    %2363 = vmatprep.subr.mxu0 0.0
    %2364 = vmatpush2.msra.mxu0 0.0
    %2365 = vmatprep.subr.mxu0 0.0
    %2366 = vmatpush2.msra.mxu0 0.0
    %2367 = vmatprep.subr.mxu0 0.0
    %2368 = vmatpush2.msra.mxu0 0.0
    %2369 = vmatprep.subr.mxu0 0.0
    %2370 = vmatpush2.msra.mxu0 0.0
    %2371 = vmatprep.subr.mxu0 0.0
    %2372 = vmatpush2.msra.mxu0 0.0
    %2373 = vmatprep.subr.mxu0 0.0
    %2374 = vmatpush2.msra.mxu0 0.0
    %2375 = vmatprep.subr.mxu0 0.0
    %2376 = vmatpush2.msra.mxu0 0.0
    %2377 = vmatprep.subr.mxu0 0.0
    %2378 = vmatpush2.msra.mxu0 0.0
    %2379 = vmatprep.subr.mxu0 0.0
    %2380 = vmatpush2.msra.mxu0 0.0
    %2381 = vmatprep.subr.mxu0 0.0
    %2382 = vmatpush2.msra.mxu0 0.0
    %2383 = vmatprep.subr.mxu0 0.0
    %2384 = vmatpush2.msra.mxu0 0.0
    %2385 = vmatprep.subr.mxu0 0.0
    %2386 = vmatpush2.msra.mxu0 0.0
    %2387 = vmatprep.mubr.f32.mxu0 0.0
    %2388 = vmatmul.mubr.f32.gmra.mxu0 %v2321
    %v2389 = vpop.f32.mrf.mxu0
    %v2390 = vadd.f32 %v2319, %v2389
    %v2391 = vpop.f32.mrf.mxu0
    %2392 = vdwg.mxu0
    %v2393 = vxor.u32 %v2390, 2147483648
    %v2394 = vmul.f32 %v2393, 1.442695
    %v2395 = vpow.pop %v2394
    %v2396 = vadd.f32 %v2395, 1.0
    %v2397 = vrcp.pop %v2396
    %v2398 = vmul.f32 1.0, %v2397
    %2400 = vset.pattern.permute.xlu0 0
    %2401 = vperm.xlu0 %2400, %v2398
    %v2402 = vpop.permute.xlu0 %2401
    %2404 = vst [vmem:[#allocation9] sm:$0x3] %v2402
    // Predicated region
    $region50: #{tpu_custom_call.1} parent=1 // pred_check
      _
    $region51: #{tpu_custom_call.1} parent=1 // pred_check_branch
      %2406 = sbr.rel (0) target = $region53
    $region52: #{tpu_custom_call.1} parent=1 // pred_region
      %s2408 = ssub.s32 32, 32
      %2409 = vsyncadd [#allocation5], %s2408
      %s2411 = sshll.u32 [#allocation9], 4
      %s2412 = int_to_ptr.vmem [resolvable:$true] %s2411
      %2414 = dma.vmem_to_hbm [thread:$0]  %s2412, 32, %s9, [#allocation5]
    $region53: #{tpu_custom_call.1} parent=1 // pred_fallthru
      _
    // Predicated region
    $region54: #{tpu_custom_call.1} parent=1 // pred_check
      _
    $region55: #{tpu_custom_call.1} parent=1 // pred_check_branch
      %2416 = sbr.rel (0) target = $region57
    $region56: #{tpu_custom_call.1} parent=1 // pred_region
      %s2418 = ssub.s32 64, 64
      %2419 = vsyncadd [#allocation11], %s2418
      %s2420 = sshll.u32 [#allocation10], 4
      %s2421 = int_to_ptr.vmem [resolvable:$true] %s2420
      %2426 = dma.vmem_to_hbm [thread:$0]  %s2421, 64, %s10, [#allocation11], 32, 32, 2
    $region57: #{tpu_custom_call.1} parent=1 // pred_fallthru
      _
    // Predicated region
    $region58: #{tpu_custom_call.1} parent=1 // pred_check
      _
    $region59: #{tpu_custom_call.1} parent=1 // pred_check_branch
      %2428 = sbr.rel (0) target = $region61
    $region60: #{tpu_custom_call.1} parent=1 // pred_region
      %s2430 = ssub.s32 64, 64
      %2431 = vsyncadd [#allocation11], %s2430
      %s2432 = sshll.u32 [#allocation12], 4
      %s2433 = int_to_ptr.vmem [resolvable:$true] %s2432
      %2438 = dma.vmem_to_hbm [thread:$0]  %s2433, 64, %s11, [#allocation11], 32, 32, 2
    $region61: #{tpu_custom_call.1} parent=1 // pred_fallthru
      _
    // Predicated region
    $region62: #{tpu_custom_call.1} parent=1 // pred_check
      _
    $region63: #{tpu_custom_call.1} parent=1 // pred_check_branch
      %2440 = sbr.rel (0) target = $region65
    $region64: #{tpu_custom_call.1} parent=1 // pred_region
      %2441 = dma.done [#allocation5], 32
    $region65: #{tpu_custom_call.1} parent=1 // pred_fallthru
      _
    // Predicated region
    $region66: #{tpu_custom_call.1} parent=1 // pred_check
      _
    $region67: #{tpu_custom_call.1} parent=1 // pred_check_branch
      %2443 = sbr.rel (0) target = $region69
    $region68: #{tpu_custom_call.1} parent=1 // pred_region
      %2444 = dma.done [#allocation11], 64
    $region69: #{tpu_custom_call.1} parent=1 // pred_fallthru
      _
    // Predicated region
    $region70: #{tpu_custom_call.1} parent=1 // pred_check
      _
    $region71: #{tpu_custom_call.1} parent=1 // pred_check_branch
      %2446 = sbr.rel (0) target = $region73
    $region72: #{tpu_custom_call.1} parent=1 // pred_region
      %2447 = dma.done [#allocation11], 64
    $region73: #{tpu_custom_call.1} parent=1 // pred_fallthru
      _
    %2448 = vsyncpa [#allocation4], 1
    %2449 = vsyncpa [#allocation7], 1
    %2450 = vsyncpa [#allocation5], 1
    %2451 = vsyncpa [#allocation11], 1

</llo_original>
